<compile_context>
chip_gen: v6e
topology: v6e:2x2x1
jax: 0.10.0
libtpu: 0.0.40
codegen_flags: <defaults>
</compile_context>

<pallas_src>
import functools

import jax
import jax.numpy as jnp
from jax.experimental import pallas as pl
from jax.experimental.pallas import tpu as pltpu


def _round_up(x, m):
    return (x + m - 1) // m * m


def _pick_tile(total, candidates):
    for c in candidates:
        if total % c == 0:
            return c
    return candidates[-1]


# ----------------------------------------------------------------------------
# Pass 1 (primary): direct conv = KH*KW shifted matmuls on a full padded image
# block, fused per-channel sum / sum-of-squares for the BatchNorm statistics.
# ----------------------------------------------------------------------------
def _direct_conv_stats_kernel(x_ref, w_ref, y_ref, sum_ref, ssq_ref, *,
                              kh_taps, kw_taps, oh, ow, dilation):
    tn = y_ref.shape[-1]
    acc = jnp.zeros((oh * ow, tn), jnp.float32)
    for kh in range(kh_taps):
        for kw in range(kw_taps):
            h0 = kh * dilation
            w0 = kw * dilation
            xs = x_ref[:, h0:h0 + oh, w0:w0 + ow, :]      # (1, oh, ow, Cin_p)
            xs = xs.reshape(oh * ow, xs.shape[-1])
            acc = acc + jnp.dot(xs, w_ref[kh, kw],
                                preferred_element_type=jnp.float32)
    y_ref[...] = acc.reshape(y_ref.shape).astype(y_ref.dtype)
    sum_ref[...] = jnp.sum(acc, axis=0, keepdims=True)[None]
    ssq_ref[...] = jnp.sum(acc * acc, axis=0, keepdims=True)[None]


def _direct_conv_pass(x_pad, w_full, oh, ow, dilation, tn, y_dtype):
    n, hp, wp, cin_p = x_pad.shape
    kh_taps, kw_taps, _, cout_p = w_full.shape
    nt = cout_p // tn
    kernel = functools.partial(_direct_conv_stats_kernel, kh_taps=kh_taps,
                               kw_taps=kw_taps, oh=oh, ow=ow,
                               dilation=dilation)
    flops = 2 * n * oh * ow * cout_p * kh_taps * kw_taps * cin_p
    bytes_accessed = (x_pad.size * 2 + w_full.size * 2 * n
                      + n * oh * ow * cout_p * 2 + 2 * n * cout_p * 4)

    y, psum, pssq = pl.pallas_call(
        kernel,
        out_shape=(
            jax.ShapeDtypeStruct((n, oh, ow, cout_p), y_dtype),
            jax.ShapeDtypeStruct((n, 1, cout_p), jnp.float32),
            jax.ShapeDtypeStruct((n, 1, cout_p), jnp.float32),
        ),
        grid_spec=pltpu.PrefetchScalarGridSpec(
            num_scalar_prefetch=0,
            grid=(n, nt),
            in_specs=[
                pl.BlockSpec((1, hp, wp, cin_p), lambda b, j: (b, 0, 0, 0)),
                pl.BlockSpec((kh_taps, kw_taps, cin_p, tn),
                             lambda b, j: (0, 0, 0, j)),
            ],
            out_specs=[
                pl.BlockSpec((1, oh, ow, tn), lambda b, j: (b, 0, 0, j)),
                pl.BlockSpec((1, 1, tn), lambda b, j: (b, 0, j)),
                pl.BlockSpec((1, 1, tn), lambda b, j: (b, 0, j)),
            ],
        ),
        compiler_params=pltpu.CompilerParams(
            dimension_semantics=("parallel", "parallel")),
        cost_estimate=pl.CostEstimate(flops=flops, transcendentals=0,
                                      bytes_accessed=bytes_accessed),
    )(x_pad, w_full)
    return y.reshape(n * oh * ow, cout_p), psum, pssq


# ----------------------------------------------------------------------------
# Pass 1 (fallback): tiled conv-as-matmul over im2col patches (stride != 1 or
# the full-image block does not fit the VMEM budget).
# ----------------------------------------------------------------------------
def _matmul_stats_kernel(p_ref, w_ref, y_ref, sum_ref, ssq_ref, acc_ref):
    k = pl.program_id(2)

    @pl.when(k == 0)
    def _():
        acc_ref[...] = jnp.zeros_like(acc_ref)

    acc_ref[...] += jnp.dot(p_ref[...], w_ref[...],
                            preferred_element_type=jnp.float32)

    @pl.when(k == pl.num_programs(2) - 1)
    def _():
        acc = acc_ref[...]
        y_ref[...] = acc.astype(y_ref.dtype)
        sum_ref[...] = jnp.sum(acc, axis=0, keepdims=True)[None]
        ssq_ref[...] = jnp.sum(acc * acc, axis=0, keepdims=True)[None]


def _im2col_conv_pass(x_nhwc, w_khwc, oh, ow, stride, dilation, padding,
                      cout_pad, tn, y_dtype):
    n = x_nhwc.shape[0]
    cin = x_nhwc.shape[-1]
    kh_taps, kw_taps, _, cout = w_khwc.shape
    m = n * oh * ow
    kkc = kh_taps * kw_taps * cin

    # bf16 + NHWC *before* slicing: the channel-axis concat is lane-contiguous.
    xp = jnp.pad(x_nhwc, ((0, 0), (padding, padding), (padding, padding),
                          (0, 0)))
    cols = []
    for kh in range(kh_taps):
        for kw in range(kw_taps):
            h0 = kh * dilation
            w0 = kw * dilation
            cols.append(xp[:, h0:h0 + (oh - 1) * stride + 1:stride,
                              w0:w0 + (ow - 1) * stride + 1:stride, :])
    patches = jnp.concatenate(cols, axis=-1).reshape(m, kkc)
    w_mat = w_khwc.reshape(kkc, cout)      # row order (kh, kw, ci) == patches

    tm = 512
    m_pad = _round_up(m, tm)
    kkc_pad = _round_up(kkc, 128)
    tk = _pick_tile(kkc_pad, (512, 256, 128))
    mt, nt, kt = m_pad // tm, cout_pad // tn, kkc_pad // tk

    # Zero padding is harmless: padded rows/cols give exact zeros (no bias),
    # so they contribute nothing to sum / sum-of-squares.
    patches_p = jnp.pad(patches, ((0, m_pad - m), (0, kkc_pad - kkc)))
    w_p = jnp.pad(w_mat, ((0, kkc_pad - kkc), (0, cout_pad - cout)))

    flops = 2 * m_pad * cout_pad * kkc_pad
    bytes_accessed = (m_pad * kkc_pad * 2 + kkc_pad * cout_pad * 2 * mt
                      + m_pad * cout_pad * 2 + 2 * mt * cout_pad * 4)

    return pl.pallas_call(
        _matmul_stats_kernel,
        out_shape=(
            jax.ShapeDtypeStruct((m_pad, cout_pad), y_dtype),
            jax.ShapeDtypeStruct((mt, 1, cout_pad), jnp.float32),
            jax.ShapeDtypeStruct((mt, 1, cout_pad), jnp.float32),
        ),
        grid_spec=pltpu.PrefetchScalarGridSpec(
            num_scalar_prefetch=0,
            grid=(mt, nt, kt),
            in_specs=[
                pl.BlockSpec((tm, tk), lambda i, j, k: (i, k)),
                pl.BlockSpec((tk, tn), lambda i, j, k: (k, j)),
            ],
            out_specs=[
                pl.BlockSpec((tm, tn), lambda i, j, k: (i, j)),
                pl.BlockSpec((1, 1, tn), lambda i, j, k: (i, 0, j)),
                pl.BlockSpec((1, 1, tn), lambda i, j, k: (i, 0, j)),
            ],
            scratch_shapes=[pltpu.VMEM((tm, tn), jnp.float32)],
        ),
        compiler_params=pltpu.CompilerParams(
            dimension_semantics=("parallel", "parallel", "arbitrary")),
        cost_estimate=pl.CostEstimate(flops=flops, transcendentals=0,
                                      bytes_accessed=bytes_accessed),
    )(patches_p, w_p)


# ----------------------------------------------------------------------------
# Pass 2: y * scale + shift, ReLU  (scale/shift fold gamma, beta, mean, var)
# ----------------------------------------------------------------------------
def _bn_relu_kernel(y_ref, scale_ref, shift_ref, o_ref):
    y = y_ref[...].astype(jnp.float32)
    o_ref[...] = jnp.maximum(y * scale_ref[...] + shift_ref[...], 0.0)


def _pick_pass2_rows(rows, cp):
    budget = 12 * 1024 * 1024                     # safe on v5e's 16 MiB scoped
    cap = max(8, budget // (cp * 12))             # bf16 in + f32 out, 2x buf
    for c in (2048, 1024, 512, 256, 128, 64, 32, 16, 8):
        if c <= cap and rows % c == 0:
            return c
    return rows


def _bn_relu_pass(y2d, scale_p, shift_p):
    rows, cp = y2d.shape
    tr = _pick_pass2_rows(rows, cp)
    bytes_accessed = rows * cp * 2 + rows * cp * 4 + 2 * cp * 4
    return pl.pallas_call(
        _bn_relu_kernel,
        out_shape=jax.ShapeDtypeStruct((rows, cp), jnp.float32),
        grid_spec=pltpu.PrefetchScalarGridSpec(
            num_scalar_prefetch=0,
            grid=(rows // tr,),
            in_specs=[
                pl.BlockSpec((tr, cp), lambda i: (i, 0)),
                pl.BlockSpec((1, cp), lambda i: (0, 0)),
                pl.BlockSpec((1, cp), lambda i: (0, 0)),
            ],
            out_specs=pl.BlockSpec((tr, cp), lambda i: (i, 0)),
        ),
        compiler_params=pltpu.CompilerParams(
            dimension_semantics=("parallel",)),
        cost_estimate=pl.CostEstimate(flops=2 * rows * cp, transcendentals=0,
                                      bytes_accessed=bytes_accessed),
    )(y2d, scale_p, shift_p)


# ----------------------------------------------------------------------------
# Wrapper: Conv2d -> BatchNorm2d (training-mode batch stats) -> ReLU, NCHW API
# ----------------------------------------------------------------------------
def conv2d_batchnorm_relu(x, weight, bias, gamma, beta, *, stride=1,
                          padding=1, dilation=1, eps=1e-5,
                          compute_dtype=jnp.bfloat16):
    """x: NCHW f32. weight: (Cout, Cin, KH, KW). Returns NCHW f32."""
    n, cin, h, w_sp = x.shape
    cout, cin_w, kh_taps, kw_taps = weight.shape
    assert cin == cin_w

    # A per-channel conv bias is exactly cancelled by training-mode BN mean
    # subtraction (variance unchanged), so it is dropped for free.
    del bias

    ekh = (kh_taps - 1) * dilation + 1
    ekw = (kw_taps - 1) * dilation + 1
    oh = (h + 2 * padding - ekh) // stride + 1
    ow = (w_sp + 2 * padding - ekw) // stride + 1
    m = n * oh * ow

    cout_pad = _round_up(cout, 128)
    tn = _pick_tile(cout_pad, (512, 256, 128))

    # bf16 cast happens BEFORE any padding/slicing (halves the glue bytes).
    x_nhwc = jnp.transpose(x, (0, 2, 3, 1)).astype(compute_dtype)
    # (Cout, Cin, KH, KW) -> (KH, KW, Cin, Cout); matches NHWC access order.
    w_khwc = jnp.transpose(weight, (2, 3, 1, 0)).astype(compute_dtype)

    # ---- pass 1: conv + fused per-channel sum / sum-of-squares --------------
    cin_pad = _round_up(cin, 128)
    hp, wp = h + 2 * padding, w_sp + 2 * padding
    direct_vmem = (2 * (hp * wp * cin_pad * 2
                        + kh_taps * kw_taps * cin_pad * tn * 2
                        + oh * ow * tn * 2)
                   + oh * ow * tn * 4)
    use_direct = (stride == 1 and ow % 8 == 0
                  and direct_vmem <= 12 * 1024 * 1024)

    if use_direct:
        x_pad = jnp.pad(x_nhwc, ((0, 0), (padding, padding),
                                 (padding, padding), (0, cin_pad - cin)))
        w_full = jnp.pad(w_khwc, ((0, 0), (0, 0), (0, cin_pad - cin),
                                  (0, cout_pad - cout)))
        y2d, psum, pssq = _direct_conv_pass(x_pad, w_full, oh, ow, dilation,
                                            tn, compute_dtype)
    else:
        y2d, psum, pssq = _im2col_conv_pass(x_nhwc, w_khwc, oh, ow, stride,
                                            dilation, padding, cout_pad, tn,
                                            compute_dtype)

    # ---- fold batch stats + BN affine into a single per-channel FMA ---------
    # Note: E[y^2]-E[y]^2 in f32 is fine at these magnitudes; for very large M
    # switch to a Welford-style merge.
    inv_m = 1.0 / float(m)
    ch_sum = jnp.sum(psum[:, 0, :cout], axis=0)
    ch_ssq = jnp.sum(pssq[:, 0, :cout], axis=0)
    mean = ch_sum * inv_m
    var = jnp.maximum(ch_ssq * inv_m - mean * mean, 0.0)
    inv_std = jax.lax.rsqrt(var + eps)
    scale = gamma.astype(jnp.float32) * inv_std
    shift = beta.astype(jnp.float32) - mean * scale
    scale_p = jnp.pad(scale, (0, cout_pad - cout)).reshape(1, cout_pad)
    shift_p = jnp.pad(shift, (0, cout_pad - cout)).reshape(1, cout_pad)

    # ---- pass 2: lane-dense streaming apply (FMA + ReLU) ---------------------
    out2d = _bn_relu_pass(y2d, scale_p, shift_p)

    out = out2d[:m, :cout].reshape(n, oh, ow, cout)
    # TODO(synk): keep NHWC end-to-end in a full network; this transpose is an
    # extra output HBM round trip required only to match the NCHW module API.
    return jnp.transpose(out, (0, 3, 1, 2))


def _reference(x, weight, bias, gamma, beta, *, stride, padding, dilation):
    # Pure-JAX f32 reference (includes the conv bias, which training-mode BN
    # cancels — this also validates the bias-drop in the kernel path).
    y = jax.lax.conv_general_dilated(
        x, weight, window_strides=(stride, stride),
        padding=[(padding, padding), (padding, padding)],
        rhs_dilation=(dilation, dilation),
        dimension_numbers=("NCHW", "OIHW", "NCHW"))
    y = y + bias.reshape(1, -1, 1, 1)
    mean = jnp.mean(y, axis=(0, 2, 3), keepdims=True)
    var = jnp.mean((y - mean) ** 2, axis=(0, 2, 3), keepdims=True)
    y = (y - mean) * jax.lax.rsqrt(var + 1e-5)
    y = y * gamma.reshape(1, -1, 1, 1) + beta.reshape(1, -1, 1, 1)
    return jnp.maximum(y, 0.0)


if __name__ == "__main__":
    # Module config: conv2DBatchNormRelu(in_channels=4, n_filters=8, k_size=3,
    #                                    stride=1, padding=1, bias=True)
    N, Cin, H, W = 2, 4, 16, 16
    Cout, K = 8, 3
    stride, padding, dilation = 1, 1, 1

    key = jax.random.PRNGKey(0)
    kx, kw, kb, kg, kbt = jax.random.split(key, 5)
    x = jax.random.normal(kx, (N, Cin, H, W), dtype=jnp.float32)
    weight = 0.1 * jax.random.normal(kw, (Cout, Cin, K, K), dtype=jnp.float32)
    bias = 0.1 * jax.random.normal(kb, (Cout,), dtype=jnp.float32)
    gamma = 1.0 + 0.1 * jax.random.normal(kg, (Cout,), dtype=jnp.float32)
    beta = 0.1 * jax.random.normal(kbt, (Cout,), dtype=jnp.float32)

    fwd = jax.jit(functools.partial(conv2d_batchnorm_relu, stride=stride,
                                    padding=padding, dilation=dilation))
    out = fwd(x, weight, bias, gamma, beta)
    out = jax.block_until_ready(out)

    ref = _reference(x, weight, bias, gamma, beta,
                     stride=stride, padding=padding, dilation=dilation)
    assert out.shape == (N, Cout, H, W)
    # bf16 MXU operands + bf16 intermediate y -> loosened tolerance vs. the
    # all-f32 reference.
    assert jnp.allclose(out, ref, atol=2e-2, rtol=2e-2), (
        float(jnp.max(jnp.abs(out - ref))))

    print("KERNEL_OK")
</pallas_src>

<mosaic_0001>
module attributes {stable_mosaic.version = 11 : i64} {
  func.func @_direct_conv_stats_kernel(%arg0: i32, %arg1: i32, %arg2: memref<1x18x18x128xbf16, #tpu.memory_space<vmem>>, %arg3: memref<3x3x128x128xbf16, #tpu.memory_space<vmem>>, %arg4: memref<1x16x16x128xbf16, #tpu.memory_space<vmem>>, %arg5: memref<1x1x128xf32, #tpu.memory_space<vmem>>, %arg6: memref<1x1x128xf32, #tpu.memory_space<vmem>>) attributes {dimension_semantics = [#tpu.dimension_semantics<parallel>, #tpu.dimension_semantics<parallel>], iteration_bounds = array<i64: 2, 1>, scalar_prefetch = 0 : i64, scratch_operands = 0 : i64, tpu.core_type = #tpu.core_type<tc>, window_params = [{transform_indices = @transform_0, window_bounds = array<i64: 1, 18, 18, 128>}, {transform_indices = @transform_1, window_bounds = array<i64: 3, 3, 128, 128>}, {transform_indices = @transform_2, window_bounds = array<i64: 1, 16, 16, 128>}, {transform_indices = @transform_3, window_bounds = array<i64: 1, 1, 128>}, {transform_indices = @transform_4, window_bounds = array<i64: 1, 1, 128>}]} {
    %cst = arith.constant 0.000000e+00 : f32
    %0 = vector.broadcast %cst : f32 to vector<256x128xf32>
    %c0 = arith.constant 0 : index
    %c0_0 = arith.constant 0 : index
    %c0_1 = arith.constant 0 : index
    %c0_2 = arith.constant 0 : index
    %1 = vector.load %arg2[%c0, %c0_0, %c0_1, %c0_2] : memref<1x18x18x128xbf16, #tpu.memory_space<vmem>>, vector<1x16x16x128xbf16>
    %2 = vector.shape_cast %1 : vector<1x16x16x128xbf16> to vector<256x128xbf16>
    %c0_3 = arith.constant 0 : index
    %c0_4 = arith.constant 0 : index
    %c0_5 = arith.constant 0 : index
    %c0_6 = arith.constant 0 : index
    %3 = vector.load %arg3[%c0_3, %c0_4, %c0_5, %c0_6] : memref<3x3x128x128xbf16, #tpu.memory_space<vmem>>, vector<1x1x128x128xbf16>
    %4 = vector.shape_cast %3 : vector<1x1x128x128xbf16> to vector<128x128xbf16>
    %cst_7 = arith.constant dense<0.000000e+00> : vector<256x128xf32>
    %5 = tpu.matmul %2, %4, %cst_7 {dimension_numbers = #tpu.dot_dimension_numbers<[1], [0], [0], [1], [0, 0, 1, 1], [], []>} : vector<256x128xbf16>, vector<128x128xbf16>, vector<256x128xf32> -> vector<256x128xf32>
    %6 = arith.addf %0, %5 : vector<256x128xf32>
    %c0_8 = arith.constant 0 : index
    %c0_9 = arith.constant 0 : index
    %c1 = arith.constant 1 : index
    %c0_10 = arith.constant 0 : index
    %7 = vector.load %arg2[%c0_8, %c0_9, %c1, %c0_10] : memref<1x18x18x128xbf16, #tpu.memory_space<vmem>>, vector<1x16x16x128xbf16>
    %8 = vector.shape_cast %7 : vector<1x16x16x128xbf16> to vector<256x128xbf16>
    %c0_11 = arith.constant 0 : index
    %c1_12 = arith.constant 1 : index
    %c0_13 = arith.constant 0 : index
    %c0_14 = arith.constant 0 : index
    %9 = vector.load %arg3[%c0_11, %c1_12, %c0_13, %c0_14] : memref<3x3x128x128xbf16, #tpu.memory_space<vmem>>, vector<1x1x128x128xbf16>
    %10 = vector.shape_cast %9 : vector<1x1x128x128xbf16> to vector<128x128xbf16>
    %cst_15 = arith.constant dense<0.000000e+00> : vector<256x128xf32>
    %11 = tpu.matmul %8, %10, %cst_15 {dimension_numbers = #tpu.dot_dimension_numbers<[1], [0], [0], [1], [0, 0, 1, 1], [], []>} : vector<256x128xbf16>, vector<128x128xbf16>, vector<256x128xf32> -> vector<256x128xf32>
    %12 = arith.addf %6, %11 : vector<256x128xf32>
    %c0_16 = arith.constant 0 : index
    %c0_17 = arith.constant 0 : index
    %c2 = arith.constant 2 : index
    %c0_18 = arith.constant 0 : index
    %13 = vector.load %arg2[%c0_16, %c0_17, %c2, %c0_18] : memref<1x18x18x128xbf16, #tpu.memory_space<vmem>>, vector<1x16x16x128xbf16>
    %14 = vector.shape_cast %13 : vector<1x16x16x128xbf16> to vector<256x128xbf16>
    %c0_19 = arith.constant 0 : index
    %c2_20 = arith.constant 2 : index
    %c0_21 = arith.constant 0 : index
    %c0_22 = arith.constant 0 : index
    %15 = vector.load %arg3[%c0_19, %c2_20, %c0_21, %c0_22] : memref<3x3x128x128xbf16, #tpu.memory_space<vmem>>, vector<1x1x128x128xbf16>
    %16 = vector.shape_cast %15 : vector<1x1x128x128xbf16> to vector<128x128xbf16>
    %cst_23 = arith.constant dense<0.000000e+00> : vector<256x128xf32>
    %17 = tpu.matmul %14, %16, %cst_23 {dimension_numbers = #tpu.dot_dimension_numbers<[1], [0], [0], [1], [0, 0, 1, 1], [], []>} : vector<256x128xbf16>, vector<128x128xbf16>, vector<256x128xf32> -> vector<256x128xf32>
    %18 = arith.addf %12, %17 : vector<256x128xf32>
    %c0_24 = arith.constant 0 : index
    %c1_25 = arith.constant 1 : index
    %c0_26 = arith.constant 0 : index
    %c0_27 = arith.constant 0 : index
    %19 = vector.load %arg2[%c0_24, %c1_25, %c0_26, %c0_27] : memref<1x18x18x128xbf16, #tpu.memory_space<vmem>>, vector<1x16x16x128xbf16>
    %20 = vector.shape_cast %19 : vector<1x16x16x128xbf16> to vector<256x128xbf16>
    %c1_28 = arith.constant 1 : index
    %c0_29 = arith.constant 0 : index
    %c0_30 = arith.constant 0 : index
    %c0_31 = arith.constant 0 : index
    %21 = vector.load %arg3[%c1_28, %c0_29, %c0_30, %c0_31] : memref<3x3x128x128xbf16, #tpu.memory_space<vmem>>, vector<1x1x128x128xbf16>
    %22 = vector.shape_cast %21 : vector<1x1x128x128xbf16> to vector<128x128xbf16>
    %cst_32 = arith.constant dense<0.000000e+00> : vector<256x128xf32>
    %23 = tpu.matmul %20, %22, %cst_32 {dimension_numbers = #tpu.dot_dimension_numbers<[1], [0], [0], [1], [0, 0, 1, 1], [], []>} : vector<256x128xbf16>, vector<128x128xbf16>, vector<256x128xf32> -> vector<256x128xf32>
    %24 = arith.addf %18, %23 : vector<256x128xf32>
    %c0_33 = arith.constant 0 : index
    %c1_34 = arith.constant 1 : index
    %c1_35 = arith.constant 1 : index
    %c0_36 = arith.constant 0 : index
    %25 = vector.load %arg2[%c0_33, %c1_34, %c1_35, %c0_36] : memref<1x18x18x128xbf16, #tpu.memory_space<vmem>>, vector<1x16x16x128xbf16>
    %26 = vector.shape_cast %25 : vector<1x16x16x128xbf16> to vector<256x128xbf16>
    %c1_37 = arith.constant 1 : index
    %c1_38 = arith.constant 1 : index
    %c0_39 = arith.constant 0 : index
    %c0_40 = arith.constant 0 : index
    %27 = vector.load %arg3[%c1_37, %c1_38, %c0_39, %c0_40] : memref<3x3x128x128xbf16, #tpu.memory_space<vmem>>, vector<1x1x128x128xbf16>
    %28 = vector.shape_cast %27 : vector<1x1x128x128xbf16> to vector<128x128xbf16>
    %cst_41 = arith.constant dense<0.000000e+00> : vector<256x128xf32>
    %29 = tpu.matmul %26, %28, %cst_41 {dimension_numbers = #tpu.dot_dimension_numbers<[1], [0], [0], [1], [0, 0, 1, 1], [], []>} : vector<256x128xbf16>, vector<128x128xbf16>, vector<256x128xf32> -> vector<256x128xf32>
    %30 = arith.addf %24, %29 : vector<256x128xf32>
    %c0_42 = arith.constant 0 : index
    %c1_43 = arith.constant 1 : index
    %c2_44 = arith.constant 2 : index
    %c0_45 = arith.constant 0 : index
    %31 = vector.load %arg2[%c0_42, %c1_43, %c2_44, %c0_45] : memref<1x18x18x128xbf16, #tpu.memory_space<vmem>>, vector<1x16x16x128xbf16>
    %32 = vector.shape_cast %31 : vector<1x16x16x128xbf16> to vector<256x128xbf16>
    %c1_46 = arith.constant 1 : index
    %c2_47 = arith.constant 2 : index
    %c0_48 = arith.constant 0 : index
    %c0_49 = arith.constant 0 : index
    %33 = vector.load %arg3[%c1_46, %c2_47, %c0_48, %c0_49] : memref<3x3x128x128xbf16, #tpu.memory_space<vmem>>, vector<1x1x128x128xbf16>
    %34 = vector.shape_cast %33 : vector<1x1x128x128xbf16> to vector<128x128xbf16>
    %cst_50 = arith.constant dense<0.000000e+00> : vector<256x128xf32>
    %35 = tpu.matmul %32, %34, %cst_50 {dimension_numbers = #tpu.dot_dimension_numbers<[1], [0], [0], [1], [0, 0, 1, 1], [], []>} : vector<256x128xbf16>, vector<128x128xbf16>, vector<256x128xf32> -> vector<256x128xf32>
    %36 = arith.addf %30, %35 : vector<256x128xf32>
    %c0_51 = arith.constant 0 : index
    %c2_52 = arith.constant 2 : index
    %c0_53 = arith.constant 0 : index
    %c0_54 = arith.constant 0 : index
    %37 = vector.load %arg2[%c0_51, %c2_52, %c0_53, %c0_54] : memref<1x18x18x128xbf16, #tpu.memory_space<vmem>>, vector<1x16x16x128xbf16>
    %38 = vector.shape_cast %37 : vector<1x16x16x128xbf16> to vector<256x128xbf16>
    %c2_55 = arith.constant 2 : index
    %c0_56 = arith.constant 0 : index
    %c0_57 = arith.constant 0 : index
    %c0_58 = arith.constant 0 : index
    %39 = vector.load %arg3[%c2_55, %c0_56, %c0_57, %c0_58] : memref<3x3x128x128xbf16, #tpu.memory_space<vmem>>, vector<1x1x128x128xbf16>
    %40 = vector.shape_cast %39 : vector<1x1x128x128xbf16> to vector<128x128xbf16>
    %cst_59 = arith.constant dense<0.000000e+00> : vector<256x128xf32>
    %41 = tpu.matmul %38, %40, %cst_59 {dimension_numbers = #tpu.dot_dimension_numbers<[1], [0], [0], [1], [0, 0, 1, 1], [], []>} : vector<256x128xbf16>, vector<128x128xbf16>, vector<256x128xf32> -> vector<256x128xf32>
    %42 = arith.addf %36, %41 : vector<256x128xf32>
    %c0_60 = arith.constant 0 : index
    %c2_61 = arith.constant 2 : index
    %c1_62 = arith.constant 1 : index
    %c0_63 = arith.constant 0 : index
    %43 = vector.load %arg2[%c0_60, %c2_61, %c1_62, %c0_63] : memref<1x18x18x128xbf16, #tpu.memory_space<vmem>>, vector<1x16x16x128xbf16>
    %44 = vector.shape_cast %43 : vector<1x16x16x128xbf16> to vector<256x128xbf16>
    %c2_64 = arith.constant 2 : index
    %c1_65 = arith.constant 1 : index
    %c0_66 = arith.constant 0 : index
    %c0_67 = arith.constant 0 : index
    %45 = vector.load %arg3[%c2_64, %c1_65, %c0_66, %c0_67] : memref<3x3x128x128xbf16, #tpu.memory_space<vmem>>, vector<1x1x128x128xbf16>
    %46 = vector.shape_cast %45 : vector<1x1x128x128xbf16> to vector<128x128xbf16>
    %cst_68 = arith.constant dense<0.000000e+00> : vector<256x128xf32>
    %47 = tpu.matmul %44, %46, %cst_68 {dimension_numbers = #tpu.dot_dimension_numbers<[1], [0], [0], [1], [0, 0, 1, 1], [], []>} : vector<256x128xbf16>, vector<128x128xbf16>, vector<256x128xf32> -> vector<256x128xf32>
    %48 = arith.addf %42, %47 : vector<256x128xf32>
    %c0_69 = arith.constant 0 : index
    %c2_70 = arith.constant 2 : index
    %c2_71 = arith.constant 2 : index
    %c0_72 = arith.constant 0 : index
    %49 = vector.load %arg2[%c0_69, %c2_70, %c2_71, %c0_72] : memref<1x18x18x128xbf16, #tpu.memory_space<vmem>>, vector<1x16x16x128xbf16>
    %50 = vector.shape_cast %49 : vector<1x16x16x128xbf16> to vector<256x128xbf16>
    %c2_73 = arith.constant 2 : index
    %c2_74 = arith.constant 2 : index
    %c0_75 = arith.constant 0 : index
    %c0_76 = arith.constant 0 : index
    %51 = vector.load %arg3[%c2_73, %c2_74, %c0_75, %c0_76] : memref<3x3x128x128xbf16, #tpu.memory_space<vmem>>, vector<1x1x128x128xbf16>
    %52 = vector.shape_cast %51 : vector<1x1x128x128xbf16> to vector<128x128xbf16>
    %cst_77 = arith.constant dense<0.000000e+00> : vector<256x128xf32>
    %53 = tpu.matmul %50, %52, %cst_77 {dimension_numbers = #tpu.dot_dimension_numbers<[1], [0], [0], [1], [0, 0, 1, 1], [], []>} : vector<256x128xbf16>, vector<128x128xbf16>, vector<256x128xf32> -> vector<256x128xf32>
    %54 = arith.addf %48, %53 : vector<256x128xf32>
    %55 = vector.shape_cast %54 : vector<256x128xf32> to vector<1x16x16x128xf32>
    %56 = arith.truncf %55 : vector<1x16x16x128xf32> to vector<1x16x16x128xbf16>
    %c0_78 = arith.constant 0 : index
    %c0_79 = arith.constant 0 : index
    %c0_80 = arith.constant 0 : index
    %c0_81 = arith.constant 0 : index
    %57 = vector.load %arg4[%c0_78, %c0_79, %c0_80, %c0_81] : memref<1x16x16x128xbf16, #tpu.memory_space<vmem>>, vector<1x16x16x128xbf16>
    tpu.vector_store %arg4[%c0_78, %c0_79, %c0_80, %c0_81], %56 {strides = array<i32>} : memref<1x16x16x128xbf16, #tpu.memory_space<vmem>>, vector<1x16x16x128xbf16>,
    %cst_82 = arith.constant dense<0.000000e+00> : vector<128xf32>
    %58 = vector.multi_reduction <add>, %54, %cst_82 [0] : vector<256x128xf32> to vector<128xf32>
    %59 = vector.shape_cast %58 : vector<128xf32> to vector<1x128xf32>
    %60 = vector.shape_cast %59 : vector<1x128xf32> to vector<1x1x128xf32>
    %c0_83 = arith.constant 0 : index
    %c0_84 = arith.constant 0 : index
    %c0_85 = arith.constant 0 : index
    %61 = vector.load %arg5[%c0_83, %c0_84, %c0_85] : memref<1x1x128xf32, #tpu.memory_space<vmem>>, vector<1x1x128xf32>
    tpu.vector_store %arg5[%c0_83, %c0_84, %c0_85], %60 {strides = array<i32>} : memref<1x1x128xf32, #tpu.memory_space<vmem>>, vector<1x1x128xf32>,
    %62 = arith.mulf %54, %54 : vector<256x128xf32>
    %cst_86 = arith.constant dense<0.000000e+00> : vector<128xf32>
    %63 = vector.multi_reduction <add>, %62, %cst_86 [0] : vector<256x128xf32> to vector<128xf32>
    %64 = vector.shape_cast %63 : vector<128xf32> to vector<1x128xf32>
    %65 = vector.shape_cast %64 : vector<1x128xf32> to vector<1x1x128xf32>
    %c0_87 = arith.constant 0 : index
    %c0_88 = arith.constant 0 : index
    %c0_89 = arith.constant 0 : index
    %66 = vector.load %arg6[%c0_87, %c0_88, %c0_89] : memref<1x1x128xf32, #tpu.memory_space<vmem>>, vector<1x1x128xf32>
    tpu.vector_store %arg6[%c0_87, %c0_88, %c0_89], %65 {strides = array<i32>} : memref<1x1x128xf32, #tpu.memory_space<vmem>>, vector<1x1x128xf32>,
    return
  }
  func.func @transform_0(%arg0: i32, %arg1: i32) -> (i32, i32, i32, i32) {
    %c0_i32 = arith.constant 0 : i32
    %c0_i32_0 = arith.constant 0 : i32
    %c0_i32_1 = arith.constant 0 : i32
    %c0_i32_2 = arith.constant 0 : i32
    return %arg0, %c0_i32, %c0_i32_0, %c0_i32_1 : i32, i32, i32, i32
  }
  func.func @transform_1(%arg0: i32, %arg1: i32) -> (i32, i32, i32, i32) {
    %c0_i32 = arith.constant 0 : i32
    %c0_i32_0 = arith.constant 0 : i32
    %c0_i32_1 = arith.constant 0 : i32
    %c0_i32_2 = arith.constant 0 : i32
    return %c0_i32, %c0_i32_0, %c0_i32_1, %arg1 : i32, i32, i32, i32
  }
  func.func @transform_2(%arg0: i32, %arg1: i32) -> (i32, i32, i32, i32) {
    %c0_i32 = arith.constant 0 : i32
    %c0_i32_0 = arith.constant 0 : i32
    %c0_i32_1 = arith.constant 0 : i32
    return %arg0, %c0_i32, %c0_i32_0, %arg1 : i32, i32, i32, i32
  }
  func.func @transform_3(%arg0: i32, %arg1: i32) -> (i32, i32, i32) {
    %c0_i32 = arith.constant 0 : i32
    %c0_i32_0 = arith.constant 0 : i32
    return %arg0, %c0_i32, %arg1 : i32, i32, i32
  }
  func.func @transform_4(%arg0: i32, %arg1: i32) -> (i32, i32, i32) {
    %c0_i32 = arith.constant 0 : i32
    %c0_i32_0 = arith.constant 0 : i32
    return %arg0, %c0_i32, %arg1 : i32, i32, i32
  }
}

module attributes {stable_mosaic.version = 11 : i64} {
  func.func @_bn_relu_kernel(%arg0: i32, %arg1: memref<512x128xbf16, #tpu.memory_space<vmem>>, %arg2: memref<1x128xf32, #tpu.memory_space<vmem>>, %arg3: memref<1x128xf32, #tpu.memory_space<vmem>>, %arg4: memref<512x128xf32, #tpu.memory_space<vmem>>) attributes {dimension_semantics = [#tpu.dimension_semantics<parallel>], iteration_bounds = array<i64: 1>, scalar_prefetch = 0 : i64, scratch_operands = 0 : i64, tpu.core_type = #tpu.core_type<tc>, window_params = [{transform_indices = @transform_0, window_bounds = array<i64: 512, 128>}, {pipeline_mode = #tpu.pipeline_mode<synchronous>, transform_indices = @transform_1, window_bounds = array<i64: 1, 128>}, {pipeline_mode = #tpu.pipeline_mode<synchronous>, transform_indices = @transform_2, window_bounds = array<i64: 1, 128>}, {transform_indices = @transform_3, window_bounds = array<i64: 512, 128>}]} {
    %c0 = arith.constant 0 : index
    %c0_0 = arith.constant 0 : index
    %0 = vector.load %arg1[%c0, %c0_0] : memref<512x128xbf16, #tpu.memory_space<vmem>>, vector<512x128xbf16>
    %1 = arith.extf %0 : vector<512x128xbf16> to vector<512x128xf32>
    %c0_1 = arith.constant 0 : index
    %c0_2 = arith.constant 0 : index
    %2 = vector.load %arg2[%c0_1, %c0_2] : memref<1x128xf32, #tpu.memory_space<vmem>>, vector<1x128xf32>
    %3 = vector.broadcast %2 : vector<1x128xf32> to vector<512x128xf32>
    %4 = arith.mulf %1, %3 : vector<512x128xf32>
    %c0_3 = arith.constant 0 : index
    %c0_4 = arith.constant 0 : index
    %5 = vector.load %arg3[%c0_3, %c0_4] : memref<1x128xf32, #tpu.memory_space<vmem>>, vector<1x128xf32>
    %6 = vector.broadcast %5 : vector<1x128xf32> to vector<512x128xf32>
    %7 = arith.addf %4, %6 : vector<512x128xf32>
    %cst = arith.constant 0.000000e+00 : f32
    %8 = vector.broadcast %cst : f32 to vector<512x128xf32>
    %9 = arith.maximumf %7, %8 : vector<512x128xf32>
    %c0_5 = arith.constant 0 : index
    %c0_6 = arith.constant 0 : index
    %10 = vector.load %arg4[%c0_5, %c0_6] : memref<512x128xf32, #tpu.memory_space<vmem>>, vector<512x128xf32>
    tpu.vector_store %arg4[%c0_5, %c0_6], %9 {strides = array<i32>} : memref<512x128xf32, #tpu.memory_space<vmem>>, vector<512x128xf32>,
    return
  }
  func.func @transform_0(%arg0: i32) -> (i32, i32) {
    %c0_i32 = arith.constant 0 : i32
    %c0_i32_0 = arith.constant 0 : i32
    return %arg0, %c0_i32 : i32, i32
  }
  func.func @transform_1(%arg0: i32) -> (i32, i32) {
    %c0_i32 = arith.constant 0 : i32
    %c0_i32_0 = arith.constant 0 : i32
    %c0_i32_1 = arith.constant 0 : i32
    return %c0_i32, %c0_i32_0 : i32, i32
  }
  func.func @transform_2(%arg0: i32) -> (i32, i32) {
    %c0_i32 = arith.constant 0 : i32
    %c0_i32_0 = arith.constant 0 : i32
    %c0_i32_1 = arith.constant 0 : i32
    return %c0_i32, %c0_i32_0 : i32, i32
  }
  func.func @transform_3(%arg0: i32) -> (i32, i32) {
    %c0_i32 = arith.constant 0 : i32
    %c0_i32_0 = arith.constant 0 : i32
    return %arg0, %c0_i32 : i32, i32
  }
}

</mosaic_0001>

<llo_original>
// kernel: conv2d_batchnorm_relu.3
$region0: #{conv2d_batchnorm_relu.3}
  #allocation0 [shape = 'u32[]', space=smem, size = 0x4, offset = 0x4, fixed_abs, tag = 'smem constant byte address 0x4 - core index']
  #allocation1 [shape = 'u32[144,128]{1,0:T(1,128)}', space=vmem, size = 0x12000, scoped, tag = 'internal scratch']
  %s0 = inlined_call_operand.vmem [shape: bf16[512,128], index: 0, kind: input, shape index: {}]
  %s1 = inlined_call_operand.vmem [shape: f32[1,128], index: 1, kind: input, shape index: {}]
  %s2 = inlined_call_operand.vmem [shape: f32[1,128], index: 2, kind: input, shape index: {}]
  %s3 = inlined_call_operand.vmem [shape: f32[512,128], index: 3, kind: output, shape index: {}]
  %s4 = sld [smem:[#allocation0]]
  $region22: #{conv2d_batchnorm_relu.3} parent=0
    _
  %s6 = ssub.s32 1, %s4
  %s7 = scalar_select 0, %s6, %s4
  // Predicated region
  $region2: #{conv2d_batchnorm_relu.3} parent=0 // pred_check
    _
  $region3: #{conv2d_batchnorm_relu.3} parent=0 // pred_check_branch
    %9 = sbr.rel (0) target = $region5
  $region4: #{conv2d_batchnorm_relu.3} parent=0 // pred_region
    _
  $region5: #{conv2d_batchnorm_relu.3} parent=0 // pred_fallthru
    _
  // Predicated region
  $region6: #{conv2d_batchnorm_relu.3} parent=0 // pred_check
    _
  $region7: #{conv2d_batchnorm_relu.3} parent=0 // pred_check_branch
    %11 = sbr.rel (0) target = $region9
  $region8: #{conv2d_batchnorm_relu.3} parent=0 // pred_region
    _
  $region9: #{conv2d_batchnorm_relu.3} parent=0 // pred_fallthru
    _
  // Predicated region
  $region10: #{conv2d_batchnorm_relu.3} parent=0 // pred_check
    _
  $region11: #{conv2d_batchnorm_relu.3} parent=0 // pred_check_branch
    %13 = sbr.rel (0) target = $region13
  $region12: #{conv2d_batchnorm_relu.3} parent=0 // pred_region
    _
  $region13: #{conv2d_batchnorm_relu.3} parent=0 // pred_fallthru
    _
  %v14 = vld [vmem:[%s0] sm:$0xf]
  %v15 = vld [vmem:[%s0 + $0x4] sm:$0xf]
  %v16 = vld [vmem:[%s0 + $0x8] sm:$0xf]
  %v17 = vld [vmem:[%s0 + $0xc] sm:$0xf]
  %v18 = vld [vmem:[%s0 + $0x10] sm:$0xf]
  %v19 = vld [vmem:[%s0 + $0x14] sm:$0xf]
  %v20 = vld [vmem:[%s0 + $0x18] sm:$0xf]
  %v21 = vld [vmem:[%s0 + $0x1c] sm:$0xf]
  %v22 = vld [vmem:[%s0 + $0x20] sm:$0xf]
  %v23 = vld [vmem:[%s0 + $0x24] sm:$0xf]
  %v24 = vld [vmem:[%s0 + $0x28] sm:$0xf]
  %v25 = vld [vmem:[%s0 + $0x2c] sm:$0xf]
  %v26 = vld [vmem:[%s0 + $0x30] sm:$0xf]
  %v27 = vld [vmem:[%s0 + $0x34] sm:$0xf]
  %v28 = vld [vmem:[%s0 + $0x38] sm:$0xf]
  %v29 = vld [vmem:[%s0 + $0x3c] sm:$0xf]
  %v30 = vld [vmem:[%s0 + $0x40] sm:$0xf]
  %v31 = vld [vmem:[%s0 + $0x44] sm:$0xf]
  %v32 = vld [vmem:[%s0 + $0x48] sm:$0xf]
  %v33 = vld [vmem:[%s0 + $0x4c] sm:$0xf]
  %v34 = vld [vmem:[%s0 + $0x50] sm:$0xf]
  %v35 = vld [vmem:[%s0 + $0x54] sm:$0xf]
  %v36 = vld [vmem:[%s0 + $0x58] sm:$0xf]
  %v37 = vld [vmem:[%s0 + $0x5c] sm:$0xf]
  %v38 = vld [vmem:[%s0 + $0x60] sm:$0xf]
  %v39 = vld [vmem:[%s0 + $0x64] sm:$0xf]
  %v40 = vld [vmem:[%s0 + $0x68] sm:$0xf]
  %v41 = vld [vmem:[%s0 + $0x6c] sm:$0xf]
  %v42 = vld [vmem:[%s0 + $0x70] sm:$0xf]
  %v43 = vld [vmem:[%s0 + $0x74] sm:$0xf]
  %v44 = vld [vmem:[%s0 + $0x78] sm:$0xf]
  %v45 = vld [vmem:[%s0 + $0x7c] sm:$0xf]
  %v46 = vld [vmem:[%s0 + $0x80] sm:$0xf]
  %v47 = vld [vmem:[%s0 + $0x84] sm:$0xf]
  %v48 = vld [vmem:[%s0 + $0x88] sm:$0xf]
  %v49 = vld [vmem:[%s0 + $0x8c] sm:$0xf]
  %v50 = vld [vmem:[%s0 + $0x90] sm:$0xf]
  %v51 = vld [vmem:[%s0 + $0x94] sm:$0xf]
  %v52 = vld [vmem:[%s0 + $0x98] sm:$0xf]
  %v53 = vld [vmem:[%s0 + $0x9c] sm:$0xf]
  %v54 = vld [vmem:[%s0 + $0xa0] sm:$0xf]
  %v55 = vld [vmem:[%s0 + $0xa4] sm:$0xf]
  %v56 = vld [vmem:[%s0 + $0xa8] sm:$0xf]
  %v57 = vld [vmem:[%s0 + $0xac] sm:$0xf]
  %v58 = vld [vmem:[%s0 + $0xb0] sm:$0xf]
  %v59 = vld [vmem:[%s0 + $0xb4] sm:$0xf]
  %v60 = vld [vmem:[%s0 + $0xb8] sm:$0xf]
  %v61 = vld [vmem:[%s0 + $0xbc] sm:$0xf]
  %v62 = vld [vmem:[%s0 + $0xc0] sm:$0xf]
  %v63 = vld [vmem:[%s0 + $0xc4] sm:$0xf]
  %v64 = vld [vmem:[%s0 + $0xc8] sm:$0xf]
  %v65 = vld [vmem:[%s0 + $0xcc] sm:$0xf]
  %v66 = vld [vmem:[%s0 + $0xd0] sm:$0xf]
  %v67 = vld [vmem:[%s0 + $0xd4] sm:$0xf]
  %v68 = vld [vmem:[%s0 + $0xd8] sm:$0xf]
  %v69 = vld [vmem:[%s0 + $0xdc] sm:$0xf]
  %v70 = vld [vmem:[%s0 + $0xe0] sm:$0xf]
  %v71 = vld [vmem:[%s0 + $0xe4] sm:$0xf]
  %v72 = vld [vmem:[%s0 + $0xe8] sm:$0xf]
  %v73 = vld [vmem:[%s0 + $0xec] sm:$0xf]
  %v74 = vld [vmem:[%s0 + $0xf0] sm:$0xf]
  %v75 = vld [vmem:[%s0 + $0xf4] sm:$0xf]
  %v76 = vld [vmem:[%s0 + $0xf8] sm:$0xf]
  %v77 = vld [vmem:[%s0 + $0xfc] sm:$0xf]
  %v78 = vunpack.c.l.bf16 %v14
  %v79 = vunpack.c.l.bf16 %v15
  %v80 = vunpack.c.l.bf16 %v16
  %v81 = vunpack.c.l.bf16 %v17
  %v82 = vunpack.c.l.bf16 %v18
  %v83 = vunpack.c.l.bf16 %v19
  %v84 = vunpack.c.l.bf16 %v20
  %v85 = vunpack.c.l.bf16 %v21
  %v86 = vunpack.c.l.bf16 %v22
  %v87 = vunpack.c.l.bf16 %v23
  %v88 = vunpack.c.l.bf16 %v24
  %v89 = vunpack.c.l.bf16 %v25
  %v90 = vunpack.c.l.bf16 %v26
  %v91 = vunpack.c.l.bf16 %v27
  %v92 = vunpack.c.l.bf16 %v28
  %v93 = vunpack.c.l.bf16 %v29
  %v94 = vunpack.c.l.bf16 %v30
  %v95 = vunpack.c.l.bf16 %v31
  %v96 = vunpack.c.l.bf16 %v32
  %v97 = vunpack.c.l.bf16 %v33
  %v98 = vunpack.c.l.bf16 %v34
  %v99 = vunpack.c.l.bf16 %v35
  %v100 = vunpack.c.l.bf16 %v36
  %v101 = vunpack.c.l.bf16 %v37
  %v102 = vunpack.c.l.bf16 %v38
  %v103 = vunpack.c.l.bf16 %v39
  %v104 = vunpack.c.l.bf16 %v40
  %v105 = vunpack.c.l.bf16 %v41
  %v106 = vunpack.c.l.bf16 %v42
  %v107 = vunpack.c.l.bf16 %v43
  %v108 = vunpack.c.l.bf16 %v44
  %v109 = vunpack.c.l.bf16 %v45
  %v110 = vunpack.c.l.bf16 %v46
  %v111 = vunpack.c.l.bf16 %v47
  %v112 = vunpack.c.l.bf16 %v48
  %v113 = vunpack.c.l.bf16 %v49
  %v114 = vunpack.c.l.bf16 %v50
  %v115 = vunpack.c.l.bf16 %v51
  %v116 = vunpack.c.l.bf16 %v52
  %v117 = vunpack.c.l.bf16 %v53
  %v118 = vunpack.c.l.bf16 %v54
  %v119 = vunpack.c.l.bf16 %v55
  %v120 = vunpack.c.l.bf16 %v56
  %v121 = vunpack.c.l.bf16 %v57
  %v122 = vunpack.c.l.bf16 %v58
  %v123 = vunpack.c.l.bf16 %v59
  %v124 = vunpack.c.l.bf16 %v60
  %v125 = vunpack.c.l.bf16 %v61
  %v126 = vunpack.c.l.bf16 %v62
  %v127 = vunpack.c.l.bf16 %v63
  %v128 = vunpack.c.l.bf16 %v64
  %v129 = vunpack.c.l.bf16 %v65
  %v130 = vunpack.c.l.bf16 %v66
  %v131 = vunpack.c.l.bf16 %v67
  %v132 = vunpack.c.l.bf16 %v68
  %v133 = vunpack.c.l.bf16 %v69
  %v134 = vunpack.c.l.bf16 %v70
  %v135 = vunpack.c.l.bf16 %v71
  %v136 = vunpack.c.l.bf16 %v72
  %v137 = vunpack.c.l.bf16 %v73
  %v138 = vunpack.c.l.bf16 %v74
  %v139 = vunpack.c.l.bf16 %v75
  %v140 = vunpack.c.l.bf16 %v76
  %v141 = vunpack.c.l.bf16 %v77
  %v142 = vld [vmem:[%s1] sm:$0x1]
  %v144 = vlaneseq
  %v145 = vshrl.u32 %v144, 7
  %v146 = vsub.s32 0, %v145
  %v147 = vrot.slane %v142, %v146
  %v149 = vmul.f32 %v78, %v147
  %v150 = vmul.f32 %v79, %v147
  %v151 = vmul.f32 %v80, %v147
  %v152 = vmul.f32 %v81, %v147
  %v153 = vmul.f32 %v82, %v147
  %v154 = vmul.f32 %v83, %v147
  %v155 = vmul.f32 %v84, %v147
  %v156 = vmul.f32 %v85, %v147
  %v157 = vmul.f32 %v86, %v147
  %v158 = vmul.f32 %v87, %v147
  %v159 = vmul.f32 %v88, %v147
  %v160 = vmul.f32 %v89, %v147
  %v161 = vmul.f32 %v90, %v147
  %v162 = vmul.f32 %v91, %v147
  %v163 = vmul.f32 %v92, %v147
  %v164 = vmul.f32 %v93, %v147
  %v165 = vmul.f32 %v94, %v147
  %v166 = vmul.f32 %v95, %v147
  %v167 = vmul.f32 %v96, %v147
  %v168 = vmul.f32 %v97, %v147
  %v169 = vmul.f32 %v98, %v147
  %v170 = vmul.f32 %v99, %v147
  %v171 = vmul.f32 %v100, %v147
  %v172 = vmul.f32 %v101, %v147
  %v173 = vmul.f32 %v102, %v147
  %v174 = vmul.f32 %v103, %v147
  %v175 = vmul.f32 %v104, %v147
  %v176 = vmul.f32 %v105, %v147
  %v177 = vmul.f32 %v106, %v147
  %v178 = vmul.f32 %v107, %v147
  %v179 = vmul.f32 %v108, %v147
  %v180 = vmul.f32 %v109, %v147
  %v181 = vmul.f32 %v110, %v147
  %v182 = vmul.f32 %v111, %v147
  %v183 = vmul.f32 %v112, %v147
  %v184 = vmul.f32 %v113, %v147
  %v185 = vmul.f32 %v114, %v147
  %v186 = vmul.f32 %v115, %v147
  %v187 = vmul.f32 %v116, %v147
  %v188 = vmul.f32 %v117, %v147
  %v189 = vmul.f32 %v118, %v147
  %v190 = vmul.f32 %v119, %v147
  %v191 = vmul.f32 %v120, %v147
  %v192 = vmul.f32 %v121, %v147
  %v193 = vmul.f32 %v122, %v147
  %v194 = vmul.f32 %v123, %v147
  %v195 = vmul.f32 %v124, %v147
  %v196 = vmul.f32 %v125, %v147
  %v197 = vmul.f32 %v126, %v147
  %v198 = vmul.f32 %v127, %v147
  %v199 = vmul.f32 %v128, %v147
  %v200 = vmul.f32 %v129, %v147
  %v201 = vmul.f32 %v130, %v147
  %v202 = vmul.f32 %v131, %v147
  %v203 = vmul.f32 %v132, %v147
  %v204 = vmul.f32 %v133, %v147
  %v205 = vmul.f32 %v134, %v147
  %v206 = vmul.f32 %v135, %v147
  %v207 = vmul.f32 %v136, %v147
  %v208 = vmul.f32 %v137, %v147
  %v209 = vmul.f32 %v138, %v147
  %v210 = vmul.f32 %v139, %v147
  %v211 = vmul.f32 %v140, %v147
  %v212 = vmul.f32 %v141, %v147
  %v213 = vld [vmem:[%s2] sm:$0x1]
  %v215 = vlaneseq
  %v216 = vshrl.u32 %v215, 7
  %v217 = vsub.s32 0, %v216
  %v218 = vrot.slane %v213, %v217
  %v220 = vadd.f32 %v149, %v218
  %v221 = vadd.f32 %v150, %v218
  %v222 = vadd.f32 %v151, %v218
  %v223 = vadd.f32 %v152, %v218
  %v224 = vadd.f32 %v153, %v218
  %v225 = vadd.f32 %v154, %v218
  %v226 = vadd.f32 %v155, %v218
  %v227 = vadd.f32 %v156, %v218
  %v228 = vadd.f32 %v157, %v218
  %v229 = vadd.f32 %v158, %v218
  %v230 = vadd.f32 %v159, %v218
  %v231 = vadd.f32 %v160, %v218
  %v232 = vadd.f32 %v161, %v218
  %v233 = vadd.f32 %v162, %v218
  %v234 = vadd.f32 %v163, %v218
  %v235 = vadd.f32 %v164, %v218
  %v236 = vadd.f32 %v165, %v218
  %v237 = vadd.f32 %v166, %v218
  %v238 = vadd.f32 %v167, %v218
  %v239 = vadd.f32 %v168, %v218
  %v240 = vadd.f32 %v169, %v218
  %v241 = vadd.f32 %v170, %v218
  %v242 = vadd.f32 %v171, %v218
  %v243 = vadd.f32 %v172, %v218
  %v244 = vadd.f32 %v173, %v218
  %v245 = vadd.f32 %v174, %v218
  %v246 = vadd.f32 %v175, %v218
  %v247 = vadd.f32 %v176, %v218
  %v248 = vadd.f32 %v177, %v218
  %v249 = vadd.f32 %v178, %v218
  %v250 = vadd.f32 %v179, %v218
  %v251 = vadd.f32 %v180, %v218
  %v252 = vadd.f32 %v181, %v218
  %v253 = vadd.f32 %v182, %v218
  %v254 = vadd.f32 %v183, %v218
  %v255 = vadd.f32 %v184, %v218
  %v256 = vadd.f32 %v185, %v218
  %v257 = vadd.f32 %v186, %v218
  %v258 = vadd.f32 %v187, %v218
  %v259 = vadd.f32 %v188, %v218
  %v260 = vadd.f32 %v189, %v218
  %v261 = vadd.f32 %v190, %v218
  %v262 = vadd.f32 %v191, %v218
  %v263 = vadd.f32 %v192, %v218
  %v264 = vadd.f32 %v193, %v218
  %v265 = vadd.f32 %v194, %v218
  %v266 = vadd.f32 %v195, %v218
  %v267 = vadd.f32 %v196, %v218
  %v268 = vadd.f32 %v197, %v218
  %v269 = vadd.f32 %v198, %v218
  %v270 = vadd.f32 %v199, %v218
  %v271 = vadd.f32 %v200, %v218
  %v272 = vadd.f32 %v201, %v218
  %v273 = vadd.f32 %v202, %v218
  %v274 = vadd.f32 %v203, %v218
  %v275 = vadd.f32 %v204, %v218
  %v276 = vadd.f32 %v205, %v218
  %v277 = vadd.f32 %v206, %v218
  %v278 = vadd.f32 %v207, %v218
  %v279 = vadd.f32 %v208, %v218
  %v280 = vadd.f32 %v209, %v218
  %v281 = vadd.f32 %v210, %v218
  %v282 = vadd.f32 %v211, %v218
  %v283 = vadd.f32 %v212, %v218
  %v284 = vmax.f32 %v220, 0.0
  %v285 = vmax.f32 %v221, 0.0
  %v286 = vmax.f32 %v222, 0.0
  %v287 = vmax.f32 %v223, 0.0
  %v288 = vmax.f32 %v224, 0.0
  %v289 = vmax.f32 %v225, 0.0
  %v290 = vmax.f32 %v226, 0.0
  %v291 = vmax.f32 %v227, 0.0
  %v292 = vmax.f32 %v228, 0.0
  %v293 = vmax.f32 %v229, 0.0
  %v294 = vmax.f32 %v230, 0.0
  %v295 = vmax.f32 %v231, 0.0
  %v296 = vmax.f32 %v232, 0.0
  %v297 = vmax.f32 %v233, 0.0
  %v298 = vmax.f32 %v234, 0.0
  %v299 = vmax.f32 %v235, 0.0
  %v300 = vmax.f32 %v236, 0.0
  %v301 = vmax.f32 %v237, 0.0
  %v302 = vmax.f32 %v238, 0.0
  %v303 = vmax.f32 %v239, 0.0
  %v304 = vmax.f32 %v240, 0.0
  %v305 = vmax.f32 %v241, 0.0
  %v306 = vmax.f32 %v242, 0.0
  %v307 = vmax.f32 %v243, 0.0
  %v308 = vmax.f32 %v244, 0.0
  %v309 = vmax.f32 %v245, 0.0
  %v310 = vmax.f32 %v246, 0.0
  %v311 = vmax.f32 %v247, 0.0
  %v312 = vmax.f32 %v248, 0.0
  %v313 = vmax.f32 %v249, 0.0
  %v314 = vmax.f32 %v250, 0.0
  %v315 = vmax.f32 %v251, 0.0
  %v316 = vmax.f32 %v252, 0.0
  %v317 = vmax.f32 %v253, 0.0
  %v318 = vmax.f32 %v254, 0.0
  %v319 = vmax.f32 %v255, 0.0
  %v320 = vmax.f32 %v256, 0.0
  %v321 = vmax.f32 %v257, 0.0
  %v322 = vmax.f32 %v258, 0.0
  %v323 = vmax.f32 %v259, 0.0
  %v324 = vmax.f32 %v260, 0.0
  %v325 = vmax.f32 %v261, 0.0
  %v326 = vmax.f32 %v262, 0.0
  %v327 = vmax.f32 %v263, 0.0
  %v328 = vmax.f32 %v264, 0.0
  %v329 = vmax.f32 %v265, 0.0
  %v330 = vmax.f32 %v266, 0.0
  %v331 = vmax.f32 %v267, 0.0
  %v332 = vmax.f32 %v268, 0.0
  %v333 = vmax.f32 %v269, 0.0
  %v334 = vmax.f32 %v270, 0.0
  %v335 = vmax.f32 %v271, 0.0
  %v336 = vmax.f32 %v272, 0.0
  %v337 = vmax.f32 %v273, 0.0
  %v338 = vmax.f32 %v274, 0.0
  %v339 = vmax.f32 %v275, 0.0
  %v340 = vmax.f32 %v276, 0.0
  %v341 = vmax.f32 %v277, 0.0
  %v342 = vmax.f32 %v278, 0.0
  %v343 = vmax.f32 %v279, 0.0
  %v344 = vmax.f32 %v280, 0.0
  %v345 = vmax.f32 %v281, 0.0
  %v346 = vmax.f32 %v282, 0.0
  %v347 = vmax.f32 %v283, 0.0
  %348 = vst [vmem:[%s3] sm:$0xff] %v284
  %349 = vst [vmem:[%s3 + $0x8] sm:$0xff] %v285
  %350 = vst [vmem:[%s3 + $0x10] sm:$0xff] %v286
  %351 = vst [vmem:[%s3 + $0x18] sm:$0xff] %v287
  %352 = vst [vmem:[%s3 + $0x20] sm:$0xff] %v288
  %353 = vst [vmem:[%s3 + $0x28] sm:$0xff] %v289
  %354 = vst [vmem:[%s3 + $0x30] sm:$0xff] %v290
  %355 = vst [vmem:[%s3 + $0x38] sm:$0xff] %v291
  %356 = vst [vmem:[%s3 + $0x40] sm:$0xff] %v292
  %357 = vst [vmem:[%s3 + $0x48] sm:$0xff] %v293
  %358 = vst [vmem:[%s3 + $0x50] sm:$0xff] %v294
  %359 = vst [vmem:[%s3 + $0x58] sm:$0xff] %v295
  %360 = vst [vmem:[%s3 + $0x60] sm:$0xff] %v296
  %361 = vst [vmem:[%s3 + $0x68] sm:$0xff] %v297
  %362 = vst [vmem:[%s3 + $0x70] sm:$0xff] %v298
  %363 = vst [vmem:[%s3 + $0x78] sm:$0xff] %v299
  %364 = vst [vmem:[%s3 + $0x80] sm:$0xff] %v300
  %365 = vst [vmem:[%s3 + $0x88] sm:$0xff] %v301
  %366 = vst [vmem:[%s3 + $0x90] sm:$0xff] %v302
  %367 = vst [vmem:[%s3 + $0x98] sm:$0xff] %v303
  %368 = vst [vmem:[%s3 + $0xa0] sm:$0xff] %v304
  %369 = vst [vmem:[%s3 + $0xa8] sm:$0xff] %v305
  %370 = vst [vmem:[%s3 + $0xb0] sm:$0xff] %v306
  %371 = vst [vmem:[%s3 + $0xb8] sm:$0xff] %v307
  %372 = vst [vmem:[%s3 + $0xc0] sm:$0xff] %v308
  %373 = vst [vmem:[%s3 + $0xc8] sm:$0xff] %v309
  %374 = vst [vmem:[%s3 + $0xd0] sm:$0xff] %v310
  %375 = vst [vmem:[%s3 + $0xd8] sm:$0xff] %v311
  %376 = vst [vmem:[%s3 + $0xe0] sm:$0xff] %v312
  %377 = vst [vmem:[%s3 + $0xe8] sm:$0xff] %v313
  %378 = vst [vmem:[%s3 + $0xf0] sm:$0xff] %v314
  %379 = vst [vmem:[%s3 + $0xf8] sm:$0xff] %v315
  %380 = vst [vmem:[%s3 + $0x100] sm:$0xff] %v316
  %381 = vst [vmem:[%s3 + $0x108] sm:$0xff] %v317
  %382 = vst [vmem:[%s3 + $0x110] sm:$0xff] %v318
  %383 = vst [vmem:[%s3 + $0x118] sm:$0xff] %v319
  %384 = vst [vmem:[%s3 + $0x120] sm:$0xff] %v320
  %385 = vst [vmem:[%s3 + $0x128] sm:$0xff] %v321
  %386 = vst [vmem:[%s3 + $0x130] sm:$0xff] %v322
  %387 = vst [vmem:[%s3 + $0x138] sm:$0xff] %v323
  %388 = vst [vmem:[%s3 + $0x140] sm:$0xff] %v324
  %389 = vst [vmem:[%s3 + $0x148] sm:$0xff] %v325
  %390 = vst [vmem:[%s3 + $0x150] sm:$0xff] %v326
  %391 = vst [vmem:[%s3 + $0x158] sm:$0xff] %v327
  %392 = vst [vmem:[%s3 + $0x160] sm:$0xff] %v328
  %393 = vst [vmem:[%s3 + $0x168] sm:$0xff] %v329
  %394 = vst [vmem:[%s3 + $0x170] sm:$0xff] %v330
  %395 = vst [vmem:[%s3 + $0x178] sm:$0xff] %v331
  %396 = vst [vmem:[%s3 + $0x180] sm:$0xff] %v332
  %397 = vst [vmem:[%s3 + $0x188] sm:$0xff] %v333
  %398 = vst [vmem:[%s3 + $0x190] sm:$0xff] %v334
  %399 = vst [vmem:[%s3 + $0x198] sm:$0xff] %v335
  %400 = vst [vmem:[%s3 + $0x1a0] sm:$0xff] %v336
  %401 = vst [vmem:[%s3 + $0x1a8] sm:$0xff] %v337
  %402 = vst [vmem:[%s3 + $0x1b0] sm:$0xff] %v338
  %403 = vst [vmem:[%s3 + $0x1b8] sm:$0xff] %v339
  %404 = vst [vmem:[%s3 + $0x1c0] sm:$0xff] %v340
  %405 = vst [vmem:[%s3 + $0x1c8] sm:$0xff] %v341
  %406 = vst [vmem:[%s3 + $0x1d0] sm:$0xff] %v342
  %407 = vst [vmem:[%s3 + $0x1d8] sm:$0xff] %v343
  %408 = vst [vmem:[%s3 + $0x1e0] sm:$0xff] %v344
  %409 = vst [vmem:[%s3 + $0x1e8] sm:$0xff] %v345
  %410 = vst [vmem:[%s3 + $0x1f0] sm:$0xff] %v346
  %411 = vst [vmem:[%s3 + $0x1f8] sm:$0xff] %v347
  // Predicated region
  $region14: #{conv2d_batchnorm_relu.3} parent=0 // pred_check
    _
  $region15: #{conv2d_batchnorm_relu.3} parent=0 // pred_check_branch
    %413 = sbr.rel (0) target = $region17
  $region16: #{conv2d_batchnorm_relu.3} parent=0 // pred_region
    _
  $region17: #{conv2d_batchnorm_relu.3} parent=0 // pred_fallthru
    _
  // Predicated region
  $region18: #{conv2d_batchnorm_relu.3} parent=0 // pred_check
    _
  $region19: #{conv2d_batchnorm_relu.3} parent=0 // pred_check_branch
    %415 = sbr.rel (0) target = $region21
  $region20: #{conv2d_batchnorm_relu.3} parent=0 // pred_region
    _
  $region21: #{conv2d_batchnorm_relu.3} parent=0 // pred_fallthru
    _

// kernel: conv2d_batchnorm_relu.2
$region0: #{conv2d_batchnorm_relu.2}
  #allocation0 [shape = 'u32[]', space=smem, size = 0x4, offset = 0x4, fixed_abs, tag = 'smem constant byte address 0x4 - core index']
  #allocation1 [shape = 'u32[144,128]{1,0:T(1,128)}', space=vmem, size = 0x12000, scoped, tag = 'internal scratch']
  %s0 = inlined_call_operand.vmem [shape: bf16[2,18,18,128], index: 0, kind: input, shape index: {}]
  %s1 = inlined_call_operand.vmem [shape: bf16[3,3,128,128], index: 1, kind: input, shape index: {}]
  %s2 = inlined_call_operand.vmem [shape: bf16[2,16,16,128], index: 2, kind: output, shape index: {0}]
  %s3 = inlined_call_operand.vmem [shape: f32[2,1,128], index: 3, kind: output, shape index: {1}]
  %s4 = inlined_call_operand.vmem [shape: f32[2,1,128], index: 4, kind: output, shape index: {2}]
  %5 = xla_tuple %s2, %s3, %s4
  %s6 = sld [smem:[#allocation0]]
  $region57: #{conv2d_batchnorm_relu.2} parent=0
    _
  %s8 = ssub.s32 1, %s6
  %s9 = scalar_select 0, %s8, %s6
  loop: start=0, step=1, limit=4
  $region2: #{conv2d_batchnorm_relu.2} parent=0 // loop_pre_header
    _
  $region3: #{conv2d_batchnorm_relu.2} parent=0 // loop_header
    %s11 = sphi 0, %s15
    %p12 = scmp.ge.s32.totalorder %s11, 4
    %s18 = sphi 0, %s30
    %s19 = sphi 0, %s26
    %s20 = sphi 0, %s18
    %s21 = sphi 0, %s19
    %s22 = sphi 0, %s20
    %s23 = sphi 0, %s21
    %s33 = sphi 0, %s35
    %s36 = sphi 0, %s33
    %s37 = sphi 0, %s36
    %s53 = sphi 0, %s37
    %s59 = sphi 0, %s61
    %s62 = sphi 0, %s59
    %s63 = sphi 0, %s62
    %s79 = sphi 0, %s63
    %s87 = sphi 0, %s89
    %s90 = sphi 0, %s87
    %s91 = sphi 0, %s90
    %s107 = sphi 0, %s91
    %s115 = sphi 0, %s117
    %s118 = sphi 0, %s115
    %s119 = sphi 0, %s118
    %s135 = sphi 0, %s119
    %s143 = sphi 0, %s145
    %s146 = sphi 0, %s143
    %s147 = sphi 0, %s146
    %s163 = sphi 0, %s147
  $region4: #{conv2d_batchnorm_relu.2} parent=0 // loop_header_branch
    %14 = sbr.rel (%p12) target = $region8
  $region5: #{conv2d_batchnorm_relu.2} parent=0 // loop_body
    %s16 = ssub.s32 %s11, 1
    %s17 = ssub.s32 %s11, 2
    %s24 = sadd.s32 1, %s19
    %p25 = scmp.ge.s32.totalorder %s24, 1
    %s26 = scalar_select %p25, 0, %s24
    %s27 = sadd.s32 1, %s18
    %s28 = scalar_select %p25, %s27, %s18
    %p29 = scmp.ge.s32.totalorder %s28, 2
    %s30 = scalar_select %p29, 0, %s28
    %s31 = ssub.s32 %s18, %s30
    %p32 = scmp.eq.s32.totalorder %s31, 0
    %s34 = sadd.s32 %s33, 1
    %s35 = scalar_select %p32, %s33, %s34
    %p38 = pneg %p32
    %p39 = scmp.eq.s32.totalorder %s11, 1
    %p40 = por %p38, %p39
    %p41 = scmp.ne.s32.totalorder %s33, %s36
    %p42 = scmp.eq.s32.totalorder %s11, 0
    %p43 = por %p41, %p42
    %p44 = scmp.ne.s32.totalorder %s33, %s36
    %p45 = scmp.eq.s32.totalorder %s16, 1
    %p46 = por %p44, %p45
    %p47 = scmp.ne.s32.totalorder %s36, %s37
    %p48 = scmp.eq.s32.totalorder %s16, 0
    %p49 = por %p47, %p48
    %p50 = scmp.ne.s32.totalorder %s36, %s37
    %p51 = scmp.eq.s32.totalorder %s17, 1
    %p52 = por %p50, %p51
    %p54 = scmp.ne.s32.totalorder %s37, %s53
    %p55 = scmp.eq.s32.totalorder %s17, 0
    %p56 = por %p54, %p55
    %s57 = ssub.s32 %s19, %s26
    %p58 = scmp.eq.s32.totalorder %s57, 0
    %s60 = sadd.s32 %s59, 1
    %s61 = scalar_select %p58, %s59, %s60
    %p64 = pneg %p58
    %p65 = scmp.eq.s32.totalorder %s11, 1
    %p66 = por %p64, %p65
    %p67 = scmp.ne.s32.totalorder %s59, %s62
    %p68 = scmp.eq.s32.totalorder %s11, 0
    %p69 = por %p67, %p68
    %p70 = scmp.ne.s32.totalorder %s59, %s62
    %p71 = scmp.eq.s32.totalorder %s16, 1
    %p72 = por %p70, %p71
    %p73 = scmp.ne.s32.totalorder %s62, %s63
    %p74 = scmp.eq.s32.totalorder %s16, 0
    %p75 = por %p73, %p74
    %p76 = scmp.ne.s32.totalorder %s62, %s63
    %p77 = scmp.eq.s32.totalorder %s17, 1
    %p78 = por %p76, %p77
    %p80 = scmp.ne.s32.totalorder %s63, %s79
    %p81 = scmp.eq.s32.totalorder %s17, 0
    %p82 = por %p80, %p81
    %s83 = ssub.s32 %s18, %s30
    %s84 = ssub.s32 %s19, %s26
    %s85 = sor.u32 %s83, %s84
    %p86 = scmp.eq.s32.totalorder %s85, 0
    %s88 = sadd.s32 %s87, 1
    %s89 = scalar_select %p86, %s87, %s88
    %p92 = pneg %p86
    %p93 = scmp.eq.s32.totalorder %s11, 1
    %p94 = por %p92, %p93
    %p95 = scmp.ne.s32.totalorder %s87, %s90
    %p96 = scmp.eq.s32.totalorder %s11, 0
    %p97 = por %p95, %p96
    %p98 = scmp.ne.s32.totalorder %s87, %s90
    %p99 = scmp.eq.s32.totalorder %s16, 1
    %p100 = por %p98, %p99
    %p101 = scmp.ne.s32.totalorder %s90, %s91
    %p102 = scmp.eq.s32.totalorder %s16, 0
    %p103 = por %p101, %p102
    %p104 = scmp.ne.s32.totalorder %s90, %s91
    %p105 = scmp.eq.s32.totalorder %s17, 1
    %p106 = por %p104, %p105
    %p108 = scmp.ne.s32.totalorder %s91, %s107
    %p109 = scmp.eq.s32.totalorder %s17, 0
    %p110 = por %p108, %p109
    %s111 = ssub.s32 %s18, %s30
    %s112 = ssub.s32 %s19, %s26
    %s113 = sor.u32 %s111, %s112
    %p114 = scmp.eq.s32.totalorder %s113, 0
    %s116 = sadd.s32 %s115, 1
    %s117 = scalar_select %p114, %s115, %s116
    %p120 = pneg %p114
    %p121 = scmp.eq.s32.totalorder %s11, 1
    %p122 = por %p120, %p121
    %p123 = scmp.ne.s32.totalorder %s115, %s118
    %p124 = scmp.eq.s32.totalorder %s11, 0
    %p125 = por %p123, %p124
    %p126 = scmp.ne.s32.totalorder %s115, %s118
    %p127 = scmp.eq.s32.totalorder %s16, 1
    %p128 = por %p126, %p127
    %p129 = scmp.ne.s32.totalorder %s118, %s119
    %p130 = scmp.eq.s32.totalorder %s16, 0
    %p131 = por %p129, %p130
    %p132 = scmp.ne.s32.totalorder %s118, %s119
    %p133 = scmp.eq.s32.totalorder %s17, 1
    %p134 = por %p132, %p133
    %p136 = scmp.ne.s32.totalorder %s119, %s135
    %p137 = scmp.eq.s32.totalorder %s17, 0
    %p138 = por %p136, %p137
    %s139 = ssub.s32 %s18, %s30
    %s140 = ssub.s32 %s19, %s26
    %s141 = sor.u32 %s139, %s140
    %p142 = scmp.eq.s32.totalorder %s141, 0
    %s144 = sadd.s32 %s143, 1
    %s145 = scalar_select %p142, %s143, %s144
    %p148 = pneg %p142
    %p149 = scmp.eq.s32.totalorder %s11, 1
    %p150 = por %p148, %p149
    %p151 = scmp.ne.s32.totalorder %s143, %s146
    %p152 = scmp.eq.s32.totalorder %s11, 0
    %p153 = por %p151, %p152
    %p154 = scmp.ne.s32.totalorder %s143, %s146
    %p155 = scmp.eq.s32.totalorder %s16, 1
    %p156 = por %p154, %p155
    %p157 = scmp.ne.s32.totalorder %s146, %s147
    %p158 = scmp.eq.s32.totalorder %s16, 0
    %p159 = por %p157, %p158
    %p160 = scmp.ne.s32.totalorder %s146, %s147
    %p161 = scmp.eq.s32.totalorder %s17, 1
    %p162 = por %p160, %p161
    %p164 = scmp.ne.s32.totalorder %s147, %s163
    %p165 = scmp.eq.s32.totalorder %s17, 0
    %p166 = por %p164, %p165
    %p167 = scmp.le.s32.totalorder 1, %s11
    %p168 = scmp.lt.s32.totalorder %s11, 3
    %p169 = pnand %p167, %p168
    %p170 = pneg %p169
    // Predicated region
    $region9: #{conv2d_batchnorm_relu.2} parent=5 // pred_check
      _
    $region10: #{conv2d_batchnorm_relu.2} parent=5 // pred_check_branch
      %172 = sbr.rel (%p169) target = $region12
    $region11: #{conv2d_batchnorm_relu.2} parent=5 // pred_region
      %s173 = ssub.s32 %s11, 1
      // Predicated region
      $region13: #{conv2d_batchnorm_relu.2} parent=11 // pred_check
        %p174 = pneg %p75
      $region14: #{conv2d_batchnorm_relu.2} parent=11 // pred_check_branch
        %176 = sbr.rel (%p174) target = $region16
      $region15: #{conv2d_batchnorm_relu.2} parent=11 // pred_region
        %p177 = scmp.lt.s32.totalorder %s21, 0
        %s178 = scalar_select %p177, %s21, 0
        %s179 = smul.addr %s178, 4
        %s180 = scalar_lea.vmem %s1, %s179
      $region16: #{conv2d_batchnorm_relu.2} parent=11 // pred_fallthru
        _
    $region12: #{conv2d_batchnorm_relu.2} parent=5 // pred_fallthru
      _
    %p181 = scmp.lt.s32.totalorder %s11, 2
    // Predicated region
    $region17: #{conv2d_batchnorm_relu.2} parent=5 // pred_check
      %p182 = pneg %p181
    $region18: #{conv2d_batchnorm_relu.2} parent=5 // pred_check_branch
      %184 = sbr.rel (%p182) target = $region20
    $region19: #{conv2d_batchnorm_relu.2} parent=5 // pred_region
      // Predicated region
      $region21: #{conv2d_batchnorm_relu.2} parent=19 // pred_check
        %p185 = pneg %p43
      $region22: #{conv2d_batchnorm_relu.2} parent=19 // pred_check_branch
        %187 = sbr.rel (%p185) target = $region24
      $region23: #{conv2d_batchnorm_relu.2} parent=19 // pred_region
        %p188 = scmp.lt.s32.totalorder %s18, 1
        %s189 = scalar_select %p188, %s18, 1
        %s190 = smul.addr %s189, 54
        %s191 = smul.addr %s190, 4
        %s192 = scalar_lea.vmem %s0, %s191
      $region24: #{conv2d_batchnorm_relu.2} parent=19 // pred_fallthru
        _
    $region20: #{conv2d_batchnorm_relu.2} parent=5 // pred_fallthru
      _
    %p193 = scmp.le.s32.totalorder 1, %s11
    %p194 = scmp.lt.s32.totalorder %s11, 3
    %p195 = pnand %p193, %p194
    %p196 = pneg %p195
    // Predicated region
    $region25: #{conv2d_batchnorm_relu.2} parent=5 // pred_check
      _
    $region26: #{conv2d_batchnorm_relu.2} parent=5 // pred_check_branch
      %198 = sbr.rel (%p195) target = $region28
    $region27: #{conv2d_batchnorm_relu.2} parent=5 // pred_region
      %s199 = ssub.s32 %s11, 1
      %p200 = scmp.lt.s32.totalorder %s20, 1
      %s201 = scalar_select %p200, %s20, 1
      %s202 = smul.addr %s201, 54
      %s203 = smul.addr %s202, 4
      %s204 = scalar_lea.vmem %s0, %s203
      %p205 = pneg %p49
      %p206 = pneg %p46
      %p207 = scmp.lt.s32.totalorder %s21, 0
      %s208 = scalar_select %p207, %s21, 0
      %s209 = smul.addr %s208, 4
      %s210 = scalar_lea.vmem %s1, %s209
      %p211 = pneg %p75
      %p212 = pneg %p72
      %p213 = pneg %p103
      %p214 = pneg %p100
      %p215 = scmp.lt.s32.totalorder %s20, 1
      %s216 = scalar_select %p215, %s20, 1
      %p217 = scmp.lt.s32.totalorder %s21, 0
      %s218 = scalar_select %p217, %s21, 0
      %s219 = smul.addr %s216, 32
      %s220 = sadd.s32 %s218, %s219
      %s221 = smul.addr %s220, 4
      %s222 = scalar_lea.vmem %s2, %s221
      %p223 = pneg %p131
      %p224 = pneg %p128
      %p225 = scmp.lt.s32.totalorder %s20, 1
      %s226 = scalar_select %p225, %s20, 1
      %p227 = scmp.lt.s32.totalorder %s21, 0
      %s228 = scalar_select %p227, %s21, 0
      %s229 = sadd.s32 %s228, %s226
      %s230 = scalar_lea.vmem %s3, %s229
      %p231 = pneg %p159
      %p232 = pneg %p156
      %p233 = scmp.lt.s32.totalorder %s20, 1
      %s234 = scalar_select %p233, %s20, 1
      %p235 = scmp.lt.s32.totalorder %s21, 0
      %s236 = scalar_select %p235, %s21, 0
      %s237 = sadd.s32 %s236, %s234
      %s238 = scalar_lea.vmem %s4, %s237
      %p239 = scmp.lt.s32.totalorder %s20, 1
      %s240 = scalar_select %p239, %s20, 1
      %s241 = smul.addr %s240, 54
      %s242 = smul.addr %s241, 4
      %s243 = scalar_lea.vmem %s0, %s242
      %p244 = scmp.lt.s32.totalorder %s21, 0
      %s245 = scalar_select %p244, %s21, 0
      %s246 = smul.addr %s245, 4
      %s247 = scalar_lea.vmem %s1, %s246
      %p248 = scmp.lt.s32.totalorder %s20, 1
      %s249 = scalar_select %p248, %s20, 1
      %p250 = scmp.lt.s32.totalorder %s21, 0
      %s251 = scalar_select %p250, %s21, 0
      %s252 = smul.addr %s249, 32
      %s253 = sadd.s32 %s251, %s252
      %s254 = smul.addr %s253, 4
      %s255 = scalar_lea.vmem %s2, %s254
      %p256 = scmp.lt.s32.totalorder %s20, 1
      %s257 = scalar_select %p256, %s20, 1
      %p258 = scmp.lt.s32.totalorder %s21, 0
      %s259 = scalar_select %p258, %s21, 0
      %s260 = sadd.s32 %s259, %s257
      %s261 = scalar_lea.vmem %s3, %s260
      %p262 = scmp.lt.s32.totalorder %s20, 1
      %s263 = scalar_select %p262, %s20, 1
      %p264 = scmp.lt.s32.totalorder %s21, 0
      %s265 = scalar_select %p264, %s21, 0
      %s266 = sadd.s32 %s265, %s263
      %s267 = scalar_lea.vmem %s4, %s266
      %v269 = vld [vmem:[%s243] sm:$0xf]
      %v270 = vld [vmem:[%s243 + $0x4] sm:$0xf]
      %v271 = vld [vmem:[%s243 + $0xc] sm:$0xf]
      %v272 = vld [vmem:[%s243 + $0x10] sm:$0xf]
      %v273 = vld [vmem:[%s243 + $0x18] sm:$0xf]
      %v274 = vld [vmem:[%s243 + $0x1c] sm:$0xf]
      %v275 = vld [vmem:[%s243 + $0x24] sm:$0xf]
      %v276 = vld [vmem:[%s243 + $0x28] sm:$0xf]
      %v277 = vld [vmem:[%s243 + $0x30] sm:$0xf]
      %v278 = vld [vmem:[%s243 + $0x34] sm:$0xf]
      %v279 = vld [vmem:[%s243 + $0x3c] sm:$0xf]
      %v280 = vld [vmem:[%s243 + $0x40] sm:$0xf]
      %v281 = vld [vmem:[%s243 + $0x48] sm:$0xf]
      %v282 = vld [vmem:[%s243 + $0x4c] sm:$0xf]
      %v283 = vld [vmem:[%s243 + $0x54] sm:$0xf]
      %v284 = vld [vmem:[%s243 + $0x58] sm:$0xf]
      %v285 = vld [vmem:[%s243 + $0x60] sm:$0xf]
      %v286 = vld [vmem:[%s243 + $0x64] sm:$0xf]
      %v287 = vld [vmem:[%s243 + $0x6c] sm:$0xf]
      %v288 = vld [vmem:[%s243 + $0x70] sm:$0xf]
      %v289 = vld [vmem:[%s243 + $0x78] sm:$0xf]
      %v290 = vld [vmem:[%s243 + $0x7c] sm:$0xf]
      %v291 = vld [vmem:[%s243 + $0x84] sm:$0xf]
      %v292 = vld [vmem:[%s243 + $0x88] sm:$0xf]
      %v293 = vld [vmem:[%s243 + $0x90] sm:$0xf]
      %v294 = vld [vmem:[%s243 + $0x94] sm:$0xf]
      %v295 = vld [vmem:[%s243 + $0x9c] sm:$0xf]
      %v296 = vld [vmem:[%s243 + $0xa0] sm:$0xf]
      %v297 = vld [vmem:[%s243 + $0xa8] sm:$0xf]
      %v298 = vld [vmem:[%s243 + $0xac] sm:$0xf]
      %v299 = vld [vmem:[%s243 + $0xb4] sm:$0xf]
      %v300 = vld [vmem:[%s243 + $0xb8] sm:$0xf]
      %v301 = vld [vmem:[%s247] sm:$0xf]
      %v302 = vld [vmem:[%s247 + $0x4] sm:$0xf]
      %v303 = vld [vmem:[%s247 + $0x8] sm:$0xf]
      %v304 = vld [vmem:[%s247 + $0xc] sm:$0xf]
      %v305 = vld [vmem:[%s247 + $0x10] sm:$0xf]
      %v306 = vld [vmem:[%s247 + $0x14] sm:$0xf]
      %v307 = vld [vmem:[%s247 + $0x18] sm:$0xf]
      %v308 = vld [vmem:[%s247 + $0x1c] sm:$0xf]
      %v309 = vld [vmem:[%s247 + $0x20] sm:$0xf]
      %v310 = vld [vmem:[%s247 + $0x24] sm:$0xf]
      %v311 = vld [vmem:[%s247 + $0x28] sm:$0xf]
      %v312 = vld [vmem:[%s247 + $0x2c] sm:$0xf]
      %v313 = vld [vmem:[%s247 + $0x30] sm:$0xf]
      %v314 = vld [vmem:[%s247 + $0x34] sm:$0xf]
      %v315 = vld [vmem:[%s247 + $0x38] sm:$0xf]
      %v316 = vld [vmem:[%s247 + $0x3c] sm:$0xf]
      %v317 = vld [vmem:[%s243 + $0x8] sm:$0x1]
      %v318 = vld [vmem:[%s243 + $0x14] sm:$0x1]
      %v319 = vld [vmem:[%s243 + $0x20] sm:$0x1]
      %v320 = vld [vmem:[%s243 + $0x2c] sm:$0x1]
      %v321 = vld [vmem:[%s243 + $0x38] sm:$0x1]
      %v322 = vld [vmem:[%s243 + $0x44] sm:$0x1]
      %v323 = vld [vmem:[%s243 + $0x50] sm:$0x1]
      %v324 = vld [vmem:[%s243 + $0x5c] sm:$0x1]
      %v325 = vld [vmem:[%s243 + $0x68] sm:$0x1]
      %v326 = vld [vmem:[%s243 + $0x74] sm:$0x1]
      %v327 = vld [vmem:[%s243 + $0x80] sm:$0x1]
      %v328 = vld [vmem:[%s243 + $0x8c] sm:$0x1]
      %v329 = vld [vmem:[%s243 + $0x98] sm:$0x1]
      %v330 = vld [vmem:[%s243 + $0xa4] sm:$0x1]
      %v331 = vld [vmem:[%s243 + $0xb0] sm:$0x1]
      %v332 = vld [vmem:[%s243 + $0xbc] sm:$0x1]
      %vm333 = vsmask.f32 3328
      %vm334 = vsmask.f32 7440
      %vm335 = vmor %vm333, %vm334
      %v337 = vshrl.u32 %v269, 16
      %v339 = vrot.slane %v337, 4
      %v340 = vshll.u32 %v269, 16
      %v342 = vrot.slane %v340, 5
      %v343 = vor.u32 %v339, %v342
      %v344 = vrot.slane %v343, 4
      %v346 = vshll.u32 %v270, 16
      %v348 = vrot.slane %v346, 5
      %v349 = vsel %vm335, %v344, %v348
      %v350 = vshrl.u32 %v270, 16
      %v352 = vrot.slane %v350, 4
      %v353 = vor.u32 %v352, %v348
      %v354 = vrot.slane %v353, 4
      %v356 = vshll.u32 %v317, 16
      %v358 = vrot.slane %v356, 5
      %v359 = vsel %vm335, %v354, %v358
      %v361 = vshrl.u32 %v271, 16
      %v363 = vrot.slane %v361, 4
      %v364 = vshll.u32 %v271, 16
      %v366 = vrot.slane %v364, 5
      %v367 = vor.u32 %v363, %v366
      %v368 = vrot.slane %v367, 4
      %v370 = vshll.u32 %v272, 16
      %v372 = vrot.slane %v370, 5
      %v373 = vsel %vm335, %v368, %v372
      %v374 = vshrl.u32 %v272, 16
      %v376 = vrot.slane %v374, 4
      %v377 = vor.u32 %v376, %v372
      %v378 = vrot.slane %v377, 4
      %v380 = vshll.u32 %v318, 16
      %v382 = vrot.slane %v380, 5
      %v383 = vsel %vm335, %v378, %v382
      %v385 = vshrl.u32 %v273, 16
      %v387 = vrot.slane %v385, 4
      %v388 = vshll.u32 %v273, 16
      %v390 = vrot.slane %v388, 5
      %v391 = vor.u32 %v387, %v390
      %v392 = vrot.slane %v391, 4
      %v394 = vshll.u32 %v274, 16
      %v396 = vrot.slane %v394, 5
      %v397 = vsel %vm335, %v392, %v396
      %v398 = vshrl.u32 %v274, 16
      %v400 = vrot.slane %v398, 4
      %v401 = vor.u32 %v400, %v396
      %v402 = vrot.slane %v401, 4
      %v404 = vshll.u32 %v319, 16
      %v406 = vrot.slane %v404, 5
      %v407 = vsel %vm335, %v402, %v406
      %v409 = vshrl.u32 %v275, 16
      %v411 = vrot.slane %v409, 4
      %v412 = vshll.u32 %v275, 16
      %v414 = vrot.slane %v412, 5
      %v415 = vor.u32 %v411, %v414
      %v416 = vrot.slane %v415, 4
      %v418 = vshll.u32 %v276, 16
      %v420 = vrot.slane %v418, 5
      %v421 = vsel %vm335, %v416, %v420
      %v422 = vshrl.u32 %v276, 16
      %v424 = vrot.slane %v422, 4
      %v425 = vor.u32 %v424, %v420
      %v426 = vrot.slane %v425, 4
      %v428 = vshll.u32 %v320, 16
      %v430 = vrot.slane %v428, 5
      %v431 = vsel %vm335, %v426, %v430
      %v433 = vshrl.u32 %v277, 16
      %v435 = vrot.slane %v433, 4
      %v436 = vshll.u32 %v277, 16
      %v438 = vrot.slane %v436, 5
      %v439 = vor.u32 %v435, %v438
      %v440 = vrot.slane %v439, 4
      %v442 = vshll.u32 %v278, 16
      %v444 = vrot.slane %v442, 5
      %v445 = vsel %vm335, %v440, %v444
      %v446 = vshrl.u32 %v278, 16
      %v448 = vrot.slane %v446, 4
      %v449 = vor.u32 %v448, %v444
      %v450 = vrot.slane %v449, 4
      %v452 = vshll.u32 %v321, 16
      %v454 = vrot.slane %v452, 5
      %v455 = vsel %vm335, %v450, %v454
      %v457 = vshrl.u32 %v279, 16
      %v459 = vrot.slane %v457, 4
      %v460 = vshll.u32 %v279, 16
      %v462 = vrot.slane %v460, 5
      %v463 = vor.u32 %v459, %v462
      %v464 = vrot.slane %v463, 4
      %v466 = vshll.u32 %v280, 16
      %v468 = vrot.slane %v466, 5
      %v469 = vsel %vm335, %v464, %v468
      %v470 = vshrl.u32 %v280, 16
      %v472 = vrot.slane %v470, 4
      %v473 = vor.u32 %v472, %v468
      %v474 = vrot.slane %v473, 4
      %v476 = vshll.u32 %v322, 16
      %v478 = vrot.slane %v476, 5
      %v479 = vsel %vm335, %v474, %v478
      %v481 = vshrl.u32 %v281, 16
      %v483 = vrot.slane %v481, 4
      %v484 = vshll.u32 %v281, 16
      %v486 = vrot.slane %v484, 5
      %v487 = vor.u32 %v483, %v486
      %v488 = vrot.slane %v487, 4
      %v490 = vshll.u32 %v282, 16
      %v492 = vrot.slane %v490, 5
      %v493 = vsel %vm335, %v488, %v492
      %v494 = vshrl.u32 %v282, 16
      %v496 = vrot.slane %v494, 4
      %v497 = vor.u32 %v496, %v492
      %v498 = vrot.slane %v497, 4
      %v500 = vshll.u32 %v323, 16
      %v502 = vrot.slane %v500, 5
      %v503 = vsel %vm335, %v498, %v502
      %v505 = vshrl.u32 %v283, 16
      %v507 = vrot.slane %v505, 4
      %v508 = vshll.u32 %v283, 16
      %v510 = vrot.slane %v508, 5
      %v511 = vor.u32 %v507, %v510
      %v512 = vrot.slane %v511, 4
      %v514 = vshll.u32 %v284, 16
      %v516 = vrot.slane %v514, 5
      %v517 = vsel %vm335, %v512, %v516
      %v518 = vshrl.u32 %v284, 16
      %v520 = vrot.slane %v518, 4
      %v521 = vor.u32 %v520, %v516
      %v522 = vrot.slane %v521, 4
      %v524 = vshll.u32 %v324, 16
      %v526 = vrot.slane %v524, 5
      %v527 = vsel %vm335, %v522, %v526
      %v529 = vshrl.u32 %v285, 16
      %v531 = vrot.slane %v529, 4
      %v532 = vshll.u32 %v285, 16
      %v534 = vrot.slane %v532, 5
      %v535 = vor.u32 %v531, %v534
      %v536 = vrot.slane %v535, 4
      %v538 = vshll.u32 %v286, 16
      %v540 = vrot.slane %v538, 5
      %v541 = vsel %vm335, %v536, %v540
      %v542 = vshrl.u32 %v286, 16
      %v544 = vrot.slane %v542, 4
      %v545 = vor.u32 %v544, %v540
      %v546 = vrot.slane %v545, 4
      %v548 = vshll.u32 %v325, 16
      %v550 = vrot.slane %v548, 5
      %v551 = vsel %vm335, %v546, %v550
      %v553 = vshrl.u32 %v287, 16
      %v555 = vrot.slane %v553, 4
      %v556 = vshll.u32 %v287, 16
      %v558 = vrot.slane %v556, 5
      %v559 = vor.u32 %v555, %v558
      %v560 = vrot.slane %v559, 4
      %v562 = vshll.u32 %v288, 16
      %v564 = vrot.slane %v562, 5
      %v565 = vsel %vm335, %v560, %v564
      %v566 = vshrl.u32 %v288, 16
      %v568 = vrot.slane %v566, 4
      %v569 = vor.u32 %v568, %v564
      %v570 = vrot.slane %v569, 4
      %v572 = vshll.u32 %v326, 16
      %v574 = vrot.slane %v572, 5
      %v575 = vsel %vm335, %v570, %v574
      %v577 = vshrl.u32 %v289, 16
      %v579 = vrot.slane %v577, 4
      %v580 = vshll.u32 %v289, 16
      %v582 = vrot.slane %v580, 5
      %v583 = vor.u32 %v579, %v582
      %v584 = vrot.slane %v583, 4
      %v586 = vshll.u32 %v290, 16
      %v588 = vrot.slane %v586, 5
      %v589 = vsel %vm335, %v584, %v588
      %v590 = vshrl.u32 %v290, 16
      %v592 = vrot.slane %v590, 4
      %v593 = vor.u32 %v592, %v588
      %v594 = vrot.slane %v593, 4
      %v596 = vshll.u32 %v327, 16
      %v598 = vrot.slane %v596, 5
      %v599 = vsel %vm335, %v594, %v598
      %v601 = vshrl.u32 %v291, 16
      %v603 = vrot.slane %v601, 4
      %v604 = vshll.u32 %v291, 16
      %v606 = vrot.slane %v604, 5
      %v607 = vor.u32 %v603, %v606
      %v608 = vrot.slane %v607, 4
      %v610 = vshll.u32 %v292, 16
      %v612 = vrot.slane %v610, 5
      %v613 = vsel %vm335, %v608, %v612
      %v614 = vshrl.u32 %v292, 16
      %v616 = vrot.slane %v614, 4
      %v617 = vor.u32 %v616, %v612
      %v618 = vrot.slane %v617, 4
      %v620 = vshll.u32 %v328, 16
      %v622 = vrot.slane %v620, 5
      %v623 = vsel %vm335, %v618, %v622
      %v625 = vshrl.u32 %v293, 16
      %v627 = vrot.slane %v625, 4
      %v628 = vshll.u32 %v293, 16
      %v630 = vrot.slane %v628, 5
      %v631 = vor.u32 %v627, %v630
      %v632 = vrot.slane %v631, 4
      %v634 = vshll.u32 %v294, 16
      %v636 = vrot.slane %v634, 5
      %v637 = vsel %vm335, %v632, %v636
      %v638 = vshrl.u32 %v294, 16
      %v640 = vrot.slane %v638, 4
      %v641 = vor.u32 %v640, %v636
      %v642 = vrot.slane %v641, 4
      %v644 = vshll.u32 %v329, 16
      %v646 = vrot.slane %v644, 5
      %v647 = vsel %vm335, %v642, %v646
      %v649 = vshrl.u32 %v295, 16
      %v651 = vrot.slane %v649, 4
      %v652 = vshll.u32 %v295, 16
      %v654 = vrot.slane %v652, 5
      %v655 = vor.u32 %v651, %v654
      %v656 = vrot.slane %v655, 4
      %v658 = vshll.u32 %v296, 16
      %v660 = vrot.slane %v658, 5
      %v661 = vsel %vm335, %v656, %v660
      %v662 = vshrl.u32 %v296, 16
      %v664 = vrot.slane %v662, 4
      %v665 = vor.u32 %v664, %v660
      %v666 = vrot.slane %v665, 4
      %v668 = vshll.u32 %v330, 16
      %v670 = vrot.slane %v668, 5
      %v671 = vsel %vm335, %v666, %v670
      %v673 = vshrl.u32 %v297, 16
      %v675 = vrot.slane %v673, 4
      %v676 = vshll.u32 %v297, 16
      %v678 = vrot.slane %v676, 5
      %v679 = vor.u32 %v675, %v678
      %v680 = vrot.slane %v679, 4
      %v682 = vshll.u32 %v298, 16
      %v684 = vrot.slane %v682, 5
      %v685 = vsel %vm335, %v680, %v684
      %v686 = vshrl.u32 %v298, 16
      %v688 = vrot.slane %v686, 4
      %v689 = vor.u32 %v688, %v684
      %v690 = vrot.slane %v689, 4
      %v692 = vshll.u32 %v331, 16
      %v694 = vrot.slane %v692, 5
      %v695 = vsel %vm335, %v690, %v694
      %v697 = vshrl.u32 %v299, 16
      %v699 = vrot.slane %v697, 4
      %v700 = vshll.u32 %v299, 16
      %v702 = vrot.slane %v700, 5
      %v703 = vor.u32 %v699, %v702
      %v704 = vrot.slane %v703, 4
      %v706 = vshll.u32 %v300, 16
      %v708 = vrot.slane %v706, 5
      %v709 = vsel %vm335, %v704, %v708
      %v710 = vshrl.u32 %v300, 16
      %v712 = vrot.slane %v710, 4
      %v713 = vor.u32 %v712, %v708
      %v714 = vrot.slane %v713, 4
      %v716 = vshll.u32 %v332, 16
      %v718 = vrot.slane %v716, 5
      %v719 = vsel %vm335, %v714, %v718
      %s720 = scalar_lea.vmem %s247, 64
      %v721 = vld [vmem:[%s720] sm:$0xf]
      %v722 = vld [vmem:[%s720 + $0x4] sm:$0xf]
      %v723 = vld [vmem:[%s720 + $0x8] sm:$0xf]
      %v724 = vld [vmem:[%s720 + $0xc] sm:$0xf]
      %v725 = vld [vmem:[%s720 + $0x10] sm:$0xf]
      %v726 = vld [vmem:[%s720 + $0x14] sm:$0xf]
      %v727 = vld [vmem:[%s720 + $0x18] sm:$0xf]
      %v728 = vld [vmem:[%s720 + $0x1c] sm:$0xf]
      %v729 = vld [vmem:[%s720 + $0x20] sm:$0xf]
      %v730 = vld [vmem:[%s720 + $0x24] sm:$0xf]
      %v731 = vld [vmem:[%s720 + $0x28] sm:$0xf]
      %v732 = vld [vmem:[%s720 + $0x2c] sm:$0xf]
      %v733 = vld [vmem:[%s720 + $0x30] sm:$0xf]
      %v734 = vld [vmem:[%s720 + $0x34] sm:$0xf]
      %v735 = vld [vmem:[%s720 + $0x38] sm:$0xf]
      %v736 = vld [vmem:[%s720 + $0x3c] sm:$0xf]
      %v737 = vunpack.c.l.b16 %v349
      %v738 = vunpack.c.l.b16 %v359
      %v739 = vunpack.c.l.b16 %v373
      %v740 = vunpack.c.l.b16 %v383
      %v741 = vunpack.c.l.b16 %v397
      %v742 = vunpack.c.l.b16 %v407
      %v743 = vunpack.c.l.b16 %v421
      %v744 = vunpack.c.l.b16 %v431
      %v745 = vunpack.c.l.b16 %v445
      %v746 = vunpack.c.l.b16 %v455
      %v747 = vunpack.c.l.b16 %v469
      %v748 = vunpack.c.l.b16 %v479
      %v749 = vunpack.c.l.b16 %v493
      %v750 = vunpack.c.l.b16 %v503
      %v751 = vunpack.c.l.b16 %v517
      %v752 = vunpack.c.l.b16 %v527
      %v753 = vunpack.c.l.b16 %v541
      %v754 = vunpack.c.l.b16 %v551
      %v755 = vunpack.c.l.b16 %v565
      %v756 = vunpack.c.l.b16 %v575
      %v757 = vunpack.c.l.b16 %v589
      %v758 = vunpack.c.l.b16 %v599
      %v759 = vunpack.c.l.b16 %v613
      %v760 = vunpack.c.l.b16 %v623
      %v761 = vunpack.c.l.b16 %v637
      %v762 = vunpack.c.l.b16 %v647
      %v763 = vunpack.c.l.b16 %v661
      %v764 = vunpack.c.l.b16 %v671
      %v765 = vunpack.c.l.b16 %v685
      %v766 = vunpack.c.l.b16 %v695
      %v767 = vunpack.c.l.b16 %v709
      %v768 = vunpack.c.l.b16 %v719
      %v769 = vpack.c.b16 %v738, %v737
      %v770 = vpack.c.b16 %v740, %v739
      %v771 = vpack.c.b16 %v742, %v741
      %v772 = vpack.c.b16 %v744, %v743
      %v773 = vpack.c.b16 %v746, %v745
      %v774 = vpack.c.b16 %v748, %v747
      %v775 = vpack.c.b16 %v750, %v749
      %v776 = vpack.c.b16 %v752, %v751
      %v777 = vpack.c.b16 %v754, %v753
      %v778 = vpack.c.b16 %v756, %v755
      %v779 = vpack.c.b16 %v758, %v757
      %v780 = vpack.c.b16 %v760, %v759
      %v781 = vpack.c.b16 %v762, %v761
      %v782 = vpack.c.b16 %v764, %v763
      %v783 = vpack.c.b16 %v766, %v765
      %v784 = vpack.c.b16 %v768, %v767
      %v817 = vunpack.c.l.b16 %v721
      %v818 = vunpack.c.l.b16 %v722
      %v819 = vunpack.c.l.b16 %v723
      %v820 = vunpack.c.l.b16 %v724
      %v821 = vunpack.c.l.b16 %v725
      %v822 = vunpack.c.l.b16 %v726
      %v823 = vunpack.c.l.b16 %v727
      %v824 = vunpack.c.l.b16 %v728
      %v825 = vunpack.c.l.b16 %v729
      %v826 = vunpack.c.l.b16 %v730
      %v827 = vunpack.c.l.b16 %v731
      %v828 = vunpack.c.l.b16 %v732
      %v829 = vunpack.c.l.b16 %v733
      %v830 = vunpack.c.l.b16 %v734
      %v831 = vunpack.c.l.b16 %v735
      %v832 = vunpack.c.l.b16 %v736
      %v833 = vpack.c.b16 %v818, %v817
      %v834 = vpack.c.b16 %v820, %v819
      %v835 = vpack.c.b16 %v822, %v821
      %v836 = vpack.c.b16 %v824, %v823
      %v837 = vpack.c.b16 %v826, %v825
      %v838 = vpack.c.b16 %v828, %v827
      %v839 = vpack.c.b16 %v830, %v829
      %v840 = vpack.c.b16 %v832, %v831
      %849 = vmatprep.subr.bf16.mxu0 0
      %850 = vmatpush1.bf16.msra.mxu0 %v840
      %851 = vmatprep.subr.bf16.mxu0 0
      %852 = vmatpush1.bf16.msra.mxu0 %v839
      %853 = vmatprep.subr.bf16.mxu0 0
      %854 = vmatpush1.bf16.msra.mxu0 %v838
      %855 = vmatprep.subr.bf16.mxu0 0
      %856 = vmatpush1.bf16.msra.mxu0 %v837
      %857 = vmatprep.subr.bf16.mxu0 0
      %858 = vmatpush1.bf16.msra.mxu0 %v836
      %859 = vmatprep.subr.bf16.mxu0 0
      %860 = vmatpush1.bf16.msra.mxu0 %v835
      %861 = vmatprep.subr.bf16.mxu0 0
      %862 = vmatpush1.bf16.msra.mxu0 %v834
      %863 = vmatprep.subr.bf16.mxu0 0
      %864 = vmatpush1.bf16.msra.mxu0 %v833
      %865 = vmatprep.subr.bf16.mxu0 0
      %866 = vmatpush2.bf16.msra.mxu0 0
      %867 = vmatprep.subr.bf16.mxu0 0
      %868 = vmatpush2.bf16.msra.mxu0 0
      %869 = vmatprep.subr.bf16.mxu0 0
      %870 = vmatpush2.bf16.msra.mxu0 0
      %871 = vmatprep.subr.bf16.mxu0 0
      %872 = vmatpush2.bf16.msra.mxu0 0
      %873 = vmatprep.subr.bf16.mxu0 0
      %874 = vmatpush2.bf16.msra.mxu0 0
      %875 = vmatprep.subr.bf16.mxu0 0
      %876 = vmatpush2.bf16.msra.mxu0 0
      %877 = vmatprep.subr.bf16.mxu0 0
      %878 = vmatpush2.bf16.msra.mxu0 0
      %879 = vmatprep.subr.bf16.mxu0 0
      %880 = vmatpush2.bf16.msra.mxu0 0
      %881 = vmatprep.mubr.bf16.mxu0 0
      %882 = vmatmul.mubr.bf16.gmra.mxu0 %v769
      %v883 = vpop.f32.mrf.mxu0
      %v884 = vadd.f32 0.0, %v883
      %v885 = vpop.f32.mrf.mxu0
      %v886 = vpop.f32.mrf.mxu0
      %v887 = vadd.f32 0.0, %v886
      %v888 = vpop.f32.mrf.mxu0
      %889 = vmatprep.mubr.bf16.mxu0 0
      %890 = vmatmul.mubr.bf16.gmra.mxu0 %v770
      %v891 = vpop.f32.mrf.mxu0
      %v892 = vadd.f32 0.0, %v891
      %v893 = vpop.f32.mrf.mxu0
      %v894 = vpop.f32.mrf.mxu0
      %v895 = vadd.f32 0.0, %v894
      %v896 = vpop.f32.mrf.mxu0
      %897 = vmatprep.mubr.bf16.mxu0 0
      %898 = vmatmul.mubr.bf16.gmra.mxu0 %v771
      %v899 = vpop.f32.mrf.mxu0
      %v900 = vadd.f32 0.0, %v899
      %v901 = vpop.f32.mrf.mxu0
      %v902 = vpop.f32.mrf.mxu0
      %v903 = vadd.f32 0.0, %v902
      %v904 = vpop.f32.mrf.mxu0
      %905 = vmatprep.mubr.bf16.mxu0 0
      %906 = vmatmul.mubr.bf16.gmra.mxu0 %v772
      %v907 = vpop.f32.mrf.mxu0
      %v908 = vadd.f32 0.0, %v907
      %v909 = vpop.f32.mrf.mxu0
      %v910 = vpop.f32.mrf.mxu0
      %v911 = vadd.f32 0.0, %v910
      %v912 = vpop.f32.mrf.mxu0
      %913 = vmatprep.mubr.bf16.mxu0 0
      %914 = vmatmul.mubr.bf16.gmra.mxu0 %v773
      %v915 = vpop.f32.mrf.mxu0
      %v916 = vadd.f32 0.0, %v915
      %v917 = vpop.f32.mrf.mxu0
      %v918 = vpop.f32.mrf.mxu0
      %v919 = vadd.f32 0.0, %v918
      %v920 = vpop.f32.mrf.mxu0
      %921 = vmatprep.mubr.bf16.mxu0 0
      %922 = vmatmul.mubr.bf16.gmra.mxu0 %v774
      %v923 = vpop.f32.mrf.mxu0
      %v924 = vadd.f32 0.0, %v923
      %v925 = vpop.f32.mrf.mxu0
      %v926 = vpop.f32.mrf.mxu0
      %v927 = vadd.f32 0.0, %v926
      %v928 = vpop.f32.mrf.mxu0
      %929 = vmatprep.mubr.bf16.mxu0 0
      %930 = vmatmul.mubr.bf16.gmra.mxu0 %v775
      %v931 = vpop.f32.mrf.mxu0
      %v932 = vadd.f32 0.0, %v931
      %v933 = vpop.f32.mrf.mxu0
      %v934 = vpop.f32.mrf.mxu0
      %v935 = vadd.f32 0.0, %v934
      %v936 = vpop.f32.mrf.mxu0
      %937 = vmatprep.mubr.bf16.mxu0 0
      %938 = vmatmul.mubr.bf16.gmra.mxu0 %v776
      %v939 = vpop.f32.mrf.mxu0
      %v940 = vadd.f32 0.0, %v939
      %v941 = vpop.f32.mrf.mxu0
      %v942 = vpop.f32.mrf.mxu0
      %v943 = vadd.f32 0.0, %v942
      %v944 = vpop.f32.mrf.mxu0
      %945 = vmatprep.mubr.bf16.mxu0 0
      %946 = vmatmul.mubr.bf16.gmra.mxu0 %v777
      %v947 = vpop.f32.mrf.mxu0
      %v948 = vadd.f32 0.0, %v947
      %v949 = vpop.f32.mrf.mxu0
      %v950 = vpop.f32.mrf.mxu0
      %v951 = vadd.f32 0.0, %v950
      %v952 = vpop.f32.mrf.mxu0
      %953 = vmatprep.mubr.bf16.mxu0 0
      %954 = vmatmul.mubr.bf16.gmra.mxu0 %v778
      %v955 = vpop.f32.mrf.mxu0
      %v956 = vadd.f32 0.0, %v955
      %v957 = vpop.f32.mrf.mxu0
      %v958 = vpop.f32.mrf.mxu0
      %v959 = vadd.f32 0.0, %v958
      %v960 = vpop.f32.mrf.mxu0
      %961 = vmatprep.mubr.bf16.mxu0 0
      %962 = vmatmul.mubr.bf16.gmra.mxu0 %v779
      %v963 = vpop.f32.mrf.mxu0
      %v964 = vadd.f32 0.0, %v963
      %v965 = vpop.f32.mrf.mxu0
      %v966 = vpop.f32.mrf.mxu0
      %v967 = vadd.f32 0.0, %v966
      %v968 = vpop.f32.mrf.mxu0
      %969 = vmatprep.mubr.bf16.mxu0 0
      %970 = vmatmul.mubr.bf16.gmra.mxu0 %v780
      %v971 = vpop.f32.mrf.mxu0
      %v972 = vadd.f32 0.0, %v971
      %v973 = vpop.f32.mrf.mxu0
      %v974 = vpop.f32.mrf.mxu0
      %v975 = vadd.f32 0.0, %v974
      %v976 = vpop.f32.mrf.mxu0
      %977 = vmatprep.mubr.bf16.mxu0 0
      %978 = vmatmul.mubr.bf16.gmra.mxu0 %v781
      %v979 = vpop.f32.mrf.mxu0
      %v980 = vadd.f32 0.0, %v979
      %v981 = vpop.f32.mrf.mxu0
      %v982 = vpop.f32.mrf.mxu0
      %v983 = vadd.f32 0.0, %v982
      %v984 = vpop.f32.mrf.mxu0
      %985 = vmatprep.mubr.bf16.mxu0 0
      %986 = vmatmul.mubr.bf16.gmra.mxu0 %v782
      %v987 = vpop.f32.mrf.mxu0
      %v988 = vadd.f32 0.0, %v987
      %v989 = vpop.f32.mrf.mxu0
      %v990 = vpop.f32.mrf.mxu0
      %v991 = vadd.f32 0.0, %v990
      %v992 = vpop.f32.mrf.mxu0
      %993 = vmatprep.mubr.bf16.mxu0 0
      %994 = vmatmul.mubr.bf16.gmra.mxu0 %v783
      %v995 = vpop.f32.mrf.mxu0
      %v996 = vadd.f32 0.0, %v995
      %v997 = vpop.f32.mrf.mxu0
      %v998 = vpop.f32.mrf.mxu0
      %v999 = vadd.f32 0.0, %v998
      %v1000 = vpop.f32.mrf.mxu0
      %1001 = vmatprep.mubr.bf16.mxu0 0
      %1002 = vmatmul.mubr.bf16.gmra.mxu0 %v784
      %v1003 = vpop.f32.mrf.mxu0
      %v1004 = vadd.f32 0.0, %v1003
      %v1005 = vpop.f32.mrf.mxu0
      %v1006 = vpop.f32.mrf.mxu0
      %v1007 = vadd.f32 0.0, %v1006
      %v1008 = vpop.f32.mrf.mxu0
      %1009 = vdwg.mxu0
      %v1042 = vunpack.c.l.b16 %v269
      %v1043 = vunpack.c.l.b16 %v270
      %v1044 = vunpack.c.l.b16 %v271
      %v1045 = vunpack.c.l.b16 %v272
      %v1046 = vunpack.c.l.b16 %v273
      %v1047 = vunpack.c.l.b16 %v274
      %v1048 = vunpack.c.l.b16 %v275
      %v1049 = vunpack.c.l.b16 %v276
      %v1050 = vunpack.c.l.b16 %v277
      %v1051 = vunpack.c.l.b16 %v278
      %v1052 = vunpack.c.l.b16 %v279
      %v1053 = vunpack.c.l.b16 %v280
      %v1054 = vunpack.c.l.b16 %v281
      %v1055 = vunpack.c.l.b16 %v282
      %v1056 = vunpack.c.l.b16 %v283
      %v1057 = vunpack.c.l.b16 %v284
      %v1058 = vunpack.c.l.b16 %v285
      %v1059 = vunpack.c.l.b16 %v286
      %v1060 = vunpack.c.l.b16 %v287
      %v1061 = vunpack.c.l.b16 %v288
      %v1062 = vunpack.c.l.b16 %v289
      %v1063 = vunpack.c.l.b16 %v290
      %v1064 = vunpack.c.l.b16 %v291
      %v1065 = vunpack.c.l.b16 %v292
      %v1066 = vunpack.c.l.b16 %v293
      %v1067 = vunpack.c.l.b16 %v294
      %v1068 = vunpack.c.l.b16 %v295
      %v1069 = vunpack.c.l.b16 %v296
      %v1070 = vunpack.c.l.b16 %v297
      %v1071 = vunpack.c.l.b16 %v298
      %v1072 = vunpack.c.l.b16 %v299
      %v1073 = vunpack.c.l.b16 %v300
      %v1074 = vpack.c.b16 %v1043, %v1042
      %v1075 = vpack.c.b16 %v1045, %v1044
      %v1076 = vpack.c.b16 %v1047, %v1046
      %v1077 = vpack.c.b16 %v1049, %v1048
      %v1078 = vpack.c.b16 %v1051, %v1050
      %v1079 = vpack.c.b16 %v1053, %v1052
      %v1080 = vpack.c.b16 %v1055, %v1054
      %v1081 = vpack.c.b16 %v1057, %v1056
      %v1082 = vpack.c.b16 %v1059, %v1058
      %v1083 = vpack.c.b16 %v1061, %v1060
      %v1084 = vpack.c.b16 %v1063, %v1062
      %v1085 = vpack.c.b16 %v1065, %v1064
      %v1086 = vpack.c.b16 %v1067, %v1066
      %v1087 = vpack.c.b16 %v1069, %v1068
      %v1088 = vpack.c.b16 %v1071, %v1070
      %v1089 = vpack.c.b16 %v1073, %v1072
      %v1122 = vunpack.c.l.b16 %v301
      %v1123 = vunpack.c.l.b16 %v302
      %v1124 = vunpack.c.l.b16 %v303
      %v1125 = vunpack.c.l.b16 %v304
      %v1126 = vunpack.c.l.b16 %v305
      %v1127 = vunpack.c.l.b16 %v306
      %v1128 = vunpack.c.l.b16 %v307
      %v1129 = vunpack.c.l.b16 %v308
      %v1130 = vunpack.c.l.b16 %v309
      %v1131 = vunpack.c.l.b16 %v310
      %v1132 = vunpack.c.l.b16 %v311
      %v1133 = vunpack.c.l.b16 %v312
      %v1134 = vunpack.c.l.b16 %v313
      %v1135 = vunpack.c.l.b16 %v314
      %v1136 = vunpack.c.l.b16 %v315
      %v1137 = vunpack.c.l.b16 %v316
      %v1138 = vpack.c.b16 %v1123, %v1122
      %v1139 = vpack.c.b16 %v1125, %v1124
      %v1140 = vpack.c.b16 %v1127, %v1126
      %v1141 = vpack.c.b16 %v1129, %v1128
      %v1142 = vpack.c.b16 %v1131, %v1130
      %v1143 = vpack.c.b16 %v1133, %v1132
      %v1144 = vpack.c.b16 %v1135, %v1134
      %v1145 = vpack.c.b16 %v1137, %v1136
      %1154 = vmatprep.subr.bf16.mxu0 0
      %1155 = vmatpush1.bf16.msra.mxu0 %v1145
      %1156 = vmatprep.subr.bf16.mxu0 0
      %1157 = vmatpush1.bf16.msra.mxu0 %v1144
      %1158 = vmatprep.subr.bf16.mxu0 0
      %1159 = vmatpush1.bf16.msra.mxu0 %v1143
      %1160 = vmatprep.subr.bf16.mxu0 0
      %1161 = vmatpush1.bf16.msra.mxu0 %v1142
      %1162 = vmatprep.subr.bf16.mxu0 0
      %1163 = vmatpush1.bf16.msra.mxu0 %v1141
      %1164 = vmatprep.subr.bf16.mxu0 0
      %1165 = vmatpush1.bf16.msra.mxu0 %v1140
      %1166 = vmatprep.subr.bf16.mxu0 0
      %1167 = vmatpush1.bf16.msra.mxu0 %v1139
      %1168 = vmatprep.subr.bf16.mxu0 0
      %1169 = vmatpush1.bf16.msra.mxu0 %v1138
      %1170 = vmatprep.subr.bf16.mxu0 0
      %1171 = vmatpush2.bf16.msra.mxu0 0
      %1172 = vmatprep.subr.bf16.mxu0 0
      %1173 = vmatpush2.bf16.msra.mxu0 0
      %1174 = vmatprep.subr.bf16.mxu0 0
      %1175 = vmatpush2.bf16.msra.mxu0 0
      %1176 = vmatprep.subr.bf16.mxu0 0
      %1177 = vmatpush2.bf16.msra.mxu0 0
      %1178 = vmatprep.subr.bf16.mxu0 0
      %1179 = vmatpush2.bf16.msra.mxu0 0
      %1180 = vmatprep.subr.bf16.mxu0 0
      %1181 = vmatpush2.bf16.msra.mxu0 0
      %1182 = vmatprep.subr.bf16.mxu0 0
      %1183 = vmatpush2.bf16.msra.mxu0 0
      %1184 = vmatprep.subr.bf16.mxu0 0
      %1185 = vmatpush2.bf16.msra.mxu0 0
      %1186 = vmatprep.mubr.bf16.mxu0 0
      %1187 = vmatmul.mubr.bf16.gmra.mxu0 %v1074
      %v1188 = vpop.f32.mrf.mxu0
      %v1189 = vadd.f32 %v884, %v1188
      %v1190 = vpop.f32.mrf.mxu0
      %v1191 = vpop.f32.mrf.mxu0
      %v1192 = vadd.f32 %v887, %v1191
      %v1193 = vpop.f32.mrf.mxu0
      %1194 = vmatprep.mubr.bf16.mxu0 0
      %1195 = vmatmul.mubr.bf16.gmra.mxu0 %v1075
      %v1196 = vpop.f32.mrf.mxu0
      %v1197 = vadd.f32 %v892, %v1196
      %v1198 = vpop.f32.mrf.mxu0
      %v1199 = vpop.f32.mrf.mxu0
      %v1200 = vadd.f32 %v895, %v1199
      %v1201 = vpop.f32.mrf.mxu0
      %1202 = vmatprep.mubr.bf16.mxu0 0
      %1203 = vmatmul.mubr.bf16.gmra.mxu0 %v1076
      %v1204 = vpop.f32.mrf.mxu0
      %v1205 = vadd.f32 %v900, %v1204
      %v1206 = vpop.f32.mrf.mxu0
      %v1207 = vpop.f32.mrf.mxu0
      %v1208 = vadd.f32 %v903, %v1207
      %v1209 = vpop.f32.mrf.mxu0
      %1210 = vmatprep.mubr.bf16.mxu0 0
      %1211 = vmatmul.mubr.bf16.gmra.mxu0 %v1077
      %v1212 = vpop.f32.mrf.mxu0
      %v1213 = vadd.f32 %v908, %v1212
      %v1214 = vpop.f32.mrf.mxu0
      %v1215 = vpop.f32.mrf.mxu0
      %v1216 = vadd.f32 %v911, %v1215
      %v1217 = vpop.f32.mrf.mxu0
      %1218 = vmatprep.mubr.bf16.mxu0 0
      %1219 = vmatmul.mubr.bf16.gmra.mxu0 %v1078
      %v1220 = vpop.f32.mrf.mxu0
      %v1221 = vadd.f32 %v916, %v1220
      %v1222 = vpop.f32.mrf.mxu0
      %v1223 = vpop.f32.mrf.mxu0
      %v1224 = vadd.f32 %v919, %v1223
      %v1225 = vpop.f32.mrf.mxu0
      %1226 = vmatprep.mubr.bf16.mxu0 0
      %1227 = vmatmul.mubr.bf16.gmra.mxu0 %v1079
      %v1228 = vpop.f32.mrf.mxu0
      %v1229 = vadd.f32 %v924, %v1228
      %v1230 = vpop.f32.mrf.mxu0
      %v1231 = vpop.f32.mrf.mxu0
      %v1232 = vadd.f32 %v927, %v1231
      %v1233 = vpop.f32.mrf.mxu0
      %1234 = vmatprep.mubr.bf16.mxu0 0
      %1235 = vmatmul.mubr.bf16.gmra.mxu0 %v1080
      %v1236 = vpop.f32.mrf.mxu0
      %v1237 = vadd.f32 %v932, %v1236
      %v1238 = vpop.f32.mrf.mxu0
      %v1239 = vpop.f32.mrf.mxu0
      %v1240 = vadd.f32 %v935, %v1239
      %v1241 = vpop.f32.mrf.mxu0
      %1242 = vmatprep.mubr.bf16.mxu0 0
      %1243 = vmatmul.mubr.bf16.gmra.mxu0 %v1081
      %v1244 = vpop.f32.mrf.mxu0
      %v1245 = vadd.f32 %v940, %v1244
      %v1246 = vpop.f32.mrf.mxu0
      %v1247 = vpop.f32.mrf.mxu0
      %v1248 = vadd.f32 %v943, %v1247
      %v1249 = vpop.f32.mrf.mxu0
      %1250 = vmatprep.mubr.bf16.mxu0 0
      %1251 = vmatmul.mubr.bf16.gmra.mxu0 %v1082
      %v1252 = vpop.f32.mrf.mxu0
      %v1253 = vadd.f32 %v948, %v1252
      %v1254 = vpop.f32.mrf.mxu0
      %v1255 = vpop.f32.mrf.mxu0
      %v1256 = vadd.f32 %v951, %v1255
      %v1257 = vpop.f32.mrf.mxu0
      %1258 = vmatprep.mubr.bf16.mxu0 0
      %1259 = vmatmul.mubr.bf16.gmra.mxu0 %v1083
      %v1260 = vpop.f32.mrf.mxu0
      %v1261 = vadd.f32 %v956, %v1260
      %v1262 = vpop.f32.mrf.mxu0
      %v1263 = vpop.f32.mrf.mxu0
      %v1264 = vadd.f32 %v959, %v1263
      %v1265 = vpop.f32.mrf.mxu0
      %1266 = vmatprep.mubr.bf16.mxu0 0
      %1267 = vmatmul.mubr.bf16.gmra.mxu0 %v1084
      %v1268 = vpop.f32.mrf.mxu0
      %v1269 = vadd.f32 %v964, %v1268
      %v1270 = vpop.f32.mrf.mxu0
      %v1271 = vpop.f32.mrf.mxu0
      %v1272 = vadd.f32 %v967, %v1271
      %v1273 = vpop.f32.mrf.mxu0
      %1274 = vmatprep.mubr.bf16.mxu0 0
      %1275 = vmatmul.mubr.bf16.gmra.mxu0 %v1085
      %v1276 = vpop.f32.mrf.mxu0
      %v1277 = vadd.f32 %v972, %v1276
      %v1278 = vpop.f32.mrf.mxu0
      %v1279 = vpop.f32.mrf.mxu0
      %v1280 = vadd.f32 %v975, %v1279
      %v1281 = vpop.f32.mrf.mxu0
      %1282 = vmatprep.mubr.bf16.mxu0 0
      %1283 = vmatmul.mubr.bf16.gmra.mxu0 %v1086
      %v1284 = vpop.f32.mrf.mxu0
      %v1285 = vadd.f32 %v980, %v1284
      %v1286 = vpop.f32.mrf.mxu0
      %v1287 = vpop.f32.mrf.mxu0
      %v1288 = vadd.f32 %v983, %v1287
      %v1289 = vpop.f32.mrf.mxu0
      %1290 = vmatprep.mubr.bf16.mxu0 0
      %1291 = vmatmul.mubr.bf16.gmra.mxu0 %v1087
      %v1292 = vpop.f32.mrf.mxu0
      %v1293 = vadd.f32 %v988, %v1292
      %v1294 = vpop.f32.mrf.mxu0
      %v1295 = vpop.f32.mrf.mxu0
      %v1296 = vadd.f32 %v991, %v1295
      %v1297 = vpop.f32.mrf.mxu0
      %1298 = vmatprep.mubr.bf16.mxu0 0
      %1299 = vmatmul.mubr.bf16.gmra.mxu0 %v1088
      %v1300 = vpop.f32.mrf.mxu0
      %v1301 = vadd.f32 %v996, %v1300
      %v1302 = vpop.f32.mrf.mxu0
      %v1303 = vpop.f32.mrf.mxu0
      %v1304 = vadd.f32 %v999, %v1303
      %v1305 = vpop.f32.mrf.mxu0
      %1306 = vmatprep.mubr.bf16.mxu0 0
      %1307 = vmatmul.mubr.bf16.gmra.mxu0 %v1089
      %v1308 = vpop.f32.mrf.mxu0
      %v1309 = vadd.f32 %v1004, %v1308
      %v1310 = vpop.f32.mrf.mxu0
      %v1311 = vpop.f32.mrf.mxu0
      %v1312 = vadd.f32 %v1007, %v1311
      %v1313 = vpop.f32.mrf.mxu0
      %1314 = vdwg.mxu0
      %v1315 = vld [vmem:[%s243] sm:$0xe]
      %v1316 = vld [vmem:[%s243 + $0xc] sm:$0xe]
      %v1317 = vld [vmem:[%s243 + $0x18] sm:$0xe]
      %v1318 = vld [vmem:[%s243 + $0x24] sm:$0xe]
      %v1319 = vld [vmem:[%s243 + $0x30] sm:$0xe]
      %v1320 = vld [vmem:[%s243 + $0x3c] sm:$0xe]
      %v1321 = vld [vmem:[%s243 + $0x48] sm:$0xe]
      %v1322 = vld [vmem:[%s243 + $0x54] sm:$0xe]
      %v1323 = vld [vmem:[%s243 + $0x60] sm:$0xe]
      %v1324 = vld [vmem:[%s243 + $0x6c] sm:$0xe]
      %v1325 = vld [vmem:[%s243 + $0x78] sm:$0xe]
      %v1326 = vld [vmem:[%s243 + $0x84] sm:$0xe]
      %v1327 = vld [vmem:[%s243 + $0x90] sm:$0xe]
      %v1328 = vld [vmem:[%s243 + $0x9c] sm:$0xe]
      %v1329 = vld [vmem:[%s243 + $0xa8] sm:$0xe]
      %v1330 = vld [vmem:[%s243 + $0xb4] sm:$0xe]
      %vm1363 = vcmask 1042432
      %vm1364 = vcmask 1046532
      %vm1365 = vmor %vm1363, %vm1364
      %v1366 = vrot.slane %v1315, 5
      %v1367 = vrot.slane %v1366, 4
      %v1368 = vrot.slane %v270, 5
      %v1369 = vsel %vm1365, %v1367, %v1368
      %v1370 = vrot.slane %v1368, 4
      %v1371 = vrot.slane %v317, 5
      %v1372 = vsel %vm1365, %v1370, %v1371
      %v1373 = vrot.slane %v1316, 5
      %v1374 = vrot.slane %v1373, 4
      %v1375 = vrot.slane %v272, 5
      %v1376 = vsel %vm1365, %v1374, %v1375
      %v1377 = vrot.slane %v1375, 4
      %v1378 = vrot.slane %v318, 5
      %v1379 = vsel %vm1365, %v1377, %v1378
      %v1380 = vrot.slane %v1317, 5
      %v1381 = vrot.slane %v1380, 4
      %v1382 = vrot.slane %v274, 5
      %v1383 = vsel %vm1365, %v1381, %v1382
      %v1384 = vrot.slane %v1382, 4
      %v1385 = vrot.slane %v319, 5
      %v1386 = vsel %vm1365, %v1384, %v1385
      %v1387 = vrot.slane %v1318, 5
      %v1388 = vrot.slane %v1387, 4
      %v1389 = vrot.slane %v276, 5
      %v1390 = vsel %vm1365, %v1388, %v1389
      %v1391 = vrot.slane %v1389, 4
      %v1392 = vrot.slane %v320, 5
      %v1393 = vsel %vm1365, %v1391, %v1392
      %v1394 = vrot.slane %v1319, 5
      %v1395 = vrot.slane %v1394, 4
      %v1396 = vrot.slane %v278, 5
      %v1397 = vsel %vm1365, %v1395, %v1396
      %v1398 = vrot.slane %v1396, 4
      %v1399 = vrot.slane %v321, 5
      %v1400 = vsel %vm1365, %v1398, %v1399
      %v1401 = vrot.slane %v1320, 5
      %v1402 = vrot.slane %v1401, 4
      %v1403 = vrot.slane %v280, 5
      %v1404 = vsel %vm1365, %v1402, %v1403
      %v1405 = vrot.slane %v1403, 4
      %v1406 = vrot.slane %v322, 5
      %v1407 = vsel %vm1365, %v1405, %v1406
      %v1408 = vrot.slane %v1321, 5
      %v1409 = vrot.slane %v1408, 4
      %v1410 = vrot.slane %v282, 5
      %v1411 = vsel %vm1365, %v1409, %v1410
      %v1412 = vrot.slane %v1410, 4
      %v1413 = vrot.slane %v323, 5
      %v1414 = vsel %vm1365, %v1412, %v1413
      %v1415 = vrot.slane %v1322, 5
      %v1416 = vrot.slane %v1415, 4
      %v1417 = vrot.slane %v284, 5
      %v1418 = vsel %vm1365, %v1416, %v1417
      %v1419 = vrot.slane %v1417, 4
      %v1420 = vrot.slane %v324, 5
      %v1421 = vsel %vm1365, %v1419, %v1420
      %v1422 = vrot.slane %v1323, 5
      %v1423 = vrot.slane %v1422, 4
      %v1424 = vrot.slane %v286, 5
      %v1425 = vsel %vm1365, %v1423, %v1424
      %v1426 = vrot.slane %v1424, 4
      %v1427 = vrot.slane %v325, 5
      %v1428 = vsel %vm1365, %v1426, %v1427
      %v1429 = vrot.slane %v1324, 5
      %v1430 = vrot.slane %v1429, 4
      %v1431 = vrot.slane %v288, 5
      %v1432 = vsel %vm1365, %v1430, %v1431
      %v1433 = vrot.slane %v1431, 4
      %v1434 = vrot.slane %v326, 5
      %v1435 = vsel %vm1365, %v1433, %v1434
      %v1436 = vrot.slane %v1325, 5
      %v1437 = vrot.slane %v1436, 4
      %v1438 = vrot.slane %v290, 5
      %v1439 = vsel %vm1365, %v1437, %v1438
      %v1440 = vrot.slane %v1438, 4
      %v1441 = vrot.slane %v327, 5
      %v1442 = vsel %vm1365, %v1440, %v1441
      %v1443 = vrot.slane %v1326, 5
      %v1444 = vrot.slane %v1443, 4
      %v1445 = vrot.slane %v292, 5
      %v1446 = vsel %vm1365, %v1444, %v1445
      %v1447 = vrot.slane %v1445, 4
      %v1448 = vrot.slane %v328, 5
      %v1449 = vsel %vm1365, %v1447, %v1448
      %v1450 = vrot.slane %v1327, 5
      %v1451 = vrot.slane %v1450, 4
      %v1452 = vrot.slane %v294, 5
      %v1453 = vsel %vm1365, %v1451, %v1452
      %v1454 = vrot.slane %v1452, 4
      %v1455 = vrot.slane %v329, 5
      %v1456 = vsel %vm1365, %v1454, %v1455
      %v1457 = vrot.slane %v1328, 5
      %v1458 = vrot.slane %v1457, 4
      %v1459 = vrot.slane %v296, 5
      %v1460 = vsel %vm1365, %v1458, %v1459
      %v1461 = vrot.slane %v1459, 4
      %v1462 = vrot.slane %v330, 5
      %v1463 = vsel %vm1365, %v1461, %v1462
      %v1464 = vrot.slane %v1329, 5
      %v1465 = vrot.slane %v1464, 4
      %v1466 = vrot.slane %v298, 5
      %v1467 = vsel %vm1365, %v1465, %v1466
      %v1468 = vrot.slane %v1466, 4
      %v1469 = vrot.slane %v331, 5
      %v1470 = vsel %vm1365, %v1468, %v1469
      %v1471 = vrot.slane %v1330, 5
      %v1472 = vrot.slane %v1471, 4
      %v1473 = vrot.slane %v300, 5
      %v1474 = vsel %vm1365, %v1472, %v1473
      %v1475 = vrot.slane %v1473, 4
      %v1476 = vrot.slane %v332, 5
      %v1477 = vsel %vm1365, %v1475, %v1476
      %s1478 = scalar_lea.vmem %s247, 128
      %v1479 = vld [vmem:[%s1478] sm:$0xf]
      %v1480 = vld [vmem:[%s1478 + $0x4] sm:$0xf]
      %v1481 = vld [vmem:[%s1478 + $0x8] sm:$0xf]
      %v1482 = vld [vmem:[%s1478 + $0xc] sm:$0xf]
      %v1483 = vld [vmem:[%s1478 + $0x10] sm:$0xf]
      %v1484 = vld [vmem:[%s1478 + $0x14] sm:$0xf]
      %v1485 = vld [vmem:[%s1478 + $0x18] sm:$0xf]
      %v1486 = vld [vmem:[%s1478 + $0x1c] sm:$0xf]
      %v1487 = vld [vmem:[%s1478 + $0x20] sm:$0xf]
      %v1488 = vld [vmem:[%s1478 + $0x24] sm:$0xf]
      %v1489 = vld [vmem:[%s1478 + $0x28] sm:$0xf]
      %v1490 = vld [vmem:[%s1478 + $0x2c] sm:$0xf]
      %v1491 = vld [vmem:[%s1478 + $0x30] sm:$0xf]
      %v1492 = vld [vmem:[%s1478 + $0x34] sm:$0xf]
      %v1493 = vld [vmem:[%s1478 + $0x38] sm:$0xf]
      %v1494 = vld [vmem:[%s1478 + $0x3c] sm:$0xf]
      %v1495 = vunpack.c.l.b16 %v1369
      %v1496 = vunpack.c.l.b16 %v1372
      %v1497 = vunpack.c.l.b16 %v1376
      %v1498 = vunpack.c.l.b16 %v1379
      %v1499 = vunpack.c.l.b16 %v1383
      %v1500 = vunpack.c.l.b16 %v1386
      %v1501 = vunpack.c.l.b16 %v1390
      %v1502 = vunpack.c.l.b16 %v1393
      %v1503 = vunpack.c.l.b16 %v1397
      %v1504 = vunpack.c.l.b16 %v1400
      %v1505 = vunpack.c.l.b16 %v1404
      %v1506 = vunpack.c.l.b16 %v1407
      %v1507 = vunpack.c.l.b16 %v1411
      %v1508 = vunpack.c.l.b16 %v1414
      %v1509 = vunpack.c.l.b16 %v1418
      %v1510 = vunpack.c.l.b16 %v1421
      %v1511 = vunpack.c.l.b16 %v1425
      %v1512 = vunpack.c.l.b16 %v1428
      %v1513 = vunpack.c.l.b16 %v1432
      %v1514 = vunpack.c.l.b16 %v1435
      %v1515 = vunpack.c.l.b16 %v1439
      %v1516 = vunpack.c.l.b16 %v1442
      %v1517 = vunpack.c.l.b16 %v1446
      %v1518 = vunpack.c.l.b16 %v1449
      %v1519 = vunpack.c.l.b16 %v1453
      %v1520 = vunpack.c.l.b16 %v1456
      %v1521 = vunpack.c.l.b16 %v1460
      %v1522 = vunpack.c.l.b16 %v1463
      %v1523 = vunpack.c.l.b16 %v1467
      %v1524 = vunpack.c.l.b16 %v1470
      %v1525 = vunpack.c.l.b16 %v1474
      %v1526 = vunpack.c.l.b16 %v1477
      %v1527 = vpack.c.b16 %v1496, %v1495
      %v1528 = vpack.c.b16 %v1498, %v1497
      %v1529 = vpack.c.b16 %v1500, %v1499
      %v1530 = vpack.c.b16 %v1502, %v1501
      %v1531 = vpack.c.b16 %v1504, %v1503
      %v1532 = vpack.c.b16 %v1506, %v1505
      %v1533 = vpack.c.b16 %v1508, %v1507
      %v1534 = vpack.c.b16 %v1510, %v1509
      %v1535 = vpack.c.b16 %v1512, %v1511
      %v1536 = vpack.c.b16 %v1514, %v1513
      %v1537 = vpack.c.b16 %v1516, %v1515
      %v1538 = vpack.c.b16 %v1518, %v1517
      %v1539 = vpack.c.b16 %v1520, %v1519
      %v1540 = vpack.c.b16 %v1522, %v1521
      %v1541 = vpack.c.b16 %v1524, %v1523
      %v1542 = vpack.c.b16 %v1526, %v1525
      %v1575 = vunpack.c.l.b16 %v1479
      %v1576 = vunpack.c.l.b16 %v1480
      %v1577 = vunpack.c.l.b16 %v1481
      %v1578 = vunpack.c.l.b16 %v1482
      %v1579 = vunpack.c.l.b16 %v1483
      %v1580 = vunpack.c.l.b16 %v1484
      %v1581 = vunpack.c.l.b16 %v1485
      %v1582 = vunpack.c.l.b16 %v1486
      %v1583 = vunpack.c.l.b16 %v1487
      %v1584 = vunpack.c.l.b16 %v1488
      %v1585 = vunpack.c.l.b16 %v1489
      %v1586 = vunpack.c.l.b16 %v1490
      %v1587 = vunpack.c.l.b16 %v1491
      %v1588 = vunpack.c.l.b16 %v1492
      %v1589 = vunpack.c.l.b16 %v1493
      %v1590 = vunpack.c.l.b16 %v1494
      %v1591 = vpack.c.b16 %v1576, %v1575
      %v1592 = vpack.c.b16 %v1578, %v1577
      %v1593 = vpack.c.b16 %v1580, %v1579
      %v1594 = vpack.c.b16 %v1582, %v1581
      %v1595 = vpack.c.b16 %v1584, %v1583
      %v1596 = vpack.c.b16 %v1586, %v1585
      %v1597 = vpack.c.b16 %v1588, %v1587
      %v1598 = vpack.c.b16 %v1590, %v1589
      %1607 = vmatprep.subr.bf16.mxu0 0
      %1608 = vmatpush1.bf16.msra.mxu0 %v1598
      %1609 = vmatprep.subr.bf16.mxu0 0
      %1610 = vmatpush1.bf16.msra.mxu0 %v1597
      %1611 = vmatprep.subr.bf16.mxu0 0
      %1612 = vmatpush1.bf16.msra.mxu0 %v1596
      %1613 = vmatprep.subr.bf16.mxu0 0
      %1614 = vmatpush1.bf16.msra.mxu0 %v1595
      %1615 = vmatprep.subr.bf16.mxu0 0
      %1616 = vmatpush1.bf16.msra.mxu0 %v1594
      %1617 = vmatprep.subr.bf16.mxu0 0
      %1618 = vmatpush1.bf16.msra.mxu0 %v1593
      %1619 = vmatprep.subr.bf16.mxu0 0
      %1620 = vmatpush1.bf16.msra.mxu0 %v1592
      %1621 = vmatprep.subr.bf16.mxu0 0
      %1622 = vmatpush1.bf16.msra.mxu0 %v1591
      %1623 = vmatprep.subr.bf16.mxu0 0
      %1624 = vmatpush2.bf16.msra.mxu0 0
      %1625 = vmatprep.subr.bf16.mxu0 0
      %1626 = vmatpush2.bf16.msra.mxu0 0
      %1627 = vmatprep.subr.bf16.mxu0 0
      %1628 = vmatpush2.bf16.msra.mxu0 0
      %1629 = vmatprep.subr.bf16.mxu0 0
      %1630 = vmatpush2.bf16.msra.mxu0 0
      %1631 = vmatprep.subr.bf16.mxu0 0
      %1632 = vmatpush2.bf16.msra.mxu0 0
      %1633 = vmatprep.subr.bf16.mxu0 0
      %1634 = vmatpush2.bf16.msra.mxu0 0
      %1635 = vmatprep.subr.bf16.mxu0 0
      %1636 = vmatpush2.bf16.msra.mxu0 0
      %1637 = vmatprep.subr.bf16.mxu0 0
      %1638 = vmatpush2.bf16.msra.mxu0 0
      %1639 = vmatprep.mubr.bf16.mxu0 0
      %1640 = vmatmul.mubr.bf16.gmra.mxu0 %v1527
      %v1641 = vpop.f32.mrf.mxu0
      %v1642 = vadd.f32 0.0, %v1641
      %v1643 = vpop.f32.mrf.mxu0
      %v1644 = vpop.f32.mrf.mxu0
      %v1645 = vadd.f32 0.0, %v1644
      %v1646 = vpop.f32.mrf.mxu0
      %1647 = vmatprep.mubr.bf16.mxu0 0
      %1648 = vmatmul.mubr.bf16.gmra.mxu0 %v1528
      %v1649 = vpop.f32.mrf.mxu0
      %v1650 = vadd.f32 0.0, %v1649
      %v1651 = vpop.f32.mrf.mxu0
      %v1652 = vpop.f32.mrf.mxu0
      %v1653 = vadd.f32 0.0, %v1652
      %v1654 = vpop.f32.mrf.mxu0
      %1655 = vmatprep.mubr.bf16.mxu0 0
      %1656 = vmatmul.mubr.bf16.gmra.mxu0 %v1529
      %v1657 = vpop.f32.mrf.mxu0
      %v1658 = vadd.f32 0.0, %v1657
      %v1659 = vpop.f32.mrf.mxu0
      %v1660 = vpop.f32.mrf.mxu0
      %v1661 = vadd.f32 0.0, %v1660
      %v1662 = vpop.f32.mrf.mxu0
      %1663 = vmatprep.mubr.bf16.mxu0 0
      %1664 = vmatmul.mubr.bf16.gmra.mxu0 %v1530
      %v1665 = vpop.f32.mrf.mxu0
      %v1666 = vadd.f32 0.0, %v1665
      %v1667 = vpop.f32.mrf.mxu0
      %v1668 = vpop.f32.mrf.mxu0
      %v1669 = vadd.f32 0.0, %v1668
      %v1670 = vpop.f32.mrf.mxu0
      %1671 = vmatprep.mubr.bf16.mxu0 0
      %1672 = vmatmul.mubr.bf16.gmra.mxu0 %v1531
      %v1673 = vpop.f32.mrf.mxu0
      %v1674 = vadd.f32 0.0, %v1673
      %v1675 = vpop.f32.mrf.mxu0
      %v1676 = vpop.f32.mrf.mxu0
      %v1677 = vadd.f32 0.0, %v1676
      %v1678 = vpop.f32.mrf.mxu0
      %1679 = vmatprep.mubr.bf16.mxu0 0
      %1680 = vmatmul.mubr.bf16.gmra.mxu0 %v1532
      %v1681 = vpop.f32.mrf.mxu0
      %v1682 = vadd.f32 0.0, %v1681
      %v1683 = vpop.f32.mrf.mxu0
      %v1684 = vpop.f32.mrf.mxu0
      %v1685 = vadd.f32 0.0, %v1684
      %v1686 = vpop.f32.mrf.mxu0
      %1687 = vmatprep.mubr.bf16.mxu0 0
      %1688 = vmatmul.mubr.bf16.gmra.mxu0 %v1533
      %v1689 = vpop.f32.mrf.mxu0
      %v1690 = vadd.f32 0.0, %v1689
      %v1691 = vpop.f32.mrf.mxu0
      %v1692 = vpop.f32.mrf.mxu0
      %v1693 = vadd.f32 0.0, %v1692
      %v1694 = vpop.f32.mrf.mxu0
      %1695 = vmatprep.mubr.bf16.mxu0 0
      %1696 = vmatmul.mubr.bf16.gmra.mxu0 %v1534
      %v1697 = vpop.f32.mrf.mxu0
      %v1698 = vadd.f32 0.0, %v1697
      %v1699 = vpop.f32.mrf.mxu0
      %v1700 = vpop.f32.mrf.mxu0
      %v1701 = vadd.f32 0.0, %v1700
      %v1702 = vpop.f32.mrf.mxu0
      %1703 = vmatprep.mubr.bf16.mxu0 0
      %1704 = vmatmul.mubr.bf16.gmra.mxu0 %v1535
      %v1705 = vpop.f32.mrf.mxu0
      %v1706 = vadd.f32 0.0, %v1705
      %v1707 = vpop.f32.mrf.mxu0
      %v1708 = vpop.f32.mrf.mxu0
      %v1709 = vadd.f32 0.0, %v1708
      %v1710 = vpop.f32.mrf.mxu0
      %1711 = vmatprep.mubr.bf16.mxu0 0
      %1712 = vmatmul.mubr.bf16.gmra.mxu0 %v1536
      %v1713 = vpop.f32.mrf.mxu0
      %v1714 = vadd.f32 0.0, %v1713
      %v1715 = vpop.f32.mrf.mxu0
      %v1716 = vpop.f32.mrf.mxu0
      %v1717 = vadd.f32 0.0, %v1716
      %v1718 = vpop.f32.mrf.mxu0
      %1719 = vmatprep.mubr.bf16.mxu0 0
      %1720 = vmatmul.mubr.bf16.gmra.mxu0 %v1537
      %v1721 = vpop.f32.mrf.mxu0
      %v1722 = vadd.f32 0.0, %v1721
      %v1723 = vpop.f32.mrf.mxu0
      %v1724 = vpop.f32.mrf.mxu0
      %v1725 = vadd.f32 0.0, %v1724
      %v1726 = vpop.f32.mrf.mxu0
      %1727 = vmatprep.mubr.bf16.mxu0 0
      %1728 = vmatmul.mubr.bf16.gmra.mxu0 %v1538
      %v1729 = vpop.f32.mrf.mxu0
      %v1730 = vadd.f32 0.0, %v1729
      %v1731 = vpop.f32.mrf.mxu0
      %v1732 = vpop.f32.mrf.mxu0
      %v1733 = vadd.f32 0.0, %v1732
      %v1734 = vpop.f32.mrf.mxu0
      %1735 = vmatprep.mubr.bf16.mxu0 0
      %1736 = vmatmul.mubr.bf16.gmra.mxu0 %v1539
      %v1737 = vpop.f32.mrf.mxu0
      %v1738 = vadd.f32 0.0, %v1737
      %v1739 = vpop.f32.mrf.mxu0
      %v1740 = vpop.f32.mrf.mxu0
      %v1741 = vadd.f32 0.0, %v1740
      %v1742 = vpop.f32.mrf.mxu0
      %1743 = vmatprep.mubr.bf16.mxu0 0
      %1744 = vmatmul.mubr.bf16.gmra.mxu0 %v1540
      %v1745 = vpop.f32.mrf.mxu0
      %v1746 = vadd.f32 0.0, %v1745
      %v1747 = vpop.f32.mrf.mxu0
      %v1748 = vpop.f32.mrf.mxu0
      %v1749 = vadd.f32 0.0, %v1748
      %v1750 = vpop.f32.mrf.mxu0
      %1751 = vmatprep.mubr.bf16.mxu0 0
      %1752 = vmatmul.mubr.bf16.gmra.mxu0 %v1541
      %v1753 = vpop.f32.mrf.mxu0
      %v1754 = vadd.f32 0.0, %v1753
      %v1755 = vpop.f32.mrf.mxu0
      %v1756 = vpop.f32.mrf.mxu0
      %v1757 = vadd.f32 0.0, %v1756
      %v1758 = vpop.f32.mrf.mxu0
      %1759 = vmatprep.mubr.bf16.mxu0 0
      %1760 = vmatmul.mubr.bf16.gmra.mxu0 %v1542
      %v1761 = vpop.f32.mrf.mxu0
      %v1762 = vadd.f32 0.0, %v1761
      %v1763 = vpop.f32.mrf.mxu0
      %v1764 = vpop.f32.mrf.mxu0
      %v1765 = vadd.f32 0.0, %v1764
      %v1766 = vpop.f32.mrf.mxu0
      %1767 = vdwg.mxu0
      %v1768 = vadd.f32 %v1189, %v1642
      %v1769 = vadd.f32 %v1192, %v1645
      %v1770 = vadd.f32 %v1197, %v1650
      %v1771 = vadd.f32 %v1200, %v1653
      %v1772 = vadd.f32 %v1205, %v1658
      %v1773 = vadd.f32 %v1208, %v1661
      %v1774 = vadd.f32 %v1213, %v1666
      %v1775 = vadd.f32 %v1216, %v1669
      %v1776 = vadd.f32 %v1221, %v1674
      %v1777 = vadd.f32 %v1224, %v1677
      %v1778 = vadd.f32 %v1229, %v1682
      %v1779 = vadd.f32 %v1232, %v1685
      %v1780 = vadd.f32 %v1237, %v1690
      %v1781 = vadd.f32 %v1240, %v1693
      %v1782 = vadd.f32 %v1245, %v1698
      %v1783 = vadd.f32 %v1248, %v1701
      %v1784 = vadd.f32 %v1253, %v1706
      %v1785 = vadd.f32 %v1256, %v1709
      %v1786 = vadd.f32 %v1261, %v1714
      %v1787 = vadd.f32 %v1264, %v1717
      %v1788 = vadd.f32 %v1269, %v1722
      %v1789 = vadd.f32 %v1272, %v1725
      %v1790 = vadd.f32 %v1277, %v1730
      %v1791 = vadd.f32 %v1280, %v1733
      %v1792 = vadd.f32 %v1285, %v1738
      %v1793 = vadd.f32 %v1288, %v1741
      %v1794 = vadd.f32 %v1293, %v1746
      %v1795 = vadd.f32 %v1296, %v1749
      %v1796 = vadd.f32 %v1301, %v1754
      %v1797 = vadd.f32 %v1304, %v1757
      %v1798 = vadd.f32 %v1309, %v1762
      %v1799 = vadd.f32 %v1312, %v1765
      %s1800 = scalar_lea.vmem %s243, 12
      %v1801 = vld [vmem:[%s1800] sm:$0xf]
      %v1802 = vld [vmem:[%s1800 + $0x4] sm:$0xf]
      %v1803 = vld [vmem:[%s1800 + $0xc] sm:$0xf]
      %v1804 = vld [vmem:[%s1800 + $0x10] sm:$0xf]
      %v1805 = vld [vmem:[%s1800 + $0x18] sm:$0xf]
      %v1806 = vld [vmem:[%s1800 + $0x1c] sm:$0xf]
      %v1807 = vld [vmem:[%s1800 + $0x24] sm:$0xf]
      %v1808 = vld [vmem:[%s1800 + $0x28] sm:$0xf]
      %v1809 = vld [vmem:[%s1800 + $0x30] sm:$0xf]
      %v1810 = vld [vmem:[%s1800 + $0x34] sm:$0xf]
      %v1811 = vld [vmem:[%s1800 + $0x3c] sm:$0xf]
      %v1812 = vld [vmem:[%s1800 + $0x40] sm:$0xf]
      %v1813 = vld [vmem:[%s1800 + $0x48] sm:$0xf]
      %v1814 = vld [vmem:[%s1800 + $0x4c] sm:$0xf]
      %v1815 = vld [vmem:[%s1800 + $0x54] sm:$0xf]
      %v1816 = vld [vmem:[%s1800 + $0x58] sm:$0xf]
      %v1817 = vld [vmem:[%s1800 + $0x60] sm:$0xf]
      %v1818 = vld [vmem:[%s1800 + $0x64] sm:$0xf]
      %v1819 = vld [vmem:[%s1800 + $0x6c] sm:$0xf]
      %v1820 = vld [vmem:[%s1800 + $0x70] sm:$0xf]
      %v1821 = vld [vmem:[%s1800 + $0x78] sm:$0xf]
      %v1822 = vld [vmem:[%s1800 + $0x7c] sm:$0xf]
      %v1823 = vld [vmem:[%s1800 + $0x84] sm:$0xf]
      %v1824 = vld [vmem:[%s1800 + $0x88] sm:$0xf]
      %v1825 = vld [vmem:[%s1800 + $0x90] sm:$0xf]
      %v1826 = vld [vmem:[%s1800 + $0x94] sm:$0xf]
      %v1827 = vld [vmem:[%s1800 + $0x9c] sm:$0xf]
      %v1828 = vld [vmem:[%s1800 + $0xa0] sm:$0xf]
      %v1829 = vld [vmem:[%s1800 + $0xa8] sm:$0xf]
      %v1830 = vld [vmem:[%s1800 + $0xac] sm:$0xf]
      %v1831 = vld [vmem:[%s1800 + $0xb4] sm:$0xf]
      %v1832 = vld [vmem:[%s1800 + $0xb8] sm:$0xf]
      %s1833 = scalar_lea.vmem %s247, 192
      %v1834 = vld [vmem:[%s1833] sm:$0xf]
      %v1835 = vld [vmem:[%s1833 + $0x4] sm:$0xf]
      %v1836 = vld [vmem:[%s1833 + $0x8] sm:$0xf]
      %v1837 = vld [vmem:[%s1833 + $0xc] sm:$0xf]
      %v1838 = vld [vmem:[%s1833 + $0x10] sm:$0xf]
      %v1839 = vld [vmem:[%s1833 + $0x14] sm:$0xf]
      %v1840 = vld [vmem:[%s1833 + $0x18] sm:$0xf]
      %v1841 = vld [vmem:[%s1833 + $0x1c] sm:$0xf]
      %v1842 = vld [vmem:[%s1833 + $0x20] sm:$0xf]
      %v1843 = vld [vmem:[%s1833 + $0x24] sm:$0xf]
      %v1844 = vld [vmem:[%s1833 + $0x28] sm:$0xf]
      %v1845 = vld [vmem:[%s1833 + $0x2c] sm:$0xf]
      %v1846 = vld [vmem:[%s1833 + $0x30] sm:$0xf]
      %v1847 = vld [vmem:[%s1833 + $0x34] sm:$0xf]
      %v1848 = vld [vmem:[%s1833 + $0x38] sm:$0xf]
      %v1849 = vld [vmem:[%s1833 + $0x3c] sm:$0xf]
      %v1882 = vunpack.c.l.b16 %v1801
      %v1883 = vunpack.c.l.b16 %v1802
      %v1884 = vunpack.c.l.b16 %v1803
      %v1885 = vunpack.c.l.b16 %v1804
      %v1886 = vunpack.c.l.b16 %v1805
      %v1887 = vunpack.c.l.b16 %v1806
      %v1888 = vunpack.c.l.b16 %v1807
      %v1889 = vunpack.c.l.b16 %v1808
      %v1890 = vunpack.c.l.b16 %v1809
      %v1891 = vunpack.c.l.b16 %v1810
      %v1892 = vunpack.c.l.b16 %v1811
      %v1893 = vunpack.c.l.b16 %v1812
      %v1894 = vunpack.c.l.b16 %v1813
      %v1895 = vunpack.c.l.b16 %v1814
      %v1896 = vunpack.c.l.b16 %v1815
      %v1897 = vunpack.c.l.b16 %v1816
      %v1898 = vunpack.c.l.b16 %v1817
      %v1899 = vunpack.c.l.b16 %v1818
      %v1900 = vunpack.c.l.b16 %v1819
      %v1901 = vunpack.c.l.b16 %v1820
      %v1902 = vunpack.c.l.b16 %v1821
      %v1903 = vunpack.c.l.b16 %v1822
      %v1904 = vunpack.c.l.b16 %v1823
      %v1905 = vunpack.c.l.b16 %v1824
      %v1906 = vunpack.c.l.b16 %v1825
      %v1907 = vunpack.c.l.b16 %v1826
      %v1908 = vunpack.c.l.b16 %v1827
      %v1909 = vunpack.c.l.b16 %v1828
      %v1910 = vunpack.c.l.b16 %v1829
      %v1911 = vunpack.c.l.b16 %v1830
      %v1912 = vunpack.c.l.b16 %v1831
      %v1913 = vunpack.c.l.b16 %v1832
      %v1914 = vpack.c.b16 %v1883, %v1882
      %v1915 = vpack.c.b16 %v1885, %v1884
      %v1916 = vpack.c.b16 %v1887, %v1886
      %v1917 = vpack.c.b16 %v1889, %v1888
      %v1918 = vpack.c.b16 %v1891, %v1890
      %v1919 = vpack.c.b16 %v1893, %v1892
      %v1920 = vpack.c.b16 %v1895, %v1894
      %v1921 = vpack.c.b16 %v1897, %v1896
      %v1922 = vpack.c.b16 %v1899, %v1898
      %v1923 = vpack.c.b16 %v1901, %v1900
      %v1924 = vpack.c.b16 %v1903, %v1902
      %v1925 = vpack.c.b16 %v1905, %v1904
      %v1926 = vpack.c.b16 %v1907, %v1906
      %v1927 = vpack.c.b16 %v1909, %v1908
      %v1928 = vpack.c.b16 %v1911, %v1910
      %v1929 = vpack.c.b16 %v1913, %v1912
      %v1962 = vunpack.c.l.b16 %v1834
      %v1963 = vunpack.c.l.b16 %v1835
      %v1964 = vunpack.c.l.b16 %v1836
      %v1965 = vunpack.c.l.b16 %v1837
      %v1966 = vunpack.c.l.b16 %v1838
      %v1967 = vunpack.c.l.b16 %v1839
      %v1968 = vunpack.c.l.b16 %v1840
      %v1969 = vunpack.c.l.b16 %v1841
      %v1970 = vunpack.c.l.b16 %v1842
      %v1971 = vunpack.c.l.b16 %v1843
      %v1972 = vunpack.c.l.b16 %v1844
      %v1973 = vunpack.c.l.b16 %v1845
      %v1974 = vunpack.c.l.b16 %v1846
      %v1975 = vunpack.c.l.b16 %v1847
      %v1976 = vunpack.c.l.b16 %v1848
      %v1977 = vunpack.c.l.b16 %v1849
      %v1978 = vpack.c.b16 %v1963, %v1962
      %v1979 = vpack.c.b16 %v1965, %v1964
      %v1980 = vpack.c.b16 %v1967, %v1966
      %v1981 = vpack.c.b16 %v1969, %v1968
      %v1982 = vpack.c.b16 %v1971, %v1970
      %v1983 = vpack.c.b16 %v1973, %v1972
      %v1984 = vpack.c.b16 %v1975, %v1974
      %v1985 = vpack.c.b16 %v1977, %v1976
      %1994 = vmatprep.subr.bf16.mxu0 0
      %1995 = vmatpush1.bf16.msra.mxu0 %v1985
      %1996 = vmatprep.subr.bf16.mxu0 0
      %1997 = vmatpush1.bf16.msra.mxu0 %v1984
      %1998 = vmatprep.subr.bf16.mxu0 0
      %1999 = vmatpush1.bf16.msra.mxu0 %v1983
      %2000 = vmatprep.subr.bf16.mxu0 0
      %2001 = vmatpush1.bf16.msra.mxu0 %v1982
      %2002 = vmatprep.subr.bf16.mxu0 0
      %2003 = vmatpush1.bf16.msra.mxu0 %v1981
      %2004 = vmatprep.subr.bf16.mxu0 0
      %2005 = vmatpush1.bf16.msra.mxu0 %v1980
      %2006 = vmatprep.subr.bf16.mxu0 0
      %2007 = vmatpush1.bf16.msra.mxu0 %v1979
      %2008 = vmatprep.subr.bf16.mxu0 0
      %2009 = vmatpush1.bf16.msra.mxu0 %v1978
      %2010 = vmatprep.subr.bf16.mxu0 0
      %2011 = vmatpush2.bf16.msra.mxu0 0
      %2012 = vmatprep.subr.bf16.mxu0 0
      %2013 = vmatpush2.bf16.msra.mxu0 0
      %2014 = vmatprep.subr.bf16.mxu0 0
      %2015 = vmatpush2.bf16.msra.mxu0 0
      %2016 = vmatprep.subr.bf16.mxu0 0
      %2017 = vmatpush2.bf16.msra.mxu0 0
      %2018 = vmatprep.subr.bf16.mxu0 0
      %2019 = vmatpush2.bf16.msra.mxu0 0
      %2020 = vmatprep.subr.bf16.mxu0 0
      %2021 = vmatpush2.bf16.msra.mxu0 0
      %2022 = vmatprep.subr.bf16.mxu0 0
      %2023 = vmatpush2.bf16.msra.mxu0 0
      %2024 = vmatprep.subr.bf16.mxu0 0
      %2025 = vmatpush2.bf16.msra.mxu0 0
      %2026 = vmatprep.mubr.bf16.mxu0 0
      %2027 = vmatmul.mubr.bf16.gmra.mxu0 %v1914
      %v2028 = vpop.f32.mrf.mxu0
      %v2029 = vadd.f32 0.0, %v2028
      %v2030 = vpop.f32.mrf.mxu0
      %v2031 = vpop.f32.mrf.mxu0
      %v2032 = vadd.f32 0.0, %v2031
      %v2033 = vpop.f32.mrf.mxu0
      %2034 = vmatprep.mubr.bf16.mxu0 0
      %2035 = vmatmul.mubr.bf16.gmra.mxu0 %v1915
      %v2036 = vpop.f32.mrf.mxu0
      %v2037 = vadd.f32 0.0, %v2036
      %v2038 = vpop.f32.mrf.mxu0
      %v2039 = vpop.f32.mrf.mxu0
      %v2040 = vadd.f32 0.0, %v2039
      %v2041 = vpop.f32.mrf.mxu0
      %2042 = vmatprep.mubr.bf16.mxu0 0
      %2043 = vmatmul.mubr.bf16.gmra.mxu0 %v1916
      %v2044 = vpop.f32.mrf.mxu0
      %v2045 = vadd.f32 0.0, %v2044
      %v2046 = vpop.f32.mrf.mxu0
      %v2047 = vpop.f32.mrf.mxu0
      %v2048 = vadd.f32 0.0, %v2047
      %v2049 = vpop.f32.mrf.mxu0
      %2050 = vmatprep.mubr.bf16.mxu0 0
      %2051 = vmatmul.mubr.bf16.gmra.mxu0 %v1917
      %v2052 = vpop.f32.mrf.mxu0
      %v2053 = vadd.f32 0.0, %v2052
      %v2054 = vpop.f32.mrf.mxu0
      %v2055 = vpop.f32.mrf.mxu0
      %v2056 = vadd.f32 0.0, %v2055
      %v2057 = vpop.f32.mrf.mxu0
      %2058 = vmatprep.mubr.bf16.mxu0 0
      %2059 = vmatmul.mubr.bf16.gmra.mxu0 %v1918
      %v2060 = vpop.f32.mrf.mxu0
      %v2061 = vadd.f32 0.0, %v2060
      %v2062 = vpop.f32.mrf.mxu0
      %v2063 = vpop.f32.mrf.mxu0
      %v2064 = vadd.f32 0.0, %v2063
      %v2065 = vpop.f32.mrf.mxu0
      %2066 = vmatprep.mubr.bf16.mxu0 0
      %2067 = vmatmul.mubr.bf16.gmra.mxu0 %v1919
      %v2068 = vpop.f32.mrf.mxu0
      %v2069 = vadd.f32 0.0, %v2068
      %v2070 = vpop.f32.mrf.mxu0
      %v2071 = vpop.f32.mrf.mxu0
      %v2072 = vadd.f32 0.0, %v2071
      %v2073 = vpop.f32.mrf.mxu0
      %2074 = vmatprep.mubr.bf16.mxu0 0
      %2075 = vmatmul.mubr.bf16.gmra.mxu0 %v1920
      %v2076 = vpop.f32.mrf.mxu0
      %v2077 = vadd.f32 0.0, %v2076
      %v2078 = vpop.f32.mrf.mxu0
      %v2079 = vpop.f32.mrf.mxu0
      %v2080 = vadd.f32 0.0, %v2079
      %v2081 = vpop.f32.mrf.mxu0
      %2082 = vmatprep.mubr.bf16.mxu0 0
      %2083 = vmatmul.mubr.bf16.gmra.mxu0 %v1921
      %v2084 = vpop.f32.mrf.mxu0
      %v2085 = vadd.f32 0.0, %v2084
      %v2086 = vpop.f32.mrf.mxu0
      %v2087 = vpop.f32.mrf.mxu0
      %v2088 = vadd.f32 0.0, %v2087
      %v2089 = vpop.f32.mrf.mxu0
      %2090 = vmatprep.mubr.bf16.mxu0 0
      %2091 = vmatmul.mubr.bf16.gmra.mxu0 %v1922
      %v2092 = vpop.f32.mrf.mxu0
      %v2093 = vadd.f32 0.0, %v2092
      %v2094 = vpop.f32.mrf.mxu0
      %v2095 = vpop.f32.mrf.mxu0
      %v2096 = vadd.f32 0.0, %v2095
      %v2097 = vpop.f32.mrf.mxu0
      %2098 = vmatprep.mubr.bf16.mxu0 0
      %2099 = vmatmul.mubr.bf16.gmra.mxu0 %v1923
      %v2100 = vpop.f32.mrf.mxu0
      %v2101 = vadd.f32 0.0, %v2100
      %v2102 = vpop.f32.mrf.mxu0
      %v2103 = vpop.f32.mrf.mxu0
      %v2104 = vadd.f32 0.0, %v2103
      %v2105 = vpop.f32.mrf.mxu0
      %2106 = vmatprep.mubr.bf16.mxu0 0
      %2107 = vmatmul.mubr.bf16.gmra.mxu0 %v1924
      %v2108 = vpop.f32.mrf.mxu0
      %v2109 = vadd.f32 0.0, %v2108
      %v2110 = vpop.f32.mrf.mxu0
      %v2111 = vpop.f32.mrf.mxu0
      %v2112 = vadd.f32 0.0, %v2111
      %v2113 = vpop.f32.mrf.mxu0
      %2114 = vmatprep.mubr.bf16.mxu0 0
      %2115 = vmatmul.mubr.bf16.gmra.mxu0 %v1925
      %v2116 = vpop.f32.mrf.mxu0
      %v2117 = vadd.f32 0.0, %v2116
      %v2118 = vpop.f32.mrf.mxu0
      %v2119 = vpop.f32.mrf.mxu0
      %v2120 = vadd.f32 0.0, %v2119
      %v2121 = vpop.f32.mrf.mxu0
      %2122 = vmatprep.mubr.bf16.mxu0 0
      %2123 = vmatmul.mubr.bf16.gmra.mxu0 %v1926
      %v2124 = vpop.f32.mrf.mxu0
      %v2125 = vadd.f32 0.0, %v2124
      %v2126 = vpop.f32.mrf.mxu0
      %v2127 = vpop.f32.mrf.mxu0
      %v2128 = vadd.f32 0.0, %v2127
      %v2129 = vpop.f32.mrf.mxu0
      %2130 = vmatprep.mubr.bf16.mxu0 0
      %2131 = vmatmul.mubr.bf16.gmra.mxu0 %v1927
      %v2132 = vpop.f32.mrf.mxu0
      %v2133 = vadd.f32 0.0, %v2132
      %v2134 = vpop.f32.mrf.mxu0
      %v2135 = vpop.f32.mrf.mxu0
      %v2136 = vadd.f32 0.0, %v2135
      %v2137 = vpop.f32.mrf.mxu0
      %2138 = vmatprep.mubr.bf16.mxu0 0
      %2139 = vmatmul.mubr.bf16.gmra.mxu0 %v1928
      %v2140 = vpop.f32.mrf.mxu0
      %v2141 = vadd.f32 0.0, %v2140
      %v2142 = vpop.f32.mrf.mxu0
      %v2143 = vpop.f32.mrf.mxu0
      %v2144 = vadd.f32 0.0, %v2143
      %v2145 = vpop.f32.mrf.mxu0
      %2146 = vmatprep.mubr.bf16.mxu0 0
      %2147 = vmatmul.mubr.bf16.gmra.mxu0 %v1929
      %v2148 = vpop.f32.mrf.mxu0
      %v2149 = vadd.f32 0.0, %v2148
      %v2150 = vpop.f32.mrf.mxu0
      %v2151 = vpop.f32.mrf.mxu0
      %v2152 = vadd.f32 0.0, %v2151
      %v2153 = vpop.f32.mrf.mxu0
      %2154 = vdwg.mxu0
      %v2155 = vadd.f32 %v1768, %v2029
      %v2156 = vadd.f32 %v1769, %v2032
      %v2157 = vadd.f32 %v1770, %v2037
      %v2158 = vadd.f32 %v1771, %v2040
      %v2159 = vadd.f32 %v1772, %v2045
      %v2160 = vadd.f32 %v1773, %v2048
      %v2161 = vadd.f32 %v1774, %v2053
      %v2162 = vadd.f32 %v1775, %v2056
      %v2163 = vadd.f32 %v1776, %v2061
      %v2164 = vadd.f32 %v1777, %v2064
      %v2165 = vadd.f32 %v1778, %v2069
      %v2166 = vadd.f32 %v1779, %v2072
      %v2167 = vadd.f32 %v1780, %v2077
      %v2168 = vadd.f32 %v1781, %v2080
      %v2169 = vadd.f32 %v1782, %v2085
      %v2170 = vadd.f32 %v1783, %v2088
      %v2171 = vadd.f32 %v1784, %v2093
      %v2172 = vadd.f32 %v1785, %v2096
      %v2173 = vadd.f32 %v1786, %v2101
      %v2174 = vadd.f32 %v1787, %v2104
      %v2175 = vadd.f32 %v1788, %v2109
      %v2176 = vadd.f32 %v1789, %v2112
      %v2177 = vadd.f32 %v1790, %v2117
      %v2178 = vadd.f32 %v1791, %v2120
      %v2179 = vadd.f32 %v1792, %v2125
      %v2180 = vadd.f32 %v1793, %v2128
      %v2181 = vadd.f32 %v1794, %v2133
      %v2182 = vadd.f32 %v1795, %v2136
      %v2183 = vadd.f32 %v1796, %v2141
      %v2184 = vadd.f32 %v1797, %v2144
      %v2185 = vadd.f32 %v1798, %v2149
      %v2186 = vadd.f32 %v1799, %v2152
      %v2187 = vld [vmem:[%s1800] sm:$0xf]
      %v2188 = vld [vmem:[%s1800 + $0x4] sm:$0xf]
      %v2189 = vld [vmem:[%s1800 + $0x8] sm:$0x1]
      %v2190 = vld [vmem:[%s1800 + $0xc] sm:$0xf]
      %v2191 = vld [vmem:[%s1800 + $0x10] sm:$0xf]
      %v2192 = vld [vmem:[%s1800 + $0x14] sm:$0x1]
      %v2193 = vld [vmem:[%s1800 + $0x18] sm:$0xf]
      %v2194 = vld [vmem:[%s1800 + $0x1c] sm:$0xf]
      %v2195 = vld [vmem:[%s1800 + $0x20] sm:$0x1]
      %v2196 = vld [vmem:[%s1800 + $0x24] sm:$0xf]
      %v2197 = vld [vmem:[%s1800 + $0x28] sm:$0xf]
      %v2198 = vld [vmem:[%s1800 + $0x2c] sm:$0x1]
      %v2199 = vld [vmem:[%s1800 + $0x30] sm:$0xf]
      %v2200 = vld [vmem:[%s1800 + $0x34] sm:$0xf]
      %v2201 = vld [vmem:[%s1800 + $0x38] sm:$0x1]
      %v2202 = vld [vmem:[%s1800 + $0x3c] sm:$0xf]
      %v2203 = vld [vmem:[%s1800 + $0x40] sm:$0xf]
      %v2204 = vld [vmem:[%s1800 + $0x44] sm:$0x1]
      %v2205 = vld [vmem:[%s1800 + $0x48] sm:$0xf]
      %v2206 = vld [vmem:[%s1800 + $0x4c] sm:$0xf]
      %v2207 = vld [vmem:[%s1800 + $0x50] sm:$0x1]
      %v2208 = vld [vmem:[%s1800 + $0x54] sm:$0xf]
      %v2209 = vld [vmem:[%s1800 + $0x58] sm:$0xf]
      %v2210 = vld [vmem:[%s1800 + $0x5c] sm:$0x1]
      %v2211 = vld [vmem:[%s1800 + $0x60] sm:$0xf]
      %v2212 = vld [vmem:[%s1800 + $0x64] sm:$0xf]
      %v2213 = vld [vmem:[%s1800 + $0x68] sm:$0x1]
      %v2214 = vld [vmem:[%s1800 + $0x6c] sm:$0xf]
      %v2215 = vld [vmem:[%s1800 + $0x70] sm:$0xf]
      %v2216 = vld [vmem:[%s1800 + $0x74] sm:$0x1]
      %v2217 = vld [vmem:[%s1800 + $0x78] sm:$0xf]
      %v2218 = vld [vmem:[%s1800 + $0x7c] sm:$0xf]
      %v2219 = vld [vmem:[%s1800 + $0x80] sm:$0x1]
      %v2220 = vld [vmem:[%s1800 + $0x84] sm:$0xf]
      %v2221 = vld [vmem:[%s1800 + $0x88] sm:$0xf]
      %v2222 = vld [vmem:[%s1800 + $0x8c] sm:$0x1]
      %v2223 = vld [vmem:[%s1800 + $0x90] sm:$0xf]
      %v2224 = vld [vmem:[%s1800 + $0x94] sm:$0xf]
      %v2225 = vld [vmem:[%s1800 + $0x98] sm:$0x1]
      %v2226 = vld [vmem:[%s1800 + $0x9c] sm:$0xf]
      %v2227 = vld [vmem:[%s1800 + $0xa0] sm:$0xf]
      %v2228 = vld [vmem:[%s1800 + $0xa4] sm:$0x1]
      %v2229 = vld [vmem:[%s1800 + $0xa8] sm:$0xf]
      %v2230 = vld [vmem:[%s1800 + $0xac] sm:$0xf]
      %v2231 = vld [vmem:[%s1800 + $0xb0] sm:$0x1]
      %v2232 = vld [vmem:[%s1800 + $0xb4] sm:$0xf]
      %v2233 = vld [vmem:[%s1800 + $0xb8] sm:$0xf]
      %v2234 = vld [vmem:[%s1800 + $0xbc] sm:$0x1]
      %v2236 = vshrl.u32 %v2187, 16
      %v2238 = vrot.slane %v2236, 4
      %v2239 = vshll.u32 %v2187, 16
      %v2241 = vrot.slane %v2239, 5
      %v2242 = vor.u32 %v2238, %v2241
      %v2243 = vrot.slane %v2242, 4
      %v2245 = vshll.u32 %v2188, 16
      %v2247 = vrot.slane %v2245, 5
      %v2248 = vsel %vm335, %v2243, %v2247
      %v2249 = vshrl.u32 %v2188, 16
      %v2251 = vrot.slane %v2249, 4
      %v2252 = vor.u32 %v2251, %v2247
      %v2253 = vrot.slane %v2252, 4
      %v2255 = vshll.u32 %v2189, 16
      %v2257 = vrot.slane %v2255, 5
      %v2258 = vsel %vm335, %v2253, %v2257
      %v2260 = vshrl.u32 %v2190, 16
      %v2262 = vrot.slane %v2260, 4
      %v2263 = vshll.u32 %v2190, 16
      %v2265 = vrot.slane %v2263, 5
      %v2266 = vor.u32 %v2262, %v2265
      %v2267 = vrot.slane %v2266, 4
      %v2269 = vshll.u32 %v2191, 16
      %v2271 = vrot.slane %v2269, 5
      %v2272 = vsel %vm335, %v2267, %v2271
      %v2273 = vshrl.u32 %v2191, 16
      %v2275 = vrot.slane %v2273, 4
      %v2276 = vor.u32 %v2275, %v2271
      %v2277 = vrot.slane %v2276, 4
      %v2279 = vshll.u32 %v2192, 16
      %v2281 = vrot.slane %v2279, 5
      %v2282 = vsel %vm335, %v2277, %v2281
      %v2284 = vshrl.u32 %v2193, 16
      %v2286 = vrot.slane %v2284, 4
      %v2287 = vshll.u32 %v2193, 16
      %v2289 = vrot.slane %v2287, 5
      %v2290 = vor.u32 %v2286, %v2289
      %v2291 = vrot.slane %v2290, 4
      %v2293 = vshll.u32 %v2194, 16
      %v2295 = vrot.slane %v2293, 5
      %v2296 = vsel %vm335, %v2291, %v2295
      %v2297 = vshrl.u32 %v2194, 16
      %v2299 = vrot.slane %v2297, 4
      %v2300 = vor.u32 %v2299, %v2295
      %v2301 = vrot.slane %v2300, 4
      %v2303 = vshll.u32 %v2195, 16
      %v2305 = vrot.slane %v2303, 5
      %v2306 = vsel %vm335, %v2301, %v2305
      %v2308 = vshrl.u32 %v2196, 16
      %v2310 = vrot.slane %v2308, 4
      %v2311 = vshll.u32 %v2196, 16
      %v2313 = vrot.slane %v2311, 5
      %v2314 = vor.u32 %v2310, %v2313
      %v2315 = vrot.slane %v2314, 4
      %v2317 = vshll.u32 %v2197, 16
      %v2319 = vrot.slane %v2317, 5
      %v2320 = vsel %vm335, %v2315, %v2319
      %v2321 = vshrl.u32 %v2197, 16
      %v2323 = vrot.slane %v2321, 4
      %v2324 = vor.u32 %v2323, %v2319
      %v2325 = vrot.slane %v2324, 4
      %v2327 = vshll.u32 %v2198, 16
      %v2329 = vrot.slane %v2327, 5
      %v2330 = vsel %vm335, %v2325, %v2329
      %v2332 = vshrl.u32 %v2199, 16
      %v2334 = vrot.slane %v2332, 4
      %v2335 = vshll.u32 %v2199, 16
      %v2337 = vrot.slane %v2335, 5
      %v2338 = vor.u32 %v2334, %v2337
      %v2339 = vrot.slane %v2338, 4
      %v2341 = vshll.u32 %v2200, 16
      %v2343 = vrot.slane %v2341, 5
      %v2344 = vsel %vm335, %v2339, %v2343
      %v2345 = vshrl.u32 %v2200, 16
      %v2347 = vrot.slane %v2345, 4
      %v2348 = vor.u32 %v2347, %v2343
      %v2349 = vrot.slane %v2348, 4
      %v2351 = vshll.u32 %v2201, 16
      %v2353 = vrot.slane %v2351, 5
      %v2354 = vsel %vm335, %v2349, %v2353
      %v2356 = vshrl.u32 %v2202, 16
      %v2358 = vrot.slane %v2356, 4
      %v2359 = vshll.u32 %v2202, 16
      %v2361 = vrot.slane %v2359, 5
      %v2362 = vor.u32 %v2358, %v2361
      %v2363 = vrot.slane %v2362, 4
      %v2365 = vshll.u32 %v2203, 16
      %v2367 = vrot.slane %v2365, 5
      %v2368 = vsel %vm335, %v2363, %v2367
      %v2369 = vshrl.u32 %v2203, 16
      %v2371 = vrot.slane %v2369, 4
      %v2372 = vor.u32 %v2371, %v2367
      %v2373 = vrot.slane %v2372, 4
      %v2375 = vshll.u32 %v2204, 16
      %v2377 = vrot.slane %v2375, 5
      %v2378 = vsel %vm335, %v2373, %v2377
      %v2380 = vshrl.u32 %v2205, 16
      %v2382 = vrot.slane %v2380, 4
      %v2383 = vshll.u32 %v2205, 16
      %v2385 = vrot.slane %v2383, 5
      %v2386 = vor.u32 %v2382, %v2385
      %v2387 = vrot.slane %v2386, 4
      %v2389 = vshll.u32 %v2206, 16
      %v2391 = vrot.slane %v2389, 5
      %v2392 = vsel %vm335, %v2387, %v2391
      %v2393 = vshrl.u32 %v2206, 16
      %v2395 = vrot.slane %v2393, 4
      %v2396 = vor.u32 %v2395, %v2391
      %v2397 = vrot.slane %v2396, 4
      %v2399 = vshll.u32 %v2207, 16
      %v2401 = vrot.slane %v2399, 5
      %v2402 = vsel %vm335, %v2397, %v2401
      %v2404 = vshrl.u32 %v2208, 16
      %v2406 = vrot.slane %v2404, 4
      %v2407 = vshll.u32 %v2208, 16
      %v2409 = vrot.slane %v2407, 5
      %v2410 = vor.u32 %v2406, %v2409
      %v2411 = vrot.slane %v2410, 4
      %v2413 = vshll.u32 %v2209, 16
      %v2415 = vrot.slane %v2413, 5
      %v2416 = vsel %vm335, %v2411, %v2415
      %v2417 = vshrl.u32 %v2209, 16
      %v2419 = vrot.slane %v2417, 4
      %v2420 = vor.u32 %v2419, %v2415
      %v2421 = vrot.slane %v2420, 4
      %v2423 = vshll.u32 %v2210, 16
      %v2425 = vrot.slane %v2423, 5
      %v2426 = vsel %vm335, %v2421, %v2425
      %v2428 = vshrl.u32 %v2211, 16
      %v2430 = vrot.slane %v2428, 4
      %v2431 = vshll.u32 %v2211, 16
      %v2433 = vrot.slane %v2431, 5
      %v2434 = vor.u32 %v2430, %v2433
      %v2435 = vrot.slane %v2434, 4
      %v2437 = vshll.u32 %v2212, 16
      %v2439 = vrot.slane %v2437, 5
      %v2440 = vsel %vm335, %v2435, %v2439
      %v2441 = vshrl.u32 %v2212, 16
      %v2443 = vrot.slane %v2441, 4
      %v2444 = vor.u32 %v2443, %v2439
      %v2445 = vrot.slane %v2444, 4
      %v2447 = vshll.u32 %v2213, 16
      %v2449 = vrot.slane %v2447, 5
      %v2450 = vsel %vm335, %v2445, %v2449
      %v2452 = vshrl.u32 %v2214, 16
      %v2454 = vrot.slane %v2452, 4
      %v2455 = vshll.u32 %v2214, 16
      %v2457 = vrot.slane %v2455, 5
      %v2458 = vor.u32 %v2454, %v2457
      %v2459 = vrot.slane %v2458, 4
      %v2461 = vshll.u32 %v2215, 16
      %v2463 = vrot.slane %v2461, 5
      %v2464 = vsel %vm335, %v2459, %v2463
      %v2465 = vshrl.u32 %v2215, 16
      %v2467 = vrot.slane %v2465, 4
      %v2468 = vor.u32 %v2467, %v2463
      %v2469 = vrot.slane %v2468, 4
      %v2471 = vshll.u32 %v2216, 16
      %v2473 = vrot.slane %v2471, 5
      %v2474 = vsel %vm335, %v2469, %v2473
      %v2476 = vshrl.u32 %v2217, 16
      %v2478 = vrot.slane %v2476, 4
      %v2479 = vshll.u32 %v2217, 16
      %v2481 = vrot.slane %v2479, 5
      %v2482 = vor.u32 %v2478, %v2481
      %v2483 = vrot.slane %v2482, 4
      %v2485 = vshll.u32 %v2218, 16
      %v2487 = vrot.slane %v2485, 5
      %v2488 = vsel %vm335, %v2483, %v2487
      %v2489 = vshrl.u32 %v2218, 16
      %v2491 = vrot.slane %v2489, 4
      %v2492 = vor.u32 %v2491, %v2487
      %v2493 = vrot.slane %v2492, 4
      %v2495 = vshll.u32 %v2219, 16
      %v2497 = vrot.slane %v2495, 5
      %v2498 = vsel %vm335, %v2493, %v2497
      %v2500 = vshrl.u32 %v2220, 16
      %v2502 = vrot.slane %v2500, 4
      %v2503 = vshll.u32 %v2220, 16
      %v2505 = vrot.slane %v2503, 5
      %v2506 = vor.u32 %v2502, %v2505
      %v2507 = vrot.slane %v2506, 4
      %v2509 = vshll.u32 %v2221, 16
      %v2511 = vrot.slane %v2509, 5
      %v2512 = vsel %vm335, %v2507, %v2511
      %v2513 = vshrl.u32 %v2221, 16
      %v2515 = vrot.slane %v2513, 4
      %v2516 = vor.u32 %v2515, %v2511
      %v2517 = vrot.slane %v2516, 4
      %v2519 = vshll.u32 %v2222, 16
      %v2521 = vrot.slane %v2519, 5
      %v2522 = vsel %vm335, %v2517, %v2521
      %v2524 = vshrl.u32 %v2223, 16
      %v2526 = vrot.slane %v2524, 4
      %v2527 = vshll.u32 %v2223, 16
      %v2529 = vrot.slane %v2527, 5
      %v2530 = vor.u32 %v2526, %v2529
      %v2531 = vrot.slane %v2530, 4
      %v2533 = vshll.u32 %v2224, 16
      %v2535 = vrot.slane %v2533, 5
      %v2536 = vsel %vm335, %v2531, %v2535
      %v2537 = vshrl.u32 %v2224, 16
      %v2539 = vrot.slane %v2537, 4
      %v2540 = vor.u32 %v2539, %v2535
      %v2541 = vrot.slane %v2540, 4
      %v2543 = vshll.u32 %v2225, 16
      %v2545 = vrot.slane %v2543, 5
      %v2546 = vsel %vm335, %v2541, %v2545
      %v2548 = vshrl.u32 %v2226, 16
      %v2550 = vrot.slane %v2548, 4
      %v2551 = vshll.u32 %v2226, 16
      %v2553 = vrot.slane %v2551, 5
      %v2554 = vor.u32 %v2550, %v2553
      %v2555 = vrot.slane %v2554, 4
      %v2557 = vshll.u32 %v2227, 16
      %v2559 = vrot.slane %v2557, 5
      %v2560 = vsel %vm335, %v2555, %v2559
      %v2561 = vshrl.u32 %v2227, 16
      %v2563 = vrot.slane %v2561, 4
      %v2564 = vor.u32 %v2563, %v2559
      %v2565 = vrot.slane %v2564, 4
      %v2567 = vshll.u32 %v2228, 16
      %v2569 = vrot.slane %v2567, 5
      %v2570 = vsel %vm335, %v2565, %v2569
      %v2572 = vshrl.u32 %v2229, 16
      %v2574 = vrot.slane %v2572, 4
      %v2575 = vshll.u32 %v2229, 16
      %v2577 = vrot.slane %v2575, 5
      %v2578 = vor.u32 %v2574, %v2577
      %v2579 = vrot.slane %v2578, 4
      %v2581 = vshll.u32 %v2230, 16
      %v2583 = vrot.slane %v2581, 5
      %v2584 = vsel %vm335, %v2579, %v2583
      %v2585 = vshrl.u32 %v2230, 16
      %v2587 = vrot.slane %v2585, 4
      %v2588 = vor.u32 %v2587, %v2583
      %v2589 = vrot.slane %v2588, 4
      %v2591 = vshll.u32 %v2231, 16
      %v2593 = vrot.slane %v2591, 5
      %v2594 = vsel %vm335, %v2589, %v2593
      %v2596 = vshrl.u32 %v2232, 16
      %v2598 = vrot.slane %v2596, 4
      %v2599 = vshll.u32 %v2232, 16
      %v2601 = vrot.slane %v2599, 5
      %v2602 = vor.u32 %v2598, %v2601
      %v2603 = vrot.slane %v2602, 4
      %v2605 = vshll.u32 %v2233, 16
      %v2607 = vrot.slane %v2605, 5
      %v2608 = vsel %vm335, %v2603, %v2607
      %v2609 = vshrl.u32 %v2233, 16
      %v2611 = vrot.slane %v2609, 4
      %v2612 = vor.u32 %v2611, %v2607
      %v2613 = vrot.slane %v2612, 4
      %v2615 = vshll.u32 %v2234, 16
      %v2617 = vrot.slane %v2615, 5
      %v2618 = vsel %vm335, %v2613, %v2617
      %s2619 = scalar_lea.vmem %s247, 256
      %v2620 = vld [vmem:[%s2619] sm:$0xf]
      %v2621 = vld [vmem:[%s2619 + $0x4] sm:$0xf]
      %v2622 = vld [vmem:[%s2619 + $0x8] sm:$0xf]
      %v2623 = vld [vmem:[%s2619 + $0xc] sm:$0xf]
      %v2624 = vld [vmem:[%s2619 + $0x10] sm:$0xf]
      %v2625 = vld [vmem:[%s2619 + $0x14] sm:$0xf]
      %v2626 = vld [vmem:[%s2619 + $0x18] sm:$0xf]
      %v2627 = vld [vmem:[%s2619 + $0x1c] sm:$0xf]
      %v2628 = vld [vmem:[%s2619 + $0x20] sm:$0xf]
      %v2629 = vld [vmem:[%s2619 + $0x24] sm:$0xf]
      %v2630 = vld [vmem:[%s2619 + $0x28] sm:$0xf]
      %v2631 = vld [vmem:[%s2619 + $0x2c] sm:$0xf]
      %v2632 = vld [vmem:[%s2619 + $0x30] sm:$0xf]
      %v2633 = vld [vmem:[%s2619 + $0x34] sm:$0xf]
      %v2634 = vld [vmem:[%s2619 + $0x38] sm:$0xf]
      %v2635 = vld [vmem:[%s2619 + $0x3c] sm:$0xf]
      %v2636 = vunpack.c.l.b16 %v2248
      %v2637 = vunpack.c.l.b16 %v2258
      %v2638 = vunpack.c.l.b16 %v2272
      %v2639 = vunpack.c.l.b16 %v2282
      %v2640 = vunpack.c.l.b16 %v2296
      %v2641 = vunpack.c.l.b16 %v2306
      %v2642 = vunpack.c.l.b16 %v2320
      %v2643 = vunpack.c.l.b16 %v2330
      %v2644 = vunpack.c.l.b16 %v2344
      %v2645 = vunpack.c.l.b16 %v2354
      %v2646 = vunpack.c.l.b16 %v2368
      %v2647 = vunpack.c.l.b16 %v2378
      %v2648 = vunpack.c.l.b16 %v2392
      %v2649 = vunpack.c.l.b16 %v2402
      %v2650 = vunpack.c.l.b16 %v2416
      %v2651 = vunpack.c.l.b16 %v2426
      %v2652 = vunpack.c.l.b16 %v2440
      %v2653 = vunpack.c.l.b16 %v2450
      %v2654 = vunpack.c.l.b16 %v2464
      %v2655 = vunpack.c.l.b16 %v2474
      %v2656 = vunpack.c.l.b16 %v2488
      %v2657 = vunpack.c.l.b16 %v2498
      %v2658 = vunpack.c.l.b16 %v2512
      %v2659 = vunpack.c.l.b16 %v2522
      %v2660 = vunpack.c.l.b16 %v2536
      %v2661 = vunpack.c.l.b16 %v2546
      %v2662 = vunpack.c.l.b16 %v2560
      %v2663 = vunpack.c.l.b16 %v2570
      %v2664 = vunpack.c.l.b16 %v2584
      %v2665 = vunpack.c.l.b16 %v2594
      %v2666 = vunpack.c.l.b16 %v2608
      %v2667 = vunpack.c.l.b16 %v2618
      %v2668 = vpack.c.b16 %v2637, %v2636
      %v2669 = vpack.c.b16 %v2639, %v2638
      %v2670 = vpack.c.b16 %v2641, %v2640
      %v2671 = vpack.c.b16 %v2643, %v2642
      %v2672 = vpack.c.b16 %v2645, %v2644
      %v2673 = vpack.c.b16 %v2647, %v2646
      %v2674 = vpack.c.b16 %v2649, %v2648
      %v2675 = vpack.c.b16 %v2651, %v2650
      %v2676 = vpack.c.b16 %v2653, %v2652
      %v2677 = vpack.c.b16 %v2655, %v2654
      %v2678 = vpack.c.b16 %v2657, %v2656
      %v2679 = vpack.c.b16 %v2659, %v2658
      %v2680 = vpack.c.b16 %v2661, %v2660
      %v2681 = vpack.c.b16 %v2663, %v2662
      %v2682 = vpack.c.b16 %v2665, %v2664
      %v2683 = vpack.c.b16 %v2667, %v2666
      %v2716 = vunpack.c.l.b16 %v2620
      %v2717 = vunpack.c.l.b16 %v2621
      %v2718 = vunpack.c.l.b16 %v2622
      %v2719 = vunpack.c.l.b16 %v2623
      %v2720 = vunpack.c.l.b16 %v2624
      %v2721 = vunpack.c.l.b16 %v2625
      %v2722 = vunpack.c.l.b16 %v2626
      %v2723 = vunpack.c.l.b16 %v2627
      %v2724 = vunpack.c.l.b16 %v2628
      %v2725 = vunpack.c.l.b16 %v2629
      %v2726 = vunpack.c.l.b16 %v2630
      %v2727 = vunpack.c.l.b16 %v2631
      %v2728 = vunpack.c.l.b16 %v2632
      %v2729 = vunpack.c.l.b16 %v2633
      %v2730 = vunpack.c.l.b16 %v2634
      %v2731 = vunpack.c.l.b16 %v2635
      %v2732 = vpack.c.b16 %v2717, %v2716
      %v2733 = vpack.c.b16 %v2719, %v2718
      %v2734 = vpack.c.b16 %v2721, %v2720
      %v2735 = vpack.c.b16 %v2723, %v2722
      %v2736 = vpack.c.b16 %v2725, %v2724
      %v2737 = vpack.c.b16 %v2727, %v2726
      %v2738 = vpack.c.b16 %v2729, %v2728
      %v2739 = vpack.c.b16 %v2731, %v2730
      %2748 = vmatprep.subr.bf16.mxu0 0
      %2749 = vmatpush1.bf16.msra.mxu0 %v2739
      %2750 = vmatprep.subr.bf16.mxu0 0
      %2751 = vmatpush1.bf16.msra.mxu0 %v2738
      %2752 = vmatprep.subr.bf16.mxu0 0
      %2753 = vmatpush1.bf16.msra.mxu0 %v2737
      %2754 = vmatprep.subr.bf16.mxu0 0
      %2755 = vmatpush1.bf16.msra.mxu0 %v2736
      %2756 = vmatprep.subr.bf16.mxu0 0
      %2757 = vmatpush1.bf16.msra.mxu0 %v2735
      %2758 = vmatprep.subr.bf16.mxu0 0
      %2759 = vmatpush1.bf16.msra.mxu0 %v2734
      %2760 = vmatprep.subr.bf16.mxu0 0
      %2761 = vmatpush1.bf16.msra.mxu0 %v2733
      %2762 = vmatprep.subr.bf16.mxu0 0
      %2763 = vmatpush1.bf16.msra.mxu0 %v2732
      %2764 = vmatprep.subr.bf16.mxu0 0
      %2765 = vmatpush2.bf16.msra.mxu0 0
      %2766 = vmatprep.subr.bf16.mxu0 0
      %2767 = vmatpush2.bf16.msra.mxu0 0
      %2768 = vmatprep.subr.bf16.mxu0 0
      %2769 = vmatpush2.bf16.msra.mxu0 0
      %2770 = vmatprep.subr.bf16.mxu0 0
      %2771 = vmatpush2.bf16.msra.mxu0 0
      %2772 = vmatprep.subr.bf16.mxu0 0
      %2773 = vmatpush2.bf16.msra.mxu0 0
      %2774 = vmatprep.subr.bf16.mxu0 0
      %2775 = vmatpush2.bf16.msra.mxu0 0
      %2776 = vmatprep.subr.bf16.mxu0 0
      %2777 = vmatpush2.bf16.msra.mxu0 0
      %2778 = vmatprep.subr.bf16.mxu0 0
      %2779 = vmatpush2.bf16.msra.mxu0 0
      %2780 = vmatprep.mubr.bf16.mxu0 0
      %2781 = vmatmul.mubr.bf16.gmra.mxu0 %v2668
      %v2782 = vpop.f32.mrf.mxu0
      %v2783 = vadd.f32 0.0, %v2782
      %v2784 = vpop.f32.mrf.mxu0
      %v2785 = vpop.f32.mrf.mxu0
      %v2786 = vadd.f32 0.0, %v2785
      %v2787 = vpop.f32.mrf.mxu0
      %2788 = vmatprep.mubr.bf16.mxu0 0
      %2789 = vmatmul.mubr.bf16.gmra.mxu0 %v2669
      %v2790 = vpop.f32.mrf.mxu0
      %v2791 = vadd.f32 0.0, %v2790
      %v2792 = vpop.f32.mrf.mxu0
      %v2793 = vpop.f32.mrf.mxu0
      %v2794 = vadd.f32 0.0, %v2793
      %v2795 = vpop.f32.mrf.mxu0
      %2796 = vmatprep.mubr.bf16.mxu0 0
      %2797 = vmatmul.mubr.bf16.gmra.mxu0 %v2670
      %v2798 = vpop.f32.mrf.mxu0
      %v2799 = vadd.f32 0.0, %v2798
      %v2800 = vpop.f32.mrf.mxu0
      %v2801 = vpop.f32.mrf.mxu0
      %v2802 = vadd.f32 0.0, %v2801
      %v2803 = vpop.f32.mrf.mxu0
      %2804 = vmatprep.mubr.bf16.mxu0 0
      %2805 = vmatmul.mubr.bf16.gmra.mxu0 %v2671
      %v2806 = vpop.f32.mrf.mxu0
      %v2807 = vadd.f32 0.0, %v2806
      %v2808 = vpop.f32.mrf.mxu0
      %v2809 = vpop.f32.mrf.mxu0
      %v2810 = vadd.f32 0.0, %v2809
      %v2811 = vpop.f32.mrf.mxu0
      %2812 = vmatprep.mubr.bf16.mxu0 0
      %2813 = vmatmul.mubr.bf16.gmra.mxu0 %v2672
      %v2814 = vpop.f32.mrf.mxu0
      %v2815 = vadd.f32 0.0, %v2814
      %v2816 = vpop.f32.mrf.mxu0
      %v2817 = vpop.f32.mrf.mxu0
      %v2818 = vadd.f32 0.0, %v2817
      %v2819 = vpop.f32.mrf.mxu0
      %2820 = vmatprep.mubr.bf16.mxu0 0
      %2821 = vmatmul.mubr.bf16.gmra.mxu0 %v2673
      %v2822 = vpop.f32.mrf.mxu0
      %v2823 = vadd.f32 0.0, %v2822
      %v2824 = vpop.f32.mrf.mxu0
      %v2825 = vpop.f32.mrf.mxu0
      %v2826 = vadd.f32 0.0, %v2825
      %v2827 = vpop.f32.mrf.mxu0
      %2828 = vmatprep.mubr.bf16.mxu0 0
      %2829 = vmatmul.mubr.bf16.gmra.mxu0 %v2674
      %v2830 = vpop.f32.mrf.mxu0
      %v2831 = vadd.f32 0.0, %v2830
      %v2832 = vpop.f32.mrf.mxu0
      %v2833 = vpop.f32.mrf.mxu0
      %v2834 = vadd.f32 0.0, %v2833
      %v2835 = vpop.f32.mrf.mxu0
      %2836 = vmatprep.mubr.bf16.mxu0 0
      %2837 = vmatmul.mubr.bf16.gmra.mxu0 %v2675
      %v2838 = vpop.f32.mrf.mxu0
      %v2839 = vadd.f32 0.0, %v2838
      %v2840 = vpop.f32.mrf.mxu0
      %v2841 = vpop.f32.mrf.mxu0
      %v2842 = vadd.f32 0.0, %v2841
      %v2843 = vpop.f32.mrf.mxu0
      %2844 = vmatprep.mubr.bf16.mxu0 0
      %2845 = vmatmul.mubr.bf16.gmra.mxu0 %v2676
      %v2846 = vpop.f32.mrf.mxu0
      %v2847 = vadd.f32 0.0, %v2846
      %v2848 = vpop.f32.mrf.mxu0
      %v2849 = vpop.f32.mrf.mxu0
      %v2850 = vadd.f32 0.0, %v2849
      %v2851 = vpop.f32.mrf.mxu0
      %2852 = vmatprep.mubr.bf16.mxu0 0
      %2853 = vmatmul.mubr.bf16.gmra.mxu0 %v2677
      %v2854 = vpop.f32.mrf.mxu0
      %v2855 = vadd.f32 0.0, %v2854
      %v2856 = vpop.f32.mrf.mxu0
      %v2857 = vpop.f32.mrf.mxu0
      %v2858 = vadd.f32 0.0, %v2857
      %v2859 = vpop.f32.mrf.mxu0
      %2860 = vmatprep.mubr.bf16.mxu0 0
      %2861 = vmatmul.mubr.bf16.gmra.mxu0 %v2678
      %v2862 = vpop.f32.mrf.mxu0
      %v2863 = vadd.f32 0.0, %v2862
      %v2864 = vpop.f32.mrf.mxu0
      %v2865 = vpop.f32.mrf.mxu0
      %v2866 = vadd.f32 0.0, %v2865
      %v2867 = vpop.f32.mrf.mxu0
      %2868 = vmatprep.mubr.bf16.mxu0 0
      %2869 = vmatmul.mubr.bf16.gmra.mxu0 %v2679
      %v2870 = vpop.f32.mrf.mxu0
      %v2871 = vadd.f32 0.0, %v2870
      %v2872 = vpop.f32.mrf.mxu0
      %v2873 = vpop.f32.mrf.mxu0
      %v2874 = vadd.f32 0.0, %v2873
      %v2875 = vpop.f32.mrf.mxu0
      %2876 = vmatprep.mubr.bf16.mxu0 0
      %2877 = vmatmul.mubr.bf16.gmra.mxu0 %v2680
      %v2878 = vpop.f32.mrf.mxu0
      %v2879 = vadd.f32 0.0, %v2878
      %v2880 = vpop.f32.mrf.mxu0
      %v2881 = vpop.f32.mrf.mxu0
      %v2882 = vadd.f32 0.0, %v2881
      %v2883 = vpop.f32.mrf.mxu0
      %2884 = vmatprep.mubr.bf16.mxu0 0
      %2885 = vmatmul.mubr.bf16.gmra.mxu0 %v2681
      %v2886 = vpop.f32.mrf.mxu0
      %v2887 = vadd.f32 0.0, %v2886
      %v2888 = vpop.f32.mrf.mxu0
      %v2889 = vpop.f32.mrf.mxu0
      %v2890 = vadd.f32 0.0, %v2889
      %v2891 = vpop.f32.mrf.mxu0
      %2892 = vmatprep.mubr.bf16.mxu0 0
      %2893 = vmatmul.mubr.bf16.gmra.mxu0 %v2682
      %v2894 = vpop.f32.mrf.mxu0
      %v2895 = vadd.f32 0.0, %v2894
      %v2896 = vpop.f32.mrf.mxu0
      %v2897 = vpop.f32.mrf.mxu0
      %v2898 = vadd.f32 0.0, %v2897
      %v2899 = vpop.f32.mrf.mxu0
      %2900 = vmatprep.mubr.bf16.mxu0 0
      %2901 = vmatmul.mubr.bf16.gmra.mxu0 %v2683
      %v2902 = vpop.f32.mrf.mxu0
      %v2903 = vadd.f32 0.0, %v2902
      %v2904 = vpop.f32.mrf.mxu0
      %v2905 = vpop.f32.mrf.mxu0
      %v2906 = vadd.f32 0.0, %v2905
      %v2907 = vpop.f32.mrf.mxu0
      %2908 = vdwg.mxu0
      %v2909 = vadd.f32 %v2155, %v2783
      %v2910 = vadd.f32 %v2156, %v2786
      %v2911 = vadd.f32 %v2157, %v2791
      %v2912 = vadd.f32 %v2158, %v2794
      %v2913 = vadd.f32 %v2159, %v2799
      %v2914 = vadd.f32 %v2160, %v2802
      %v2915 = vadd.f32 %v2161, %v2807
      %v2916 = vadd.f32 %v2162, %v2810
      %v2917 = vadd.f32 %v2163, %v2815
      %v2918 = vadd.f32 %v2164, %v2818
      %v2919 = vadd.f32 %v2165, %v2823
      %v2920 = vadd.f32 %v2166, %v2826
      %v2921 = vadd.f32 %v2167, %v2831
      %v2922 = vadd.f32 %v2168, %v2834
      %v2923 = vadd.f32 %v2169, %v2839
      %v2924 = vadd.f32 %v2170, %v2842
      %v2925 = vadd.f32 %v2171, %v2847
      %v2926 = vadd.f32 %v2172, %v2850
      %v2927 = vadd.f32 %v2173, %v2855
      %v2928 = vadd.f32 %v2174, %v2858
      %v2929 = vadd.f32 %v2175, %v2863
      %v2930 = vadd.f32 %v2176, %v2866
      %v2931 = vadd.f32 %v2177, %v2871
      %v2932 = vadd.f32 %v2178, %v2874
      %v2933 = vadd.f32 %v2179, %v2879
      %v2934 = vadd.f32 %v2180, %v2882
      %v2935 = vadd.f32 %v2181, %v2887
      %v2936 = vadd.f32 %v2182, %v2890
      %v2937 = vadd.f32 %v2183, %v2895
      %v2938 = vadd.f32 %v2184, %v2898
      %v2939 = vadd.f32 %v2185, %v2903
      %v2940 = vadd.f32 %v2186, %v2906
      %v2941 = vld [vmem:[%s1800] sm:$0xe]
      %v2942 = vld [vmem:[%s1800 + $0xc] sm:$0xe]
      %v2943 = vld [vmem:[%s1800 + $0x18] sm:$0xe]
      %v2944 = vld [vmem:[%s1800 + $0x24] sm:$0xe]
      %v2945 = vld [vmem:[%s1800 + $0x30] sm:$0xe]
      %v2946 = vld [vmem:[%s1800 + $0x3c] sm:$0xe]
      %v2947 = vld [vmem:[%s1800 + $0x48] sm:$0xe]
      %v2948 = vld [vmem:[%s1800 + $0x54] sm:$0xe]
      %v2949 = vld [vmem:[%s1800 + $0x60] sm:$0xe]
      %v2950 = vld [vmem:[%s1800 + $0x6c] sm:$0xe]
      %v2951 = vld [vmem:[%s1800 + $0x78] sm:$0xe]
      %v2952 = vld [vmem:[%s1800 + $0x84] sm:$0xe]
      %v2953 = vld [vmem:[%s1800 + $0x90] sm:$0xe]
      %v2954 = vld [vmem:[%s1800 + $0x9c] sm:$0xe]
      %v2955 = vld [vmem:[%s1800 + $0xa8] sm:$0xe]
      %v2956 = vld [vmem:[%s1800 + $0xb4] sm:$0xe]
      %v3005 = vrot.slane %v2941, 5
      %v3006 = vrot.slane %v3005, 4
      %v3007 = vrot.slane %v2188, 5
      %v3008 = vsel %vm1365, %v3006, %v3007
      %v3009 = vrot.slane %v3007, 4
      %v3010 = vrot.slane %v2189, 5
      %v3011 = vsel %vm1365, %v3009, %v3010
      %v3012 = vrot.slane %v2942, 5
      %v3013 = vrot.slane %v3012, 4
      %v3014 = vrot.slane %v2191, 5
      %v3015 = vsel %vm1365, %v3013, %v3014
      %v3016 = vrot.slane %v3014, 4
      %v3017 = vrot.slane %v2192, 5
      %v3018 = vsel %vm1365, %v3016, %v3017
      %v3019 = vrot.slane %v2943, 5
      %v3020 = vrot.slane %v3019, 4
      %v3021 = vrot.slane %v2194, 5
      %v3022 = vsel %vm1365, %v3020, %v3021
      %v3023 = vrot.slane %v3021, 4
      %v3024 = vrot.slane %v2195, 5
      %v3025 = vsel %vm1365, %v3023, %v3024
      %v3026 = vrot.slane %v2944, 5
      %v3027 = vrot.slane %v3026, 4
      %v3028 = vrot.slane %v2197, 5
      %v3029 = vsel %vm1365, %v3027, %v3028
      %v3030 = vrot.slane %v3028, 4
      %v3031 = vrot.slane %v2198, 5
      %v3032 = vsel %vm1365, %v3030, %v3031
      %v3033 = vrot.slane %v2945, 5
      %v3034 = vrot.slane %v3033, 4
      %v3035 = vrot.slane %v2200, 5
      %v3036 = vsel %vm1365, %v3034, %v3035
      %v3037 = vrot.slane %v3035, 4
      %v3038 = vrot.slane %v2201, 5
      %v3039 = vsel %vm1365, %v3037, %v3038
      %v3040 = vrot.slane %v2946, 5
      %v3041 = vrot.slane %v3040, 4
      %v3042 = vrot.slane %v2203, 5
      %v3043 = vsel %vm1365, %v3041, %v3042
      %v3044 = vrot.slane %v3042, 4
      %v3045 = vrot.slane %v2204, 5
      %v3046 = vsel %vm1365, %v3044, %v3045
      %v3047 = vrot.slane %v2947, 5
      %v3048 = vrot.slane %v3047, 4
      %v3049 = vrot.slane %v2206, 5
      %v3050 = vsel %vm1365, %v3048, %v3049
      %v3051 = vrot.slane %v3049, 4
      %v3052 = vrot.slane %v2207, 5
      %v3053 = vsel %vm1365, %v3051, %v3052
      %v3054 = vrot.slane %v2948, 5
      %v3055 = vrot.slane %v3054, 4
      %v3056 = vrot.slane %v2209, 5
      %v3057 = vsel %vm1365, %v3055, %v3056
      %v3058 = vrot.slane %v3056, 4
      %v3059 = vrot.slane %v2210, 5
      %v3060 = vsel %vm1365, %v3058, %v3059
      %v3061 = vrot.slane %v2949, 5
      %v3062 = vrot.slane %v3061, 4
      %v3063 = vrot.slane %v2212, 5
      %v3064 = vsel %vm1365, %v3062, %v3063
      %v3065 = vrot.slane %v3063, 4
      %v3066 = vrot.slane %v2213, 5
      %v3067 = vsel %vm1365, %v3065, %v3066
      %v3068 = vrot.slane %v2950, 5
      %v3069 = vrot.slane %v3068, 4
      %v3070 = vrot.slane %v2215, 5
      %v3071 = vsel %vm1365, %v3069, %v3070
      %v3072 = vrot.slane %v3070, 4
      %v3073 = vrot.slane %v2216, 5
      %v3074 = vsel %vm1365, %v3072, %v3073
      %v3075 = vrot.slane %v2951, 5
      %v3076 = vrot.slane %v3075, 4
      %v3077 = vrot.slane %v2218, 5
      %v3078 = vsel %vm1365, %v3076, %v3077
      %v3079 = vrot.slane %v3077, 4
      %v3080 = vrot.slane %v2219, 5
      %v3081 = vsel %vm1365, %v3079, %v3080
      %v3082 = vrot.slane %v2952, 5
      %v3083 = vrot.slane %v3082, 4
      %v3084 = vrot.slane %v2221, 5
      %v3085 = vsel %vm1365, %v3083, %v3084
      %v3086 = vrot.slane %v3084, 4
      %v3087 = vrot.slane %v2222, 5
      %v3088 = vsel %vm1365, %v3086, %v3087
      %v3089 = vrot.slane %v2953, 5
      %v3090 = vrot.slane %v3089, 4
      %v3091 = vrot.slane %v2224, 5
      %v3092 = vsel %vm1365, %v3090, %v3091
      %v3093 = vrot.slane %v3091, 4
      %v3094 = vrot.slane %v2225, 5
      %v3095 = vsel %vm1365, %v3093, %v3094
      %v3096 = vrot.slane %v2954, 5
      %v3097 = vrot.slane %v3096, 4
      %v3098 = vrot.slane %v2227, 5
      %v3099 = vsel %vm1365, %v3097, %v3098
      %v3100 = vrot.slane %v3098, 4
      %v3101 = vrot.slane %v2228, 5
      %v3102 = vsel %vm1365, %v3100, %v3101
      %v3103 = vrot.slane %v2955, 5
      %v3104 = vrot.slane %v3103, 4
      %v3105 = vrot.slane %v2230, 5
      %v3106 = vsel %vm1365, %v3104, %v3105
      %v3107 = vrot.slane %v3105, 4
      %v3108 = vrot.slane %v2231, 5
      %v3109 = vsel %vm1365, %v3107, %v3108
      %v3110 = vrot.slane %v2956, 5
      %v3111 = vrot.slane %v3110, 4
      %v3112 = vrot.slane %v2233, 5
      %v3113 = vsel %vm1365, %v3111, %v3112
      %v3114 = vrot.slane %v3112, 4
      %v3115 = vrot.slane %v2234, 5
      %v3116 = vsel %vm1365, %v3114, %v3115
      %s3117 = scalar_lea.vmem %s247, 320
      %v3118 = vld [vmem:[%s3117] sm:$0xf]
      %v3119 = vld [vmem:[%s3117 + $0x4] sm:$0xf]
      %v3120 = vld [vmem:[%s3117 + $0x8] sm:$0xf]
      %v3121 = vld [vmem:[%s3117 + $0xc] sm:$0xf]
      %v3122 = vld [vmem:[%s3117 + $0x10] sm:$0xf]
      %v3123 = vld [vmem:[%s3117 + $0x14] sm:$0xf]
      %v3124 = vld [vmem:[%s3117 + $0x18] sm:$0xf]
      %v3125 = vld [vmem:[%s3117 + $0x1c] sm:$0xf]
      %v3126 = vld [vmem:[%s3117 + $0x20] sm:$0xf]
      %v3127 = vld [vmem:[%s3117 + $0x24] sm:$0xf]
      %v3128 = vld [vmem:[%s3117 + $0x28] sm:$0xf]
      %v3129 = vld [vmem:[%s3117 + $0x2c] sm:$0xf]
      %v3130 = vld [vmem:[%s3117 + $0x30] sm:$0xf]
      %v3131 = vld [vmem:[%s3117 + $0x34] sm:$0xf]
      %v3132 = vld [vmem:[%s3117 + $0x38] sm:$0xf]
      %v3133 = vld [vmem:[%s3117 + $0x3c] sm:$0xf]
      %v3134 = vunpack.c.l.b16 %v3008
      %v3135 = vunpack.c.l.b16 %v3011
      %v3136 = vunpack.c.l.b16 %v3015
      %v3137 = vunpack.c.l.b16 %v3018
      %v3138 = vunpack.c.l.b16 %v3022
      %v3139 = vunpack.c.l.b16 %v3025
      %v3140 = vunpack.c.l.b16 %v3029
      %v3141 = vunpack.c.l.b16 %v3032
      %v3142 = vunpack.c.l.b16 %v3036
      %v3143 = vunpack.c.l.b16 %v3039
      %v3144 = vunpack.c.l.b16 %v3043
      %v3145 = vunpack.c.l.b16 %v3046
      %v3146 = vunpack.c.l.b16 %v3050
      %v3147 = vunpack.c.l.b16 %v3053
      %v3148 = vunpack.c.l.b16 %v3057
      %v3149 = vunpack.c.l.b16 %v3060
      %v3150 = vunpack.c.l.b16 %v3064
      %v3151 = vunpack.c.l.b16 %v3067
      %v3152 = vunpack.c.l.b16 %v3071
      %v3153 = vunpack.c.l.b16 %v3074
      %v3154 = vunpack.c.l.b16 %v3078
      %v3155 = vunpack.c.l.b16 %v3081
      %v3156 = vunpack.c.l.b16 %v3085
      %v3157 = vunpack.c.l.b16 %v3088
      %v3158 = vunpack.c.l.b16 %v3092
      %v3159 = vunpack.c.l.b16 %v3095
      %v3160 = vunpack.c.l.b16 %v3099
      %v3161 = vunpack.c.l.b16 %v3102
      %v3162 = vunpack.c.l.b16 %v3106
      %v3163 = vunpack.c.l.b16 %v3109
      %v3164 = vunpack.c.l.b16 %v3113
      %v3165 = vunpack.c.l.b16 %v3116
      %v3166 = vpack.c.b16 %v3135, %v3134
      %v3167 = vpack.c.b16 %v3137, %v3136
      %v3168 = vpack.c.b16 %v3139, %v3138
      %v3169 = vpack.c.b16 %v3141, %v3140
      %v3170 = vpack.c.b16 %v3143, %v3142
      %v3171 = vpack.c.b16 %v3145, %v3144
      %v3172 = vpack.c.b16 %v3147, %v3146
      %v3173 = vpack.c.b16 %v3149, %v3148
      %v3174 = vpack.c.b16 %v3151, %v3150
      %v3175 = vpack.c.b16 %v3153, %v3152
      %v3176 = vpack.c.b16 %v3155, %v3154
      %v3177 = vpack.c.b16 %v3157, %v3156
      %v3178 = vpack.c.b16 %v3159, %v3158
      %v3179 = vpack.c.b16 %v3161, %v3160
      %v3180 = vpack.c.b16 %v3163, %v3162
      %v3181 = vpack.c.b16 %v3165, %v3164
      %v3214 = vunpack.c.l.b16 %v3118
      %v3215 = vunpack.c.l.b16 %v3119
      %v3216 = vunpack.c.l.b16 %v3120
      %v3217 = vunpack.c.l.b16 %v3121
      %v3218 = vunpack.c.l.b16 %v3122
      %v3219 = vunpack.c.l.b16 %v3123
      %v3220 = vunpack.c.l.b16 %v3124
      %v3221 = vunpack.c.l.b16 %v3125
      %v3222 = vunpack.c.l.b16 %v3126
      %v3223 = vunpack.c.l.b16 %v3127
      %v3224 = vunpack.c.l.b16 %v3128
      %v3225 = vunpack.c.l.b16 %v3129
      %v3226 = vunpack.c.l.b16 %v3130
      %v3227 = vunpack.c.l.b16 %v3131
      %v3228 = vunpack.c.l.b16 %v3132
      %v3229 = vunpack.c.l.b16 %v3133
      %v3230 = vpack.c.b16 %v3215, %v3214
      %v3231 = vpack.c.b16 %v3217, %v3216
      %v3232 = vpack.c.b16 %v3219, %v3218
      %v3233 = vpack.c.b16 %v3221, %v3220
      %v3234 = vpack.c.b16 %v3223, %v3222
      %v3235 = vpack.c.b16 %v3225, %v3224
      %v3236 = vpack.c.b16 %v3227, %v3226
      %v3237 = vpack.c.b16 %v3229, %v3228
      %3246 = vmatprep.subr.bf16.mxu0 0
      %3247 = vmatpush1.bf16.msra.mxu0 %v3237
      %3248 = vmatprep.subr.bf16.mxu0 0
      %3249 = vmatpush1.bf16.msra.mxu0 %v3236
      %3250 = vmatprep.subr.bf16.mxu0 0
      %3251 = vmatpush1.bf16.msra.mxu0 %v3235
      %3252 = vmatprep.subr.bf16.mxu0 0
      %3253 = vmatpush1.bf16.msra.mxu0 %v3234
      %3254 = vmatprep.subr.bf16.mxu0 0
      %3255 = vmatpush1.bf16.msra.mxu0 %v3233
      %3256 = vmatprep.subr.bf16.mxu0 0
      %3257 = vmatpush1.bf16.msra.mxu0 %v3232
      %3258 = vmatprep.subr.bf16.mxu0 0
      %3259 = vmatpush1.bf16.msra.mxu0 %v3231
      %3260 = vmatprep.subr.bf16.mxu0 0
      %3261 = vmatpush1.bf16.msra.mxu0 %v3230
      %3262 = vmatprep.subr.bf16.mxu0 0
      %3263 = vmatpush2.bf16.msra.mxu0 0
      %3264 = vmatprep.subr.bf16.mxu0 0
      %3265 = vmatpush2.bf16.msra.mxu0 0
      %3266 = vmatprep.subr.bf16.mxu0 0
      %3267 = vmatpush2.bf16.msra.mxu0 0
      %3268 = vmatprep.subr.bf16.mxu0 0
      %3269 = vmatpush2.bf16.msra.mxu0 0
      %3270 = vmatprep.subr.bf16.mxu0 0
      %3271 = vmatpush2.bf16.msra.mxu0 0
      %3272 = vmatprep.subr.bf16.mxu0 0
      %3273 = vmatpush2.bf16.msra.mxu0 0
      %3274 = vmatprep.subr.bf16.mxu0 0
      %3275 = vmatpush2.bf16.msra.mxu0 0
      %3276 = vmatprep.subr.bf16.mxu0 0
      %3277 = vmatpush2.bf16.msra.mxu0 0
      %3278 = vmatprep.mubr.bf16.mxu0 0
      %3279 = vmatmul.mubr.bf16.gmra.mxu0 %v3166
      %v3280 = vpop.f32.mrf.mxu0
      %v3281 = vadd.f32 0.0, %v3280
      %v3282 = vpop.f32.mrf.mxu0
      %v3283 = vpop.f32.mrf.mxu0
      %v3284 = vadd.f32 0.0, %v3283
      %v3285 = vpop.f32.mrf.mxu0
      %3286 = vmatprep.mubr.bf16.mxu0 0
      %3287 = vmatmul.mubr.bf16.gmra.mxu0 %v3167
      %v3288 = vpop.f32.mrf.mxu0
      %v3289 = vadd.f32 0.0, %v3288
      %v3290 = vpop.f32.mrf.mxu0
      %v3291 = vpop.f32.mrf.mxu0
      %v3292 = vadd.f32 0.0, %v3291
      %v3293 = vpop.f32.mrf.mxu0
      %3294 = vmatprep.mubr.bf16.mxu0 0
      %3295 = vmatmul.mubr.bf16.gmra.mxu0 %v3168
      %v3296 = vpop.f32.mrf.mxu0
      %v3297 = vadd.f32 0.0, %v3296
      %v3298 = vpop.f32.mrf.mxu0
      %v3299 = vpop.f32.mrf.mxu0
      %v3300 = vadd.f32 0.0, %v3299
      %v3301 = vpop.f32.mrf.mxu0
      %3302 = vmatprep.mubr.bf16.mxu0 0
      %3303 = vmatmul.mubr.bf16.gmra.mxu0 %v3169
      %v3304 = vpop.f32.mrf.mxu0
      %v3305 = vadd.f32 0.0, %v3304
      %v3306 = vpop.f32.mrf.mxu0
      %v3307 = vpop.f32.mrf.mxu0
      %v3308 = vadd.f32 0.0, %v3307
      %v3309 = vpop.f32.mrf.mxu0
      %3310 = vmatprep.mubr.bf16.mxu0 0
      %3311 = vmatmul.mubr.bf16.gmra.mxu0 %v3170
      %v3312 = vpop.f32.mrf.mxu0
      %v3313 = vadd.f32 0.0, %v3312
      %v3314 = vpop.f32.mrf.mxu0
      %v3315 = vpop.f32.mrf.mxu0
      %v3316 = vadd.f32 0.0, %v3315
      %v3317 = vpop.f32.mrf.mxu0
      %3318 = vmatprep.mubr.bf16.mxu0 0
      %3319 = vmatmul.mubr.bf16.gmra.mxu0 %v3171
      %v3320 = vpop.f32.mrf.mxu0
      %v3321 = vadd.f32 0.0, %v3320
      %v3322 = vpop.f32.mrf.mxu0
      %v3323 = vpop.f32.mrf.mxu0
      %v3324 = vadd.f32 0.0, %v3323
      %v3325 = vpop.f32.mrf.mxu0
      %3326 = vmatprep.mubr.bf16.mxu0 0
      %3327 = vmatmul.mubr.bf16.gmra.mxu0 %v3172
      %v3328 = vpop.f32.mrf.mxu0
      %v3329 = vadd.f32 0.0, %v3328
      %v3330 = vpop.f32.mrf.mxu0
      %v3331 = vpop.f32.mrf.mxu0
      %v3332 = vadd.f32 0.0, %v3331
      %v3333 = vpop.f32.mrf.mxu0
      %3334 = vmatprep.mubr.bf16.mxu0 0
      %3335 = vmatmul.mubr.bf16.gmra.mxu0 %v3173
      %v3336 = vpop.f32.mrf.mxu0
      %v3337 = vadd.f32 0.0, %v3336
      %v3338 = vpop.f32.mrf.mxu0
      %v3339 = vpop.f32.mrf.mxu0
      %v3340 = vadd.f32 0.0, %v3339
      %v3341 = vpop.f32.mrf.mxu0
      %3342 = vmatprep.mubr.bf16.mxu0 0
      %3343 = vmatmul.mubr.bf16.gmra.mxu0 %v3174
      %v3344 = vpop.f32.mrf.mxu0
      %v3345 = vadd.f32 0.0, %v3344
      %v3346 = vpop.f32.mrf.mxu0
      %v3347 = vpop.f32.mrf.mxu0
      %v3348 = vadd.f32 0.0, %v3347
      %v3349 = vpop.f32.mrf.mxu0
      %3350 = vmatprep.mubr.bf16.mxu0 0
      %3351 = vmatmul.mubr.bf16.gmra.mxu0 %v3175
      %v3352 = vpop.f32.mrf.mxu0
      %v3353 = vadd.f32 0.0, %v3352
      %v3354 = vpop.f32.mrf.mxu0
      %v3355 = vpop.f32.mrf.mxu0
      %v3356 = vadd.f32 0.0, %v3355
      %v3357 = vpop.f32.mrf.mxu0
      %3358 = vmatprep.mubr.bf16.mxu0 0
      %3359 = vmatmul.mubr.bf16.gmra.mxu0 %v3176
      %v3360 = vpop.f32.mrf.mxu0
      %v3361 = vadd.f32 0.0, %v3360
      %v3362 = vpop.f32.mrf.mxu0
      %v3363 = vpop.f32.mrf.mxu0
      %v3364 = vadd.f32 0.0, %v3363
      %v3365 = vpop.f32.mrf.mxu0
      %3366 = vmatprep.mubr.bf16.mxu0 0
      %3367 = vmatmul.mubr.bf16.gmra.mxu0 %v3177
      %v3368 = vpop.f32.mrf.mxu0
      %v3369 = vadd.f32 0.0, %v3368
      %v3370 = vpop.f32.mrf.mxu0
      %v3371 = vpop.f32.mrf.mxu0
      %v3372 = vadd.f32 0.0, %v3371
      %v3373 = vpop.f32.mrf.mxu0
      %3374 = vmatprep.mubr.bf16.mxu0 0
      %3375 = vmatmul.mubr.bf16.gmra.mxu0 %v3178
      %v3376 = vpop.f32.mrf.mxu0
      %v3377 = vadd.f32 0.0, %v3376
      %v3378 = vpop.f32.mrf.mxu0
      %v3379 = vpop.f32.mrf.mxu0
      %v3380 = vadd.f32 0.0, %v3379
      %v3381 = vpop.f32.mrf.mxu0
      %3382 = vmatprep.mubr.bf16.mxu0 0
      %3383 = vmatmul.mubr.bf16.gmra.mxu0 %v3179
      %v3384 = vpop.f32.mrf.mxu0
      %v3385 = vadd.f32 0.0, %v3384
      %v3386 = vpop.f32.mrf.mxu0
      %v3387 = vpop.f32.mrf.mxu0
      %v3388 = vadd.f32 0.0, %v3387
      %v3389 = vpop.f32.mrf.mxu0
      %3390 = vmatprep.mubr.bf16.mxu0 0
      %3391 = vmatmul.mubr.bf16.gmra.mxu0 %v3180
      %v3392 = vpop.f32.mrf.mxu0
      %v3393 = vadd.f32 0.0, %v3392
      %v3394 = vpop.f32.mrf.mxu0
      %v3395 = vpop.f32.mrf.mxu0
      %v3396 = vadd.f32 0.0, %v3395
      %v3397 = vpop.f32.mrf.mxu0
      %3398 = vmatprep.mubr.bf16.mxu0 0
      %3399 = vmatmul.mubr.bf16.gmra.mxu0 %v3181
      %v3400 = vpop.f32.mrf.mxu0
      %v3401 = vadd.f32 0.0, %v3400
      %v3402 = vpop.f32.mrf.mxu0
      %v3403 = vpop.f32.mrf.mxu0
      %v3404 = vadd.f32 0.0, %v3403
      %v3405 = vpop.f32.mrf.mxu0
      %3406 = vdwg.mxu0
      %v3407 = vadd.f32 %v2909, %v3281
      %v3408 = vadd.f32 %v2910, %v3284
      %v3409 = vadd.f32 %v2911, %v3289
      %v3410 = vadd.f32 %v2912, %v3292
      %v3411 = vadd.f32 %v2913, %v3297
      %v3412 = vadd.f32 %v2914, %v3300
      %v3413 = vadd.f32 %v2915, %v3305
      %v3414 = vadd.f32 %v2916, %v3308
      %v3415 = vadd.f32 %v2917, %v3313
      %v3416 = vadd.f32 %v2918, %v3316
      %v3417 = vadd.f32 %v2919, %v3321
      %v3418 = vadd.f32 %v2920, %v3324
      %v3419 = vadd.f32 %v2921, %v3329
      %v3420 = vadd.f32 %v2922, %v3332
      %v3421 = vadd.f32 %v2923, %v3337
      %v3422 = vadd.f32 %v2924, %v3340
      %v3423 = vadd.f32 %v2925, %v3345
      %v3424 = vadd.f32 %v2926, %v3348
      %v3425 = vadd.f32 %v2927, %v3353
      %v3426 = vadd.f32 %v2928, %v3356
      %v3427 = vadd.f32 %v2929, %v3361
      %v3428 = vadd.f32 %v2930, %v3364
      %v3429 = vadd.f32 %v2931, %v3369
      %v3430 = vadd.f32 %v2932, %v3372
      %v3431 = vadd.f32 %v2933, %v3377
      %v3432 = vadd.f32 %v2934, %v3380
      %v3433 = vadd.f32 %v2935, %v3385
      %v3434 = vadd.f32 %v2936, %v3388
      %v3435 = vadd.f32 %v2937, %v3393
      %v3436 = vadd.f32 %v2938, %v3396
      %v3437 = vadd.f32 %v2939, %v3401
      %v3438 = vadd.f32 %v2940, %v3404
      %s3439 = scalar_lea.vmem %s243, 24
      %v3440 = vld [vmem:[%s3439] sm:$0xf]
      %v3441 = vld [vmem:[%s3439 + $0x4] sm:$0xf]
      %v3442 = vld [vmem:[%s3439 + $0xc] sm:$0xf]
      %v3443 = vld [vmem:[%s3439 + $0x10] sm:$0xf]
      %v3444 = vld [vmem:[%s3439 + $0x18] sm:$0xf]
      %v3445 = vld [vmem:[%s3439 + $0x1c] sm:$0xf]
      %v3446 = vld [vmem:[%s3439 + $0x24] sm:$0xf]
      %v3447 = vld [vmem:[%s3439 + $0x28] sm:$0xf]
      %v3448 = vld [vmem:[%s3439 + $0x30] sm:$0xf]
      %v3449 = vld [vmem:[%s3439 + $0x34] sm:$0xf]
      %v3450 = vld [vmem:[%s3439 + $0x3c] sm:$0xf]
      %v3451 = vld [vmem:[%s3439 + $0x40] sm:$0xf]
      %v3452 = vld [vmem:[%s3439 + $0x48] sm:$0xf]
      %v3453 = vld [vmem:[%s3439 + $0x4c] sm:$0xf]
      %v3454 = vld [vmem:[%s3439 + $0x54] sm:$0xf]
      %v3455 = vld [vmem:[%s3439 + $0x58] sm:$0xf]
      %v3456 = vld [vmem:[%s3439 + $0x60] sm:$0xf]
      %v3457 = vld [vmem:[%s3439 + $0x64] sm:$0xf]
      %v3458 = vld [vmem:[%s3439 + $0x6c] sm:$0xf]
      %v3459 = vld [vmem:[%s3439 + $0x70] sm:$0xf]
      %v3460 = vld [vmem:[%s3439 + $0x78] sm:$0xf]
      %v3461 = vld [vmem:[%s3439 + $0x7c] sm:$0xf]
      %v3462 = vld [vmem:[%s3439 + $0x84] sm:$0xf]
      %v3463 = vld [vmem:[%s3439 + $0x88] sm:$0xf]
      %v3464 = vld [vmem:[%s3439 + $0x90] sm:$0xf]
      %v3465 = vld [vmem:[%s3439 + $0x94] sm:$0xf]
      %v3466 = vld [vmem:[%s3439 + $0x9c] sm:$0xf]
      %v3467 = vld [vmem:[%s3439 + $0xa0] sm:$0xf]
      %v3468 = vld [vmem:[%s3439 + $0xa8] sm:$0xf]
      %v3469 = vld [vmem:[%s3439 + $0xac] sm:$0xf]
      %v3470 = vld [vmem:[%s3439 + $0xb4] sm:$0xf]
      %v3471 = vld [vmem:[%s3439 + $0xb8] sm:$0xf]
      %s3472 = scalar_lea.vmem %s247, 384
      %v3473 = vld [vmem:[%s3472] sm:$0xf]
      %v3474 = vld [vmem:[%s3472 + $0x4] sm:$0xf]
      %v3475 = vld [vmem:[%s3472 + $0x8] sm:$0xf]
      %v3476 = vld [vmem:[%s3472 + $0xc] sm:$0xf]
      %v3477 = vld [vmem:[%s3472 + $0x10] sm:$0xf]
      %v3478 = vld [vmem:[%s3472 + $0x14] sm:$0xf]
      %v3479 = vld [vmem:[%s3472 + $0x18] sm:$0xf]
      %v3480 = vld [vmem:[%s3472 + $0x1c] sm:$0xf]
      %v3481 = vld [vmem:[%s3472 + $0x20] sm:$0xf]
      %v3482 = vld [vmem:[%s3472 + $0x24] sm:$0xf]
      %v3483 = vld [vmem:[%s3472 + $0x28] sm:$0xf]
      %v3484 = vld [vmem:[%s3472 + $0x2c] sm:$0xf]
      %v3485 = vld [vmem:[%s3472 + $0x30] sm:$0xf]
      %v3486 = vld [vmem:[%s3472 + $0x34] sm:$0xf]
      %v3487 = vld [vmem:[%s3472 + $0x38] sm:$0xf]
      %v3488 = vld [vmem:[%s3472 + $0x3c] sm:$0xf]
      %v3521 = vunpack.c.l.b16 %v3440
      %v3522 = vunpack.c.l.b16 %v3441
      %v3523 = vunpack.c.l.b16 %v3442
      %v3524 = vunpack.c.l.b16 %v3443
      %v3525 = vunpack.c.l.b16 %v3444
      %v3526 = vunpack.c.l.b16 %v3445
      %v3527 = vunpack.c.l.b16 %v3446
      %v3528 = vunpack.c.l.b16 %v3447
      %v3529 = vunpack.c.l.b16 %v3448
      %v3530 = vunpack.c.l.b16 %v3449
      %v3531 = vunpack.c.l.b16 %v3450
      %v3532 = vunpack.c.l.b16 %v3451
      %v3533 = vunpack.c.l.b16 %v3452
      %v3534 = vunpack.c.l.b16 %v3453
      %v3535 = vunpack.c.l.b16 %v3454
      %v3536 = vunpack.c.l.b16 %v3455
      %v3537 = vunpack.c.l.b16 %v3456
      %v3538 = vunpack.c.l.b16 %v3457
      %v3539 = vunpack.c.l.b16 %v3458
      %v3540 = vunpack.c.l.b16 %v3459
      %v3541 = vunpack.c.l.b16 %v3460
      %v3542 = vunpack.c.l.b16 %v3461
      %v3543 = vunpack.c.l.b16 %v3462
      %v3544 = vunpack.c.l.b16 %v3463
      %v3545 = vunpack.c.l.b16 %v3464
      %v3546 = vunpack.c.l.b16 %v3465
      %v3547 = vunpack.c.l.b16 %v3466
      %v3548 = vunpack.c.l.b16 %v3467
      %v3549 = vunpack.c.l.b16 %v3468
      %v3550 = vunpack.c.l.b16 %v3469
      %v3551 = vunpack.c.l.b16 %v3470
      %v3552 = vunpack.c.l.b16 %v3471
      %v3553 = vpack.c.b16 %v3522, %v3521
      %v3554 = vpack.c.b16 %v3524, %v3523
      %v3555 = vpack.c.b16 %v3526, %v3525
      %v3556 = vpack.c.b16 %v3528, %v3527
      %v3557 = vpack.c.b16 %v3530, %v3529
      %v3558 = vpack.c.b16 %v3532, %v3531
      %v3559 = vpack.c.b16 %v3534, %v3533
      %v3560 = vpack.c.b16 %v3536, %v3535
      %v3561 = vpack.c.b16 %v3538, %v3537
      %v3562 = vpack.c.b16 %v3540, %v3539
      %v3563 = vpack.c.b16 %v3542, %v3541
      %v3564 = vpack.c.b16 %v3544, %v3543
      %v3565 = vpack.c.b16 %v3546, %v3545
      %v3566 = vpack.c.b16 %v3548, %v3547
      %v3567 = vpack.c.b16 %v3550, %v3549
      %v3568 = vpack.c.b16 %v3552, %v3551
      %v3601 = vunpack.c.l.b16 %v3473
      %v3602 = vunpack.c.l.b16 %v3474
      %v3603 = vunpack.c.l.b16 %v3475
      %v3604 = vunpack.c.l.b16 %v3476
      %v3605 = vunpack.c.l.b16 %v3477
      %v3606 = vunpack.c.l.b16 %v3478
      %v3607 = vunpack.c.l.b16 %v3479
      %v3608 = vunpack.c.l.b16 %v3480
      %v3609 = vunpack.c.l.b16 %v3481
      %v3610 = vunpack.c.l.b16 %v3482
      %v3611 = vunpack.c.l.b16 %v3483
      %v3612 = vunpack.c.l.b16 %v3484
      %v3613 = vunpack.c.l.b16 %v3485
      %v3614 = vunpack.c.l.b16 %v3486
      %v3615 = vunpack.c.l.b16 %v3487
      %v3616 = vunpack.c.l.b16 %v3488
      %v3617 = vpack.c.b16 %v3602, %v3601
      %v3618 = vpack.c.b16 %v3604, %v3603
      %v3619 = vpack.c.b16 %v3606, %v3605
      %v3620 = vpack.c.b16 %v3608, %v3607
      %v3621 = vpack.c.b16 %v3610, %v3609
      %v3622 = vpack.c.b16 %v3612, %v3611
      %v3623 = vpack.c.b16 %v3614, %v3613
      %v3624 = vpack.c.b16 %v3616, %v3615
      %3633 = vmatprep.subr.bf16.mxu0 0
      %3634 = vmatpush1.bf16.msra.mxu0 %v3624
      %3635 = vmatprep.subr.bf16.mxu0 0
      %3636 = vmatpush1.bf16.msra.mxu0 %v3623
      %3637 = vmatprep.subr.bf16.mxu0 0
      %3638 = vmatpush1.bf16.msra.mxu0 %v3622
      %3639 = vmatprep.subr.bf16.mxu0 0
      %3640 = vmatpush1.bf16.msra.mxu0 %v3621
      %3641 = vmatprep.subr.bf16.mxu0 0
      %3642 = vmatpush1.bf16.msra.mxu0 %v3620
      %3643 = vmatprep.subr.bf16.mxu0 0
      %3644 = vmatpush1.bf16.msra.mxu0 %v3619
      %3645 = vmatprep.subr.bf16.mxu0 0
      %3646 = vmatpush1.bf16.msra.mxu0 %v3618
      %3647 = vmatprep.subr.bf16.mxu0 0
      %3648 = vmatpush1.bf16.msra.mxu0 %v3617
      %3649 = vmatprep.subr.bf16.mxu0 0
      %3650 = vmatpush2.bf16.msra.mxu0 0
      %3651 = vmatprep.subr.bf16.mxu0 0
      %3652 = vmatpush2.bf16.msra.mxu0 0
      %3653 = vmatprep.subr.bf16.mxu0 0
      %3654 = vmatpush2.bf16.msra.mxu0 0
      %3655 = vmatprep.subr.bf16.mxu0 0
      %3656 = vmatpush2.bf16.msra.mxu0 0
      %3657 = vmatprep.subr.bf16.mxu0 0
      %3658 = vmatpush2.bf16.msra.mxu0 0
      %3659 = vmatprep.subr.bf16.mxu0 0
      %3660 = vmatpush2.bf16.msra.mxu0 0
      %3661 = vmatprep.subr.bf16.mxu0 0
      %3662 = vmatpush2.bf16.msra.mxu0 0
      %3663 = vmatprep.subr.bf16.mxu0 0
      %3664 = vmatpush2.bf16.msra.mxu0 0
      %3665 = vmatprep.mubr.bf16.mxu0 0
      %3666 = vmatmul.mubr.bf16.gmra.mxu0 %v3553
      %v3667 = vpop.f32.mrf.mxu0
      %v3668 = vadd.f32 0.0, %v3667
      %v3669 = vpop.f32.mrf.mxu0
      %v3670 = vpop.f32.mrf.mxu0
      %v3671 = vadd.f32 0.0, %v3670
      %v3672 = vpop.f32.mrf.mxu0
      %3673 = vmatprep.mubr.bf16.mxu0 0
      %3674 = vmatmul.mubr.bf16.gmra.mxu0 %v3554
      %v3675 = vpop.f32.mrf.mxu0
      %v3676 = vadd.f32 0.0, %v3675
      %v3677 = vpop.f32.mrf.mxu0
      %v3678 = vpop.f32.mrf.mxu0
      %v3679 = vadd.f32 0.0, %v3678
      %v3680 = vpop.f32.mrf.mxu0
      %3681 = vmatprep.mubr.bf16.mxu0 0
      %3682 = vmatmul.mubr.bf16.gmra.mxu0 %v3555
      %v3683 = vpop.f32.mrf.mxu0
      %v3684 = vadd.f32 0.0, %v3683
      %v3685 = vpop.f32.mrf.mxu0
      %v3686 = vpop.f32.mrf.mxu0
      %v3687 = vadd.f32 0.0, %v3686
      %v3688 = vpop.f32.mrf.mxu0
      %3689 = vmatprep.mubr.bf16.mxu0 0
      %3690 = vmatmul.mubr.bf16.gmra.mxu0 %v3556
      %v3691 = vpop.f32.mrf.mxu0
      %v3692 = vadd.f32 0.0, %v3691
      %v3693 = vpop.f32.mrf.mxu0
      %v3694 = vpop.f32.mrf.mxu0
      %v3695 = vadd.f32 0.0, %v3694
      %v3696 = vpop.f32.mrf.mxu0
      %3697 = vmatprep.mubr.bf16.mxu0 0
      %3698 = vmatmul.mubr.bf16.gmra.mxu0 %v3557
      %v3699 = vpop.f32.mrf.mxu0
      %v3700 = vadd.f32 0.0, %v3699
      %v3701 = vpop.f32.mrf.mxu0
      %v3702 = vpop.f32.mrf.mxu0
      %v3703 = vadd.f32 0.0, %v3702
      %v3704 = vpop.f32.mrf.mxu0
      %3705 = vmatprep.mubr.bf16.mxu0 0
      %3706 = vmatmul.mubr.bf16.gmra.mxu0 %v3558
      %v3707 = vpop.f32.mrf.mxu0
      %v3708 = vadd.f32 0.0, %v3707
      %v3709 = vpop.f32.mrf.mxu0
      %v3710 = vpop.f32.mrf.mxu0
      %v3711 = vadd.f32 0.0, %v3710
      %v3712 = vpop.f32.mrf.mxu0
      %3713 = vmatprep.mubr.bf16.mxu0 0
      %3714 = vmatmul.mubr.bf16.gmra.mxu0 %v3559
      %v3715 = vpop.f32.mrf.mxu0
      %v3716 = vadd.f32 0.0, %v3715
      %v3717 = vpop.f32.mrf.mxu0
      %v3718 = vpop.f32.mrf.mxu0
      %v3719 = vadd.f32 0.0, %v3718
      %v3720 = vpop.f32.mrf.mxu0
      %3721 = vmatprep.mubr.bf16.mxu0 0
      %3722 = vmatmul.mubr.bf16.gmra.mxu0 %v3560
      %v3723 = vpop.f32.mrf.mxu0
      %v3724 = vadd.f32 0.0, %v3723
      %v3725 = vpop.f32.mrf.mxu0
      %v3726 = vpop.f32.mrf.mxu0
      %v3727 = vadd.f32 0.0, %v3726
      %v3728 = vpop.f32.mrf.mxu0
      %3729 = vmatprep.mubr.bf16.mxu0 0
      %3730 = vmatmul.mubr.bf16.gmra.mxu0 %v3561
      %v3731 = vpop.f32.mrf.mxu0
      %v3732 = vadd.f32 0.0, %v3731
      %v3733 = vpop.f32.mrf.mxu0
      %v3734 = vpop.f32.mrf.mxu0
      %v3735 = vadd.f32 0.0, %v3734
      %v3736 = vpop.f32.mrf.mxu0
      %3737 = vmatprep.mubr.bf16.mxu0 0
      %3738 = vmatmul.mubr.bf16.gmra.mxu0 %v3562
      %v3739 = vpop.f32.mrf.mxu0
      %v3740 = vadd.f32 0.0, %v3739
      %v3741 = vpop.f32.mrf.mxu0
      %v3742 = vpop.f32.mrf.mxu0
      %v3743 = vadd.f32 0.0, %v3742
      %v3744 = vpop.f32.mrf.mxu0
      %3745 = vmatprep.mubr.bf16.mxu0 0
      %3746 = vmatmul.mubr.bf16.gmra.mxu0 %v3563
      %v3747 = vpop.f32.mrf.mxu0
      %v3748 = vadd.f32 0.0, %v3747
      %v3749 = vpop.f32.mrf.mxu0
      %v3750 = vpop.f32.mrf.mxu0
      %v3751 = vadd.f32 0.0, %v3750
      %v3752 = vpop.f32.mrf.mxu0
      %3753 = vmatprep.mubr.bf16.mxu0 0
      %3754 = vmatmul.mubr.bf16.gmra.mxu0 %v3564
      %v3755 = vpop.f32.mrf.mxu0
      %v3756 = vadd.f32 0.0, %v3755
      %v3757 = vpop.f32.mrf.mxu0
      %v3758 = vpop.f32.mrf.mxu0
      %v3759 = vadd.f32 0.0, %v3758
      %v3760 = vpop.f32.mrf.mxu0
      %3761 = vmatprep.mubr.bf16.mxu0 0
      %3762 = vmatmul.mubr.bf16.gmra.mxu0 %v3565
      %v3763 = vpop.f32.mrf.mxu0
      %v3764 = vadd.f32 0.0, %v3763
      %v3765 = vpop.f32.mrf.mxu0
      %v3766 = vpop.f32.mrf.mxu0
      %v3767 = vadd.f32 0.0, %v3766
      %v3768 = vpop.f32.mrf.mxu0
      %3769 = vmatprep.mubr.bf16.mxu0 0
      %3770 = vmatmul.mubr.bf16.gmra.mxu0 %v3566
      %v3771 = vpop.f32.mrf.mxu0
      %v3772 = vadd.f32 0.0, %v3771
      %v3773 = vpop.f32.mrf.mxu0
      %v3774 = vpop.f32.mrf.mxu0
      %v3775 = vadd.f32 0.0, %v3774
      %v3776 = vpop.f32.mrf.mxu0
      %3777 = vmatprep.mubr.bf16.mxu0 0
      %3778 = vmatmul.mubr.bf16.gmra.mxu0 %v3567
      %v3779 = vpop.f32.mrf.mxu0
      %v3780 = vadd.f32 0.0, %v3779
      %v3781 = vpop.f32.mrf.mxu0
      %v3782 = vpop.f32.mrf.mxu0
      %v3783 = vadd.f32 0.0, %v3782
      %v3784 = vpop.f32.mrf.mxu0
      %3785 = vmatprep.mubr.bf16.mxu0 0
      %3786 = vmatmul.mubr.bf16.gmra.mxu0 %v3568
      %v3787 = vpop.f32.mrf.mxu0
      %v3788 = vadd.f32 0.0, %v3787
      %v3789 = vpop.f32.mrf.mxu0
      %v3790 = vpop.f32.mrf.mxu0
      %v3791 = vadd.f32 0.0, %v3790
      %v3792 = vpop.f32.mrf.mxu0
      %3793 = vdwg.mxu0
      %v3794 = vadd.f32 %v3407, %v3668
      %v3795 = vadd.f32 %v3408, %v3671
      %v3796 = vadd.f32 %v3409, %v3676
      %v3797 = vadd.f32 %v3410, %v3679
      %v3798 = vadd.f32 %v3411, %v3684
      %v3799 = vadd.f32 %v3412, %v3687
      %v3800 = vadd.f32 %v3413, %v3692
      %v3801 = vadd.f32 %v3414, %v3695
      %v3802 = vadd.f32 %v3415, %v3700
      %v3803 = vadd.f32 %v3416, %v3703
      %v3804 = vadd.f32 %v3417, %v3708
      %v3805 = vadd.f32 %v3418, %v3711
      %v3806 = vadd.f32 %v3419, %v3716
      %v3807 = vadd.f32 %v3420, %v3719
      %v3808 = vadd.f32 %v3421, %v3724
      %v3809 = vadd.f32 %v3422, %v3727
      %v3810 = vadd.f32 %v3423, %v3732
      %v3811 = vadd.f32 %v3424, %v3735
      %v3812 = vadd.f32 %v3425, %v3740
      %v3813 = vadd.f32 %v3426, %v3743
      %v3814 = vadd.f32 %v3427, %v3748
      %v3815 = vadd.f32 %v3428, %v3751
      %v3816 = vadd.f32 %v3429, %v3756
      %v3817 = vadd.f32 %v3430, %v3759
      %v3818 = vadd.f32 %v3431, %v3764
      %v3819 = vadd.f32 %v3432, %v3767
      %v3820 = vadd.f32 %v3433, %v3772
      %v3821 = vadd.f32 %v3434, %v3775
      %v3822 = vadd.f32 %v3435, %v3780
      %v3823 = vadd.f32 %v3436, %v3783
      %v3824 = vadd.f32 %v3437, %v3788
      %v3825 = vadd.f32 %v3438, %v3791
      %v3826 = vld [vmem:[%s3439] sm:$0xf]
      %v3827 = vld [vmem:[%s3439 + $0x4] sm:$0xf]
      %v3828 = vld [vmem:[%s3439 + $0x8] sm:$0x1]
      %v3829 = vld [vmem:[%s3439 + $0xc] sm:$0xf]
      %v3830 = vld [vmem:[%s3439 + $0x10] sm:$0xf]
      %v3831 = vld [vmem:[%s3439 + $0x14] sm:$0x1]
      %v3832 = vld [vmem:[%s3439 + $0x18] sm:$0xf]
      %v3833 = vld [vmem:[%s3439 + $0x1c] sm:$0xf]
      %v3834 = vld [vmem:[%s3439 + $0x20] sm:$0x1]
      %v3835 = vld [vmem:[%s3439 + $0x24] sm:$0xf]
      %v3836 = vld [vmem:[%s3439 + $0x28] sm:$0xf]
      %v3837 = vld [vmem:[%s3439 + $0x2c] sm:$0x1]
      %v3838 = vld [vmem:[%s3439 + $0x30] sm:$0xf]
      %v3839 = vld [vmem:[%s3439 + $0x34] sm:$0xf]
      %v3840 = vld [vmem:[%s3439 + $0x38] sm:$0x1]
      %v3841 = vld [vmem:[%s3439 + $0x3c] sm:$0xf]
      %v3842 = vld [vmem:[%s3439 + $0x40] sm:$0xf]
      %v3843 = vld [vmem:[%s3439 + $0x44] sm:$0x1]
      %v3844 = vld [vmem:[%s3439 + $0x48] sm:$0xf]
      %v3845 = vld [vmem:[%s3439 + $0x4c] sm:$0xf]
      %v3846 = vld [vmem:[%s3439 + $0x50] sm:$0x1]
      %v3847 = vld [vmem:[%s3439 + $0x54] sm:$0xf]
      %v3848 = vld [vmem:[%s3439 + $0x58] sm:$0xf]
      %v3849 = vld [vmem:[%s3439 + $0x5c] sm:$0x1]
      %v3850 = vld [vmem:[%s3439 + $0x60] sm:$0xf]
      %v3851 = vld [vmem:[%s3439 + $0x64] sm:$0xf]
      %v3852 = vld [vmem:[%s3439 + $0x68] sm:$0x1]
      %v3853 = vld [vmem:[%s3439 + $0x6c] sm:$0xf]
      %v3854 = vld [vmem:[%s3439 + $0x70] sm:$0xf]
      %v3855 = vld [vmem:[%s3439 + $0x74] sm:$0x1]
      %v3856 = vld [vmem:[%s3439 + $0x78] sm:$0xf]
      %v3857 = vld [vmem:[%s3439 + $0x7c] sm:$0xf]
      %v3858 = vld [vmem:[%s3439 + $0x80] sm:$0x1]
      %v3859 = vld [vmem:[%s3439 + $0x84] sm:$0xf]
      %v3860 = vld [vmem:[%s3439 + $0x88] sm:$0xf]
      %v3861 = vld [vmem:[%s3439 + $0x8c] sm:$0x1]
      %v3862 = vld [vmem:[%s3439 + $0x90] sm:$0xf]
      %v3863 = vld [vmem:[%s3439 + $0x94] sm:$0xf]
      %v3864 = vld [vmem:[%s3439 + $0x98] sm:$0x1]
      %v3865 = vld [vmem:[%s3439 + $0x9c] sm:$0xf]
      %v3866 = vld [vmem:[%s3439 + $0xa0] sm:$0xf]
      %v3867 = vld [vmem:[%s3439 + $0xa4] sm:$0x1]
      %v3868 = vld [vmem:[%s3439 + $0xa8] sm:$0xf]
      %v3869 = vld [vmem:[%s3439 + $0xac] sm:$0xf]
      %v3870 = vld [vmem:[%s3439 + $0xb0] sm:$0x1]
      %v3871 = vld [vmem:[%s3439 + $0xb4] sm:$0xf]
      %v3872 = vld [vmem:[%s3439 + $0xb8] sm:$0xf]
      %v3873 = vld [vmem:[%s3439 + $0xbc] sm:$0x1]
      %v3875 = vshrl.u32 %v3826, 16
      %v3877 = vrot.slane %v3875, 4
      %v3878 = vshll.u32 %v3826, 16
      %v3880 = vrot.slane %v3878, 5
      %v3881 = vor.u32 %v3877, %v3880
      %v3882 = vrot.slane %v3881, 4
      %v3884 = vshll.u32 %v3827, 16
      %v3886 = vrot.slane %v3884, 5
      %v3887 = vsel %vm335, %v3882, %v3886
      %v3888 = vshrl.u32 %v3827, 16
      %v3890 = vrot.slane %v3888, 4
      %v3891 = vor.u32 %v3890, %v3886
      %v3892 = vrot.slane %v3891, 4
      %v3894 = vshll.u32 %v3828, 16
      %v3896 = vrot.slane %v3894, 5
      %v3897 = vsel %vm335, %v3892, %v3896
      %v3899 = vshrl.u32 %v3829, 16
      %v3901 = vrot.slane %v3899, 4
      %v3902 = vshll.u32 %v3829, 16
      %v3904 = vrot.slane %v3902, 5
      %v3905 = vor.u32 %v3901, %v3904
      %v3906 = vrot.slane %v3905, 4
      %v3908 = vshll.u32 %v3830, 16
      %v3910 = vrot.slane %v3908, 5
      %v3911 = vsel %vm335, %v3906, %v3910
      %v3912 = vshrl.u32 %v3830, 16
      %v3914 = vrot.slane %v3912, 4
      %v3915 = vor.u32 %v3914, %v3910
      %v3916 = vrot.slane %v3915, 4
      %v3918 = vshll.u32 %v3831, 16
      %v3920 = vrot.slane %v3918, 5
      %v3921 = vsel %vm335, %v3916, %v3920
      %v3923 = vshrl.u32 %v3832, 16
      %v3925 = vrot.slane %v3923, 4
      %v3926 = vshll.u32 %v3832, 16
      %v3928 = vrot.slane %v3926, 5
      %v3929 = vor.u32 %v3925, %v3928
      %v3930 = vrot.slane %v3929, 4
      %v3932 = vshll.u32 %v3833, 16
      %v3934 = vrot.slane %v3932, 5
      %v3935 = vsel %vm335, %v3930, %v3934
      %v3936 = vshrl.u32 %v3833, 16
      %v3938 = vrot.slane %v3936, 4
      %v3939 = vor.u32 %v3938, %v3934
      %v3940 = vrot.slane %v3939, 4
      %v3942 = vshll.u32 %v3834, 16
      %v3944 = vrot.slane %v3942, 5
      %v3945 = vsel %vm335, %v3940, %v3944
      %v3947 = vshrl.u32 %v3835, 16
      %v3949 = vrot.slane %v3947, 4
      %v3950 = vshll.u32 %v3835, 16
      %v3952 = vrot.slane %v3950, 5
      %v3953 = vor.u32 %v3949, %v3952
      %v3954 = vrot.slane %v3953, 4
      %v3956 = vshll.u32 %v3836, 16
      %v3958 = vrot.slane %v3956, 5
      %v3959 = vsel %vm335, %v3954, %v3958
      %v3960 = vshrl.u32 %v3836, 16
      %v3962 = vrot.slane %v3960, 4
      %v3963 = vor.u32 %v3962, %v3958
      %v3964 = vrot.slane %v3963, 4
      %v3966 = vshll.u32 %v3837, 16
      %v3968 = vrot.slane %v3966, 5
      %v3969 = vsel %vm335, %v3964, %v3968
      %v3971 = vshrl.u32 %v3838, 16
      %v3973 = vrot.slane %v3971, 4
      %v3974 = vshll.u32 %v3838, 16
      %v3976 = vrot.slane %v3974, 5
      %v3977 = vor.u32 %v3973, %v3976
      %v3978 = vrot.slane %v3977, 4
      %v3980 = vshll.u32 %v3839, 16
      %v3982 = vrot.slane %v3980, 5
      %v3983 = vsel %vm335, %v3978, %v3982
      %v3984 = vshrl.u32 %v3839, 16
      %v3986 = vrot.slane %v3984, 4
      %v3987 = vor.u32 %v3986, %v3982
      %v3988 = vrot.slane %v3987, 4
      %v3990 = vshll.u32 %v3840, 16
      %v3992 = vrot.slane %v3990, 5
      %v3993 = vsel %vm335, %v3988, %v3992
      %v3995 = vshrl.u32 %v3841, 16
      %v3997 = vrot.slane %v3995, 4
      %v3998 = vshll.u32 %v3841, 16
      %v4000 = vrot.slane %v3998, 5
      %v4001 = vor.u32 %v3997, %v4000
      %v4002 = vrot.slane %v4001, 4
      %v4004 = vshll.u32 %v3842, 16
      %v4006 = vrot.slane %v4004, 5
      %v4007 = vsel %vm335, %v4002, %v4006
      %v4008 = vshrl.u32 %v3842, 16
      %v4010 = vrot.slane %v4008, 4
      %v4011 = vor.u32 %v4010, %v4006
      %v4012 = vrot.slane %v4011, 4
      %v4014 = vshll.u32 %v3843, 16
      %v4016 = vrot.slane %v4014, 5
      %v4017 = vsel %vm335, %v4012, %v4016
      %v4019 = vshrl.u32 %v3844, 16
      %v4021 = vrot.slane %v4019, 4
      %v4022 = vshll.u32 %v3844, 16
      %v4024 = vrot.slane %v4022, 5
      %v4025 = vor.u32 %v4021, %v4024
      %v4026 = vrot.slane %v4025, 4
      %v4028 = vshll.u32 %v3845, 16
      %v4030 = vrot.slane %v4028, 5
      %v4031 = vsel %vm335, %v4026, %v4030
      %v4032 = vshrl.u32 %v3845, 16
      %v4034 = vrot.slane %v4032, 4
      %v4035 = vor.u32 %v4034, %v4030
      %v4036 = vrot.slane %v4035, 4
      %v4038 = vshll.u32 %v3846, 16
      %v4040 = vrot.slane %v4038, 5
      %v4041 = vsel %vm335, %v4036, %v4040
      %v4043 = vshrl.u32 %v3847, 16
      %v4045 = vrot.slane %v4043, 4
      %v4046 = vshll.u32 %v3847, 16
      %v4048 = vrot.slane %v4046, 5
      %v4049 = vor.u32 %v4045, %v4048
      %v4050 = vrot.slane %v4049, 4
      %v4052 = vshll.u32 %v3848, 16
      %v4054 = vrot.slane %v4052, 5
      %v4055 = vsel %vm335, %v4050, %v4054
      %v4056 = vshrl.u32 %v3848, 16
      %v4058 = vrot.slane %v4056, 4
      %v4059 = vor.u32 %v4058, %v4054
      %v4060 = vrot.slane %v4059, 4
      %v4062 = vshll.u32 %v3849, 16
      %v4064 = vrot.slane %v4062, 5
      %v4065 = vsel %vm335, %v4060, %v4064
      %v4067 = vshrl.u32 %v3850, 16
      %v4069 = vrot.slane %v4067, 4
      %v4070 = vshll.u32 %v3850, 16
      %v4072 = vrot.slane %v4070, 5
      %v4073 = vor.u32 %v4069, %v4072
      %v4074 = vrot.slane %v4073, 4
      %v4076 = vshll.u32 %v3851, 16
      %v4078 = vrot.slane %v4076, 5
      %v4079 = vsel %vm335, %v4074, %v4078
      %v4080 = vshrl.u32 %v3851, 16
      %v4082 = vrot.slane %v4080, 4
      %v4083 = vor.u32 %v4082, %v4078
      %v4084 = vrot.slane %v4083, 4
      %v4086 = vshll.u32 %v3852, 16
      %v4088 = vrot.slane %v4086, 5
      %v4089 = vsel %vm335, %v4084, %v4088
      %v4091 = vshrl.u32 %v3853, 16
      %v4093 = vrot.slane %v4091, 4
      %v4094 = vshll.u32 %v3853, 16
      %v4096 = vrot.slane %v4094, 5
      %v4097 = vor.u32 %v4093, %v4096
      %v4098 = vrot.slane %v4097, 4
      %v4100 = vshll.u32 %v3854, 16
      %v4102 = vrot.slane %v4100, 5
      %v4103 = vsel %vm335, %v4098, %v4102
      %v4104 = vshrl.u32 %v3854, 16
      %v4106 = vrot.slane %v4104, 4
      %v4107 = vor.u32 %v4106, %v4102
      %v4108 = vrot.slane %v4107, 4
      %v4110 = vshll.u32 %v3855, 16
      %v4112 = vrot.slane %v4110, 5
      %v4113 = vsel %vm335, %v4108, %v4112
      %v4115 = vshrl.u32 %v3856, 16
      %v4117 = vrot.slane %v4115, 4
      %v4118 = vshll.u32 %v3856, 16
      %v4120 = vrot.slane %v4118, 5
      %v4121 = vor.u32 %v4117, %v4120
      %v4122 = vrot.slane %v4121, 4
      %v4124 = vshll.u32 %v3857, 16
      %v4126 = vrot.slane %v4124, 5
      %v4127 = vsel %vm335, %v4122, %v4126
      %v4128 = vshrl.u32 %v3857, 16
      %v4130 = vrot.slane %v4128, 4
      %v4131 = vor.u32 %v4130, %v4126
      %v4132 = vrot.slane %v4131, 4
      %v4134 = vshll.u32 %v3858, 16
      %v4136 = vrot.slane %v4134, 5
      %v4137 = vsel %vm335, %v4132, %v4136
      %v4139 = vshrl.u32 %v3859, 16
      %v4141 = vrot.slane %v4139, 4
      %v4142 = vshll.u32 %v3859, 16
      %v4144 = vrot.slane %v4142, 5
      %v4145 = vor.u32 %v4141, %v4144
      %v4146 = vrot.slane %v4145, 4
      %v4148 = vshll.u32 %v3860, 16
      %v4150 = vrot.slane %v4148, 5
      %v4151 = vsel %vm335, %v4146, %v4150
      %v4152 = vshrl.u32 %v3860, 16
      %v4154 = vrot.slane %v4152, 4
      %v4155 = vor.u32 %v4154, %v4150
      %v4156 = vrot.slane %v4155, 4
      %v4158 = vshll.u32 %v3861, 16
      %v4160 = vrot.slane %v4158, 5
      %v4161 = vsel %vm335, %v4156, %v4160
      %v4163 = vshrl.u32 %v3862, 16
      %v4165 = vrot.slane %v4163, 4
      %v4166 = vshll.u32 %v3862, 16
      %v4168 = vrot.slane %v4166, 5
      %v4169 = vor.u32 %v4165, %v4168
      %v4170 = vrot.slane %v4169, 4
      %v4172 = vshll.u32 %v3863, 16
      %v4174 = vrot.slane %v4172, 5
      %v4175 = vsel %vm335, %v4170, %v4174
      %v4176 = vshrl.u32 %v3863, 16
      %v4178 = vrot.slane %v4176, 4
      %v4179 = vor.u32 %v4178, %v4174
      %v4180 = vrot.slane %v4179, 4
      %v4182 = vshll.u32 %v3864, 16
      %v4184 = vrot.slane %v4182, 5
      %v4185 = vsel %vm335, %v4180, %v4184
      %v4187 = vshrl.u32 %v3865, 16
      %v4189 = vrot.slane %v4187, 4
      %v4190 = vshll.u32 %v3865, 16
      %v4192 = vrot.slane %v4190, 5
      %v4193 = vor.u32 %v4189, %v4192
      %v4194 = vrot.slane %v4193, 4
      %v4196 = vshll.u32 %v3866, 16
      %v4198 = vrot.slane %v4196, 5
      %v4199 = vsel %vm335, %v4194, %v4198
      %v4200 = vshrl.u32 %v3866, 16
      %v4202 = vrot.slane %v4200, 4
      %v4203 = vor.u32 %v4202, %v4198
      %v4204 = vrot.slane %v4203, 4
      %v4206 = vshll.u32 %v3867, 16
      %v4208 = vrot.slane %v4206, 5
      %v4209 = vsel %vm335, %v4204, %v4208
      %v4211 = vshrl.u32 %v3868, 16
      %v4213 = vrot.slane %v4211, 4
      %v4214 = vshll.u32 %v3868, 16
      %v4216 = vrot.slane %v4214, 5
      %v4217 = vor.u32 %v4213, %v4216
      %v4218 = vrot.slane %v4217, 4
      %v4220 = vshll.u32 %v3869, 16
      %v4222 = vrot.slane %v4220, 5
      %v4223 = vsel %vm335, %v4218, %v4222
      %v4224 = vshrl.u32 %v3869, 16
      %v4226 = vrot.slane %v4224, 4
      %v4227 = vor.u32 %v4226, %v4222
      %v4228 = vrot.slane %v4227, 4
      %v4230 = vshll.u32 %v3870, 16
      %v4232 = vrot.slane %v4230, 5
      %v4233 = vsel %vm335, %v4228, %v4232
      %v4235 = vshrl.u32 %v3871, 16
      %v4237 = vrot.slane %v4235, 4
      %v4238 = vshll.u32 %v3871, 16
      %v4240 = vrot.slane %v4238, 5
      %v4241 = vor.u32 %v4237, %v4240
      %v4242 = vrot.slane %v4241, 4
      %v4244 = vshll.u32 %v3872, 16
      %v4246 = vrot.slane %v4244, 5
      %v4247 = vsel %vm335, %v4242, %v4246
      %v4248 = vshrl.u32 %v3872, 16
      %v4250 = vrot.slane %v4248, 4
      %v4251 = vor.u32 %v4250, %v4246
      %v4252 = vrot.slane %v4251, 4
      %v4254 = vshll.u32 %v3873, 16
      %v4256 = vrot.slane %v4254, 5
      %v4257 = vsel %vm335, %v4252, %v4256
      %s4258 = scalar_lea.vmem %s247, 448
      %v4259 = vld [vmem:[%s4258] sm:$0xf]
      %v4260 = vld [vmem:[%s4258 + $0x4] sm:$0xf]
      %v4261 = vld [vmem:[%s4258 + $0x8] sm:$0xf]
      %v4262 = vld [vmem:[%s4258 + $0xc] sm:$0xf]
      %v4263 = vld [vmem:[%s4258 + $0x10] sm:$0xf]
      %v4264 = vld [vmem:[%s4258 + $0x14] sm:$0xf]
      %v4265 = vld [vmem:[%s4258 + $0x18] sm:$0xf]
      %v4266 = vld [vmem:[%s4258 + $0x1c] sm:$0xf]
      %v4267 = vld [vmem:[%s4258 + $0x20] sm:$0xf]
      %v4268 = vld [vmem:[%s4258 + $0x24] sm:$0xf]
      %v4269 = vld [vmem:[%s4258 + $0x28] sm:$0xf]
      %v4270 = vld [vmem:[%s4258 + $0x2c] sm:$0xf]
      %v4271 = vld [vmem:[%s4258 + $0x30] sm:$0xf]
      %v4272 = vld [vmem:[%s4258 + $0x34] sm:$0xf]
      %v4273 = vld [vmem:[%s4258 + $0x38] sm:$0xf]
      %v4274 = vld [vmem:[%s4258 + $0x3c] sm:$0xf]
      %v4275 = vunpack.c.l.b16 %v3887
      %v4276 = vunpack.c.l.b16 %v3897
      %v4277 = vunpack.c.l.b16 %v3911
      %v4278 = vunpack.c.l.b16 %v3921
      %v4279 = vunpack.c.l.b16 %v3935
      %v4280 = vunpack.c.l.b16 %v3945
      %v4281 = vunpack.c.l.b16 %v3959
      %v4282 = vunpack.c.l.b16 %v3969
      %v4283 = vunpack.c.l.b16 %v3983
      %v4284 = vunpack.c.l.b16 %v3993
      %v4285 = vunpack.c.l.b16 %v4007
      %v4286 = vunpack.c.l.b16 %v4017
      %v4287 = vunpack.c.l.b16 %v4031
      %v4288 = vunpack.c.l.b16 %v4041
      %v4289 = vunpack.c.l.b16 %v4055
      %v4290 = vunpack.c.l.b16 %v4065
      %v4291 = vunpack.c.l.b16 %v4079
      %v4292 = vunpack.c.l.b16 %v4089
      %v4293 = vunpack.c.l.b16 %v4103
      %v4294 = vunpack.c.l.b16 %v4113
      %v4295 = vunpack.c.l.b16 %v4127
      %v4296 = vunpack.c.l.b16 %v4137
      %v4297 = vunpack.c.l.b16 %v4151
      %v4298 = vunpack.c.l.b16 %v4161
      %v4299 = vunpack.c.l.b16 %v4175
      %v4300 = vunpack.c.l.b16 %v4185
      %v4301 = vunpack.c.l.b16 %v4199
      %v4302 = vunpack.c.l.b16 %v4209
      %v4303 = vunpack.c.l.b16 %v4223
      %v4304 = vunpack.c.l.b16 %v4233
      %v4305 = vunpack.c.l.b16 %v4247
      %v4306 = vunpack.c.l.b16 %v4257
      %v4307 = vpack.c.b16 %v4276, %v4275
      %v4308 = vpack.c.b16 %v4278, %v4277
      %v4309 = vpack.c.b16 %v4280, %v4279
      %v4310 = vpack.c.b16 %v4282, %v4281
      %v4311 = vpack.c.b16 %v4284, %v4283
      %v4312 = vpack.c.b16 %v4286, %v4285
      %v4313 = vpack.c.b16 %v4288, %v4287
      %v4314 = vpack.c.b16 %v4290, %v4289
      %v4315 = vpack.c.b16 %v4292, %v4291
      %v4316 = vpack.c.b16 %v4294, %v4293
      %v4317 = vpack.c.b16 %v4296, %v4295
      %v4318 = vpack.c.b16 %v4298, %v4297
      %v4319 = vpack.c.b16 %v4300, %v4299
      %v4320 = vpack.c.b16 %v4302, %v4301
      %v4321 = vpack.c.b16 %v4304, %v4303
      %v4322 = vpack.c.b16 %v4306, %v4305
      %v4355 = vunpack.c.l.b16 %v4259
      %v4356 = vunpack.c.l.b16 %v4260
      %v4357 = vunpack.c.l.b16 %v4261
      %v4358 = vunpack.c.l.b16 %v4262
      %v4359 = vunpack.c.l.b16 %v4263
      %v4360 = vunpack.c.l.b16 %v4264
      %v4361 = vunpack.c.l.b16 %v4265
      %v4362 = vunpack.c.l.b16 %v4266
      %v4363 = vunpack.c.l.b16 %v4267
      %v4364 = vunpack.c.l.b16 %v4268
      %v4365 = vunpack.c.l.b16 %v4269
      %v4366 = vunpack.c.l.b16 %v4270
      %v4367 = vunpack.c.l.b16 %v4271
      %v4368 = vunpack.c.l.b16 %v4272
      %v4369 = vunpack.c.l.b16 %v4273
      %v4370 = vunpack.c.l.b16 %v4274
      %v4371 = vpack.c.b16 %v4356, %v4355
      %v4372 = vpack.c.b16 %v4358, %v4357
      %v4373 = vpack.c.b16 %v4360, %v4359
      %v4374 = vpack.c.b16 %v4362, %v4361
      %v4375 = vpack.c.b16 %v4364, %v4363
      %v4376 = vpack.c.b16 %v4366, %v4365
      %v4377 = vpack.c.b16 %v4368, %v4367
      %v4378 = vpack.c.b16 %v4370, %v4369
      %4387 = vmatprep.subr.bf16.mxu0 0
      %4388 = vmatpush1.bf16.msra.mxu0 %v4378
      %4389 = vmatprep.subr.bf16.mxu0 0
      %4390 = vmatpush1.bf16.msra.mxu0 %v4377
      %4391 = vmatprep.subr.bf16.mxu0 0
      %4392 = vmatpush1.bf16.msra.mxu0 %v4376
      %4393 = vmatprep.subr.bf16.mxu0 0
      %4394 = vmatpush1.bf16.msra.mxu0 %v4375
      %4395 = vmatprep.subr.bf16.mxu0 0
      %4396 = vmatpush1.bf16.msra.mxu0 %v4374
      %4397 = vmatprep.subr.bf16.mxu0 0
      %4398 = vmatpush1.bf16.msra.mxu0 %v4373
      %4399 = vmatprep.subr.bf16.mxu0 0
      %4400 = vmatpush1.bf16.msra.mxu0 %v4372
      %4401 = vmatprep.subr.bf16.mxu0 0
      %4402 = vmatpush1.bf16.msra.mxu0 %v4371
      %4403 = vmatprep.subr.bf16.mxu0 0
      %4404 = vmatpush2.bf16.msra.mxu0 0
      %4405 = vmatprep.subr.bf16.mxu0 0
      %4406 = vmatpush2.bf16.msra.mxu0 0
      %4407 = vmatprep.subr.bf16.mxu0 0
      %4408 = vmatpush2.bf16.msra.mxu0 0
      %4409 = vmatprep.subr.bf16.mxu0 0
      %4410 = vmatpush2.bf16.msra.mxu0 0
      %4411 = vmatprep.subr.bf16.mxu0 0
      %4412 = vmatpush2.bf16.msra.mxu0 0
      %4413 = vmatprep.subr.bf16.mxu0 0
      %4414 = vmatpush2.bf16.msra.mxu0 0
      %4415 = vmatprep.subr.bf16.mxu0 0
      %4416 = vmatpush2.bf16.msra.mxu0 0
      %4417 = vmatprep.subr.bf16.mxu0 0
      %4418 = vmatpush2.bf16.msra.mxu0 0
      %4419 = vmatprep.mubr.bf16.mxu0 0
      %4420 = vmatmul.mubr.bf16.gmra.mxu0 %v4307
      %v4421 = vpop.f32.mrf.mxu0
      %v4422 = vadd.f32 0.0, %v4421
      %v4423 = vpop.f32.mrf.mxu0
      %v4424 = vpop.f32.mrf.mxu0
      %v4425 = vadd.f32 0.0, %v4424
      %v4426 = vpop.f32.mrf.mxu0
      %4427 = vmatprep.mubr.bf16.mxu0 0
      %4428 = vmatmul.mubr.bf16.gmra.mxu0 %v4308
      %v4429 = vpop.f32.mrf.mxu0
      %v4430 = vadd.f32 0.0, %v4429
      %v4431 = vpop.f32.mrf.mxu0
      %v4432 = vpop.f32.mrf.mxu0
      %v4433 = vadd.f32 0.0, %v4432
      %v4434 = vpop.f32.mrf.mxu0
      %4435 = vmatprep.mubr.bf16.mxu0 0
      %4436 = vmatmul.mubr.bf16.gmra.mxu0 %v4309
      %v4437 = vpop.f32.mrf.mxu0
      %v4438 = vadd.f32 0.0, %v4437
      %v4439 = vpop.f32.mrf.mxu0
      %v4440 = vpop.f32.mrf.mxu0
      %v4441 = vadd.f32 0.0, %v4440
      %v4442 = vpop.f32.mrf.mxu0
      %4443 = vmatprep.mubr.bf16.mxu0 0
      %4444 = vmatmul.mubr.bf16.gmra.mxu0 %v4310
      %v4445 = vpop.f32.mrf.mxu0
      %v4446 = vadd.f32 0.0, %v4445
      %v4447 = vpop.f32.mrf.mxu0
      %v4448 = vpop.f32.mrf.mxu0
      %v4449 = vadd.f32 0.0, %v4448
      %v4450 = vpop.f32.mrf.mxu0
      %4451 = vmatprep.mubr.bf16.mxu0 0
      %4452 = vmatmul.mubr.bf16.gmra.mxu0 %v4311
      %v4453 = vpop.f32.mrf.mxu0
      %v4454 = vadd.f32 0.0, %v4453
      %v4455 = vpop.f32.mrf.mxu0
      %v4456 = vpop.f32.mrf.mxu0
      %v4457 = vadd.f32 0.0, %v4456
      %v4458 = vpop.f32.mrf.mxu0
      %4459 = vmatprep.mubr.bf16.mxu0 0
      %4460 = vmatmul.mubr.bf16.gmra.mxu0 %v4312
      %v4461 = vpop.f32.mrf.mxu0
      %v4462 = vadd.f32 0.0, %v4461
      %v4463 = vpop.f32.mrf.mxu0
      %v4464 = vpop.f32.mrf.mxu0
      %v4465 = vadd.f32 0.0, %v4464
      %v4466 = vpop.f32.mrf.mxu0
      %4467 = vmatprep.mubr.bf16.mxu0 0
      %4468 = vmatmul.mubr.bf16.gmra.mxu0 %v4313
      %v4469 = vpop.f32.mrf.mxu0
      %v4470 = vadd.f32 0.0, %v4469
      %v4471 = vpop.f32.mrf.mxu0
      %v4472 = vpop.f32.mrf.mxu0
      %v4473 = vadd.f32 0.0, %v4472
      %v4474 = vpop.f32.mrf.mxu0
      %4475 = vmatprep.mubr.bf16.mxu0 0
      %4476 = vmatmul.mubr.bf16.gmra.mxu0 %v4314
      %v4477 = vpop.f32.mrf.mxu0
      %v4478 = vadd.f32 0.0, %v4477
      %v4479 = vpop.f32.mrf.mxu0
      %v4480 = vpop.f32.mrf.mxu0
      %v4481 = vadd.f32 0.0, %v4480
      %v4482 = vpop.f32.mrf.mxu0
      %4483 = vmatprep.mubr.bf16.mxu0 0
      %4484 = vmatmul.mubr.bf16.gmra.mxu0 %v4315
      %v4485 = vpop.f32.mrf.mxu0
      %v4486 = vadd.f32 0.0, %v4485
      %v4487 = vpop.f32.mrf.mxu0
      %v4488 = vpop.f32.mrf.mxu0
      %v4489 = vadd.f32 0.0, %v4488
      %v4490 = vpop.f32.mrf.mxu0
      %4491 = vmatprep.mubr.bf16.mxu0 0
      %4492 = vmatmul.mubr.bf16.gmra.mxu0 %v4316
      %v4493 = vpop.f32.mrf.mxu0
      %v4494 = vadd.f32 0.0, %v4493
      %v4495 = vpop.f32.mrf.mxu0
      %v4496 = vpop.f32.mrf.mxu0
      %v4497 = vadd.f32 0.0, %v4496
      %v4498 = vpop.f32.mrf.mxu0
      %4499 = vmatprep.mubr.bf16.mxu0 0
      %4500 = vmatmul.mubr.bf16.gmra.mxu0 %v4317
      %v4501 = vpop.f32.mrf.mxu0
      %v4502 = vadd.f32 0.0, %v4501
      %v4503 = vpop.f32.mrf.mxu0
      %v4504 = vpop.f32.mrf.mxu0
      %v4505 = vadd.f32 0.0, %v4504
      %v4506 = vpop.f32.mrf.mxu0
      %4507 = vmatprep.mubr.bf16.mxu0 0
      %4508 = vmatmul.mubr.bf16.gmra.mxu0 %v4318
      %v4509 = vpop.f32.mrf.mxu0
      %v4510 = vadd.f32 0.0, %v4509
      %v4511 = vpop.f32.mrf.mxu0
      %v4512 = vpop.f32.mrf.mxu0
      %v4513 = vadd.f32 0.0, %v4512
      %v4514 = vpop.f32.mrf.mxu0
      %4515 = vmatprep.mubr.bf16.mxu0 0
      %4516 = vmatmul.mubr.bf16.gmra.mxu0 %v4319
      %v4517 = vpop.f32.mrf.mxu0
      %v4518 = vadd.f32 0.0, %v4517
      %v4519 = vpop.f32.mrf.mxu0
      %v4520 = vpop.f32.mrf.mxu0
      %v4521 = vadd.f32 0.0, %v4520
      %v4522 = vpop.f32.mrf.mxu0
      %4523 = vmatprep.mubr.bf16.mxu0 0
      %4524 = vmatmul.mubr.bf16.gmra.mxu0 %v4320
      %v4525 = vpop.f32.mrf.mxu0
      %v4526 = vadd.f32 0.0, %v4525
      %v4527 = vpop.f32.mrf.mxu0
      %v4528 = vpop.f32.mrf.mxu0
      %v4529 = vadd.f32 0.0, %v4528
      %v4530 = vpop.f32.mrf.mxu0
      %4531 = vmatprep.mubr.bf16.mxu0 0
      %4532 = vmatmul.mubr.bf16.gmra.mxu0 %v4321
      %v4533 = vpop.f32.mrf.mxu0
      %v4534 = vadd.f32 0.0, %v4533
      %v4535 = vpop.f32.mrf.mxu0
      %v4536 = vpop.f32.mrf.mxu0
      %v4537 = vadd.f32 0.0, %v4536
      %v4538 = vpop.f32.mrf.mxu0
      %4539 = vmatprep.mubr.bf16.mxu0 0
      %4540 = vmatmul.mubr.bf16.gmra.mxu0 %v4322
      %v4541 = vpop.f32.mrf.mxu0
      %v4542 = vadd.f32 0.0, %v4541
      %v4543 = vpop.f32.mrf.mxu0
      %v4544 = vpop.f32.mrf.mxu0
      %v4545 = vadd.f32 0.0, %v4544
      %v4546 = vpop.f32.mrf.mxu0
      %4547 = vdwg.mxu0
      %v4548 = vadd.f32 %v3794, %v4422
      %v4549 = vadd.f32 %v3795, %v4425
      %v4550 = vadd.f32 %v3796, %v4430
      %v4551 = vadd.f32 %v3797, %v4433
      %v4552 = vadd.f32 %v3798, %v4438
      %v4553 = vadd.f32 %v3799, %v4441
      %v4554 = vadd.f32 %v3800, %v4446
      %v4555 = vadd.f32 %v3801, %v4449
      %v4556 = vadd.f32 %v3802, %v4454
      %v4557 = vadd.f32 %v3803, %v4457
      %v4558 = vadd.f32 %v3804, %v4462
      %v4559 = vadd.f32 %v3805, %v4465
      %v4560 = vadd.f32 %v3806, %v4470
      %v4561 = vadd.f32 %v3807, %v4473
      %v4562 = vadd.f32 %v3808, %v4478
      %v4563 = vadd.f32 %v3809, %v4481
      %v4564 = vadd.f32 %v3810, %v4486
      %v4565 = vadd.f32 %v3811, %v4489
      %v4566 = vadd.f32 %v3812, %v4494
      %v4567 = vadd.f32 %v3813, %v4497
      %v4568 = vadd.f32 %v3814, %v4502
      %v4569 = vadd.f32 %v3815, %v4505
      %v4570 = vadd.f32 %v3816, %v4510
      %v4571 = vadd.f32 %v3817, %v4513
      %v4572 = vadd.f32 %v3818, %v4518
      %v4573 = vadd.f32 %v3819, %v4521
      %v4574 = vadd.f32 %v3820, %v4526
      %v4575 = vadd.f32 %v3821, %v4529
      %v4576 = vadd.f32 %v3822, %v4534
      %v4577 = vadd.f32 %v3823, %v4537
      %v4578 = vadd.f32 %v3824, %v4542
      %v4579 = vadd.f32 %v3825, %v4545
      %v4580 = vld [vmem:[%s3439] sm:$0xe]
      %v4581 = vld [vmem:[%s3439 + $0xc] sm:$0xe]
      %v4582 = vld [vmem:[%s3439 + $0x18] sm:$0xe]
      %v4583 = vld [vmem:[%s3439 + $0x24] sm:$0xe]
      %v4584 = vld [vmem:[%s3439 + $0x30] sm:$0xe]
      %v4585 = vld [vmem:[%s3439 + $0x3c] sm:$0xe]
      %v4586 = vld [vmem:[%s3439 + $0x48] sm:$0xe]
      %v4587 = vld [vmem:[%s3439 + $0x54] sm:$0xe]
      %v4588 = vld [vmem:[%s3439 + $0x60] sm:$0xe]
      %v4589 = vld [vmem:[%s3439 + $0x6c] sm:$0xe]
      %v4590 = vld [vmem:[%s3439 + $0x78] sm:$0xe]
      %v4591 = vld [vmem:[%s3439 + $0x84] sm:$0xe]
      %v4592 = vld [vmem:[%s3439 + $0x90] sm:$0xe]
      %v4593 = vld [vmem:[%s3439 + $0x9c] sm:$0xe]
      %v4594 = vld [vmem:[%s3439 + $0xa8] sm:$0xe]
      %v4595 = vld [vmem:[%s3439 + $0xb4] sm:$0xe]
      %v4644 = vrot.slane %v4580, 5
      %v4645 = vrot.slane %v4644, 4
      %v4646 = vrot.slane %v3827, 5
      %v4647 = vsel %vm1365, %v4645, %v4646
      %v4648 = vrot.slane %v4646, 4
      %v4649 = vrot.slane %v3828, 5
      %v4650 = vsel %vm1365, %v4648, %v4649
      %v4651 = vrot.slane %v4581, 5
      %v4652 = vrot.slane %v4651, 4
      %v4653 = vrot.slane %v3830, 5
      %v4654 = vsel %vm1365, %v4652, %v4653
      %v4655 = vrot.slane %v4653, 4
      %v4656 = vrot.slane %v3831, 5
      %v4657 = vsel %vm1365, %v4655, %v4656
      %v4658 = vrot.slane %v4582, 5
      %v4659 = vrot.slane %v4658, 4
      %v4660 = vrot.slane %v3833, 5
      %v4661 = vsel %vm1365, %v4659, %v4660
      %v4662 = vrot.slane %v4660, 4
      %v4663 = vrot.slane %v3834, 5
      %v4664 = vsel %vm1365, %v4662, %v4663
      %v4665 = vrot.slane %v4583, 5
      %v4666 = vrot.slane %v4665, 4
      %v4667 = vrot.slane %v3836, 5
      %v4668 = vsel %vm1365, %v4666, %v4667
      %v4669 = vrot.slane %v4667, 4
      %v4670 = vrot.slane %v3837, 5
      %v4671 = vsel %vm1365, %v4669, %v4670
      %v4672 = vrot.slane %v4584, 5
      %v4673 = vrot.slane %v4672, 4
      %v4674 = vrot.slane %v3839, 5
      %v4675 = vsel %vm1365, %v4673, %v4674
      %v4676 = vrot.slane %v4674, 4
      %v4677 = vrot.slane %v3840, 5
      %v4678 = vsel %vm1365, %v4676, %v4677
      %v4679 = vrot.slane %v4585, 5
      %v4680 = vrot.slane %v4679, 4
      %v4681 = vrot.slane %v3842, 5
      %v4682 = vsel %vm1365, %v4680, %v4681
      %v4683 = vrot.slane %v4681, 4
      %v4684 = vrot.slane %v3843, 5
      %v4685 = vsel %vm1365, %v4683, %v4684
      %v4686 = vrot.slane %v4586, 5
      %v4687 = vrot.slane %v4686, 4
      %v4688 = vrot.slane %v3845, 5
      %v4689 = vsel %vm1365, %v4687, %v4688
      %v4690 = vrot.slane %v4688, 4
      %v4691 = vrot.slane %v3846, 5
      %v4692 = vsel %vm1365, %v4690, %v4691
      %v4693 = vrot.slane %v4587, 5
      %v4694 = vrot.slane %v4693, 4
      %v4695 = vrot.slane %v3848, 5
      %v4696 = vsel %vm1365, %v4694, %v4695
      %v4697 = vrot.slane %v4695, 4
      %v4698 = vrot.slane %v3849, 5
      %v4699 = vsel %vm1365, %v4697, %v4698
      %v4700 = vrot.slane %v4588, 5
      %v4701 = vrot.slane %v4700, 4
      %v4702 = vrot.slane %v3851, 5
      %v4703 = vsel %vm1365, %v4701, %v4702
      %v4704 = vrot.slane %v4702, 4
      %v4705 = vrot.slane %v3852, 5
      %v4706 = vsel %vm1365, %v4704, %v4705
      %v4707 = vrot.slane %v4589, 5
      %v4708 = vrot.slane %v4707, 4
      %v4709 = vrot.slane %v3854, 5
      %v4710 = vsel %vm1365, %v4708, %v4709
      %v4711 = vrot.slane %v4709, 4
      %v4712 = vrot.slane %v3855, 5
      %v4713 = vsel %vm1365, %v4711, %v4712
      %v4714 = vrot.slane %v4590, 5
      %v4715 = vrot.slane %v4714, 4
      %v4716 = vrot.slane %v3857, 5
      %v4717 = vsel %vm1365, %v4715, %v4716
      %v4718 = vrot.slane %v4716, 4
      %v4719 = vrot.slane %v3858, 5
      %v4720 = vsel %vm1365, %v4718, %v4719
      %v4721 = vrot.slane %v4591, 5
      %v4722 = vrot.slane %v4721, 4
      %v4723 = vrot.slane %v3860, 5
      %v4724 = vsel %vm1365, %v4722, %v4723
      %v4725 = vrot.slane %v4723, 4
      %v4726 = vrot.slane %v3861, 5
      %v4727 = vsel %vm1365, %v4725, %v4726
      %v4728 = vrot.slane %v4592, 5
      %v4729 = vrot.slane %v4728, 4
      %v4730 = vrot.slane %v3863, 5
      %v4731 = vsel %vm1365, %v4729, %v4730
      %v4732 = vrot.slane %v4730, 4
      %v4733 = vrot.slane %v3864, 5
      %v4734 = vsel %vm1365, %v4732, %v4733
      %v4735 = vrot.slane %v4593, 5
      %v4736 = vrot.slane %v4735, 4
      %v4737 = vrot.slane %v3866, 5
      %v4738 = vsel %vm1365, %v4736, %v4737
      %v4739 = vrot.slane %v4737, 4
      %v4740 = vrot.slane %v3867, 5
      %v4741 = vsel %vm1365, %v4739, %v4740
      %v4742 = vrot.slane %v4594, 5
      %v4743 = vrot.slane %v4742, 4
      %v4744 = vrot.slane %v3869, 5
      %v4745 = vsel %vm1365, %v4743, %v4744
      %v4746 = vrot.slane %v4744, 4
      %v4747 = vrot.slane %v3870, 5
      %v4748 = vsel %vm1365, %v4746, %v4747
      %v4749 = vrot.slane %v4595, 5
      %v4750 = vrot.slane %v4749, 4
      %v4751 = vrot.slane %v3872, 5
      %v4752 = vsel %vm1365, %v4750, %v4751
      %v4753 = vrot.slane %v4751, 4
      %v4754 = vrot.slane %v3873, 5
      %v4755 = vsel %vm1365, %v4753, %v4754
      %s4756 = scalar_lea.vmem %s247, 512
      %v4757 = vld [vmem:[%s4756] sm:$0xf]
      %v4758 = vld [vmem:[%s4756 + $0x4] sm:$0xf]
      %v4759 = vld [vmem:[%s4756 + $0x8] sm:$0xf]
      %v4760 = vld [vmem:[%s4756 + $0xc] sm:$0xf]
      %v4761 = vld [vmem:[%s4756 + $0x10] sm:$0xf]
      %v4762 = vld [vmem:[%s4756 + $0x14] sm:$0xf]
      %v4763 = vld [vmem:[%s4756 + $0x18] sm:$0xf]
      %v4764 = vld [vmem:[%s4756 + $0x1c] sm:$0xf]
      %v4765 = vld [vmem:[%s4756 + $0x20] sm:$0xf]
      %v4766 = vld [vmem:[%s4756 + $0x24] sm:$0xf]
      %v4767 = vld [vmem:[%s4756 + $0x28] sm:$0xf]
      %v4768 = vld [vmem:[%s4756 + $0x2c] sm:$0xf]
      %v4769 = vld [vmem:[%s4756 + $0x30] sm:$0xf]
      %v4770 = vld [vmem:[%s4756 + $0x34] sm:$0xf]
      %v4771 = vld [vmem:[%s4756 + $0x38] sm:$0xf]
      %v4772 = vld [vmem:[%s4756 + $0x3c] sm:$0xf]
      %v4773 = vunpack.c.l.b16 %v4647
      %v4774 = vunpack.c.l.b16 %v4650
      %v4775 = vunpack.c.l.b16 %v4654
      %v4776 = vunpack.c.l.b16 %v4657
      %v4777 = vunpack.c.l.b16 %v4661
      %v4778 = vunpack.c.l.b16 %v4664
      %v4779 = vunpack.c.l.b16 %v4668
      %v4780 = vunpack.c.l.b16 %v4671
      %v4781 = vunpack.c.l.b16 %v4675
      %v4782 = vunpack.c.l.b16 %v4678
      %v4783 = vunpack.c.l.b16 %v4682
      %v4784 = vunpack.c.l.b16 %v4685
      %v4785 = vunpack.c.l.b16 %v4689
      %v4786 = vunpack.c.l.b16 %v4692
      %v4787 = vunpack.c.l.b16 %v4696
      %v4788 = vunpack.c.l.b16 %v4699
      %v4789 = vunpack.c.l.b16 %v4703
      %v4790 = vunpack.c.l.b16 %v4706
      %v4791 = vunpack.c.l.b16 %v4710
      %v4792 = vunpack.c.l.b16 %v4713
      %v4793 = vunpack.c.l.b16 %v4717
      %v4794 = vunpack.c.l.b16 %v4720
      %v4795 = vunpack.c.l.b16 %v4724
      %v4796 = vunpack.c.l.b16 %v4727
      %v4797 = vunpack.c.l.b16 %v4731
      %v4798 = vunpack.c.l.b16 %v4734
      %v4799 = vunpack.c.l.b16 %v4738
      %v4800 = vunpack.c.l.b16 %v4741
      %v4801 = vunpack.c.l.b16 %v4745
      %v4802 = vunpack.c.l.b16 %v4748
      %v4803 = vunpack.c.l.b16 %v4752
      %v4804 = vunpack.c.l.b16 %v4755
      %v4805 = vpack.c.b16 %v4774, %v4773
      %v4806 = vpack.c.b16 %v4776, %v4775
      %v4807 = vpack.c.b16 %v4778, %v4777
      %v4808 = vpack.c.b16 %v4780, %v4779
      %v4809 = vpack.c.b16 %v4782, %v4781
      %v4810 = vpack.c.b16 %v4784, %v4783
      %v4811 = vpack.c.b16 %v4786, %v4785
      %v4812 = vpack.c.b16 %v4788, %v4787
      %v4813 = vpack.c.b16 %v4790, %v4789
      %v4814 = vpack.c.b16 %v4792, %v4791
      %v4815 = vpack.c.b16 %v4794, %v4793
      %v4816 = vpack.c.b16 %v4796, %v4795
      %v4817 = vpack.c.b16 %v4798, %v4797
      %v4818 = vpack.c.b16 %v4800, %v4799
      %v4819 = vpack.c.b16 %v4802, %v4801
      %v4820 = vpack.c.b16 %v4804, %v4803
      %v4853 = vunpack.c.l.b16 %v4757
      %v4854 = vunpack.c.l.b16 %v4758
      %v4855 = vunpack.c.l.b16 %v4759
      %v4856 = vunpack.c.l.b16 %v4760
      %v4857 = vunpack.c.l.b16 %v4761
      %v4858 = vunpack.c.l.b16 %v4762
      %v4859 = vunpack.c.l.b16 %v4763
      %v4860 = vunpack.c.l.b16 %v4764
      %v4861 = vunpack.c.l.b16 %v4765
      %v4862 = vunpack.c.l.b16 %v4766
      %v4863 = vunpack.c.l.b16 %v4767
      %v4864 = vunpack.c.l.b16 %v4768
      %v4865 = vunpack.c.l.b16 %v4769
      %v4866 = vunpack.c.l.b16 %v4770
      %v4867 = vunpack.c.l.b16 %v4771
      %v4868 = vunpack.c.l.b16 %v4772
      %v4869 = vpack.c.b16 %v4854, %v4853
      %v4870 = vpack.c.b16 %v4856, %v4855
      %v4871 = vpack.c.b16 %v4858, %v4857
      %v4872 = vpack.c.b16 %v4860, %v4859
      %v4873 = vpack.c.b16 %v4862, %v4861
      %v4874 = vpack.c.b16 %v4864, %v4863
      %v4875 = vpack.c.b16 %v4866, %v4865
      %v4876 = vpack.c.b16 %v4868, %v4867
      %4885 = vmatprep.subr.bf16.mxu0 0
      %4886 = vmatpush1.bf16.msra.mxu0 %v4876
      %4887 = vmatprep.subr.bf16.mxu0 0
      %4888 = vmatpush1.bf16.msra.mxu0 %v4875
      %4889 = vmatprep.subr.bf16.mxu0 0
      %4890 = vmatpush1.bf16.msra.mxu0 %v4874
      %4891 = vmatprep.subr.bf16.mxu0 0
      %4892 = vmatpush1.bf16.msra.mxu0 %v4873
      %4893 = vmatprep.subr.bf16.mxu0 0
      %4894 = vmatpush1.bf16.msra.mxu0 %v4872
      %4895 = vmatprep.subr.bf16.mxu0 0
      %4896 = vmatpush1.bf16.msra.mxu0 %v4871
      %4897 = vmatprep.subr.bf16.mxu0 0
      %4898 = vmatpush1.bf16.msra.mxu0 %v4870
      %4899 = vmatprep.subr.bf16.mxu0 0
      %4900 = vmatpush1.bf16.msra.mxu0 %v4869
      %4901 = vmatprep.subr.bf16.mxu0 0
      %4902 = vmatpush2.bf16.msra.mxu0 0
      %4903 = vmatprep.subr.bf16.mxu0 0
      %4904 = vmatpush2.bf16.msra.mxu0 0
      %4905 = vmatprep.subr.bf16.mxu0 0
      %4906 = vmatpush2.bf16.msra.mxu0 0
      %4907 = vmatprep.subr.bf16.mxu0 0
      %4908 = vmatpush2.bf16.msra.mxu0 0
      %4909 = vmatprep.subr.bf16.mxu0 0
      %4910 = vmatpush2.bf16.msra.mxu0 0
      %4911 = vmatprep.subr.bf16.mxu0 0
      %4912 = vmatpush2.bf16.msra.mxu0 0
      %4913 = vmatprep.subr.bf16.mxu0 0
      %4914 = vmatpush2.bf16.msra.mxu0 0
      %4915 = vmatprep.subr.bf16.mxu0 0
      %4916 = vmatpush2.bf16.msra.mxu0 0
      %4917 = vmatprep.mubr.bf16.mxu0 0
      %4918 = vmatmul.mubr.bf16.gmra.mxu0 %v4805
      %v4919 = vpop.f32.mrf.mxu0
      %v4920 = vadd.f32 0.0, %v4919
      %v4921 = vpop.f32.mrf.mxu0
      %v4922 = vpop.f32.mrf.mxu0
      %v4923 = vadd.f32 0.0, %v4922
      %v4924 = vpop.f32.mrf.mxu0
      %4925 = vmatprep.mubr.bf16.mxu0 0
      %4926 = vmatmul.mubr.bf16.gmra.mxu0 %v4806
      %v4927 = vpop.f32.mrf.mxu0
      %v4928 = vadd.f32 0.0, %v4927
      %v4929 = vpop.f32.mrf.mxu0
      %v4930 = vpop.f32.mrf.mxu0
      %v4931 = vadd.f32 0.0, %v4930
      %v4932 = vpop.f32.mrf.mxu0
      %4933 = vmatprep.mubr.bf16.mxu0 0
      %4934 = vmatmul.mubr.bf16.gmra.mxu0 %v4807
      %v4935 = vpop.f32.mrf.mxu0
      %v4936 = vadd.f32 0.0, %v4935
      %v4937 = vpop.f32.mrf.mxu0
      %v4938 = vpop.f32.mrf.mxu0
      %v4939 = vadd.f32 0.0, %v4938
      %v4940 = vpop.f32.mrf.mxu0
      %4941 = vmatprep.mubr.bf16.mxu0 0
      %4942 = vmatmul.mubr.bf16.gmra.mxu0 %v4808
      %v4943 = vpop.f32.mrf.mxu0
      %v4944 = vadd.f32 0.0, %v4943
      %v4945 = vpop.f32.mrf.mxu0
      %v4946 = vpop.f32.mrf.mxu0
      %v4947 = vadd.f32 0.0, %v4946
      %v4948 = vpop.f32.mrf.mxu0
      %4949 = vmatprep.mubr.bf16.mxu0 0
      %4950 = vmatmul.mubr.bf16.gmra.mxu0 %v4809
      %v4951 = vpop.f32.mrf.mxu0
      %v4952 = vadd.f32 0.0, %v4951
      %v4953 = vpop.f32.mrf.mxu0
      %v4954 = vpop.f32.mrf.mxu0
      %v4955 = vadd.f32 0.0, %v4954
      %v4956 = vpop.f32.mrf.mxu0
      %4957 = vmatprep.mubr.bf16.mxu0 0
      %4958 = vmatmul.mubr.bf16.gmra.mxu0 %v4810
      %v4959 = vpop.f32.mrf.mxu0
      %v4960 = vadd.f32 0.0, %v4959
      %v4961 = vpop.f32.mrf.mxu0
      %v4962 = vpop.f32.mrf.mxu0
      %v4963 = vadd.f32 0.0, %v4962
      %v4964 = vpop.f32.mrf.mxu0
      %4965 = vmatprep.mubr.bf16.mxu0 0
      %4966 = vmatmul.mubr.bf16.gmra.mxu0 %v4811
      %v4967 = vpop.f32.mrf.mxu0
      %v4968 = vadd.f32 0.0, %v4967
      %v4969 = vpop.f32.mrf.mxu0
      %v4970 = vpop.f32.mrf.mxu0
      %v4971 = vadd.f32 0.0, %v4970
      %v4972 = vpop.f32.mrf.mxu0
      %4973 = vmatprep.mubr.bf16.mxu0 0
      %4974 = vmatmul.mubr.bf16.gmra.mxu0 %v4812
      %v4975 = vpop.f32.mrf.mxu0
      %v4976 = vadd.f32 0.0, %v4975
      %v4977 = vpop.f32.mrf.mxu0
      %v4978 = vpop.f32.mrf.mxu0
      %v4979 = vadd.f32 0.0, %v4978
      %v4980 = vpop.f32.mrf.mxu0
      %4981 = vmatprep.mubr.bf16.mxu0 0
      %4982 = vmatmul.mubr.bf16.gmra.mxu0 %v4813
      %v4983 = vpop.f32.mrf.mxu0
      %v4984 = vadd.f32 0.0, %v4983
      %v4985 = vpop.f32.mrf.mxu0
      %v4986 = vpop.f32.mrf.mxu0
      %v4987 = vadd.f32 0.0, %v4986
      %v4988 = vpop.f32.mrf.mxu0
      %4989 = vmatprep.mubr.bf16.mxu0 0
      %4990 = vmatmul.mubr.bf16.gmra.mxu0 %v4814
      %v4991 = vpop.f32.mrf.mxu0
      %v4992 = vadd.f32 0.0, %v4991
      %v4993 = vpop.f32.mrf.mxu0
      %v4994 = vpop.f32.mrf.mxu0
      %v4995 = vadd.f32 0.0, %v4994
      %v4996 = vpop.f32.mrf.mxu0
      %4997 = vmatprep.mubr.bf16.mxu0 0
      %4998 = vmatmul.mubr.bf16.gmra.mxu0 %v4815
      %v4999 = vpop.f32.mrf.mxu0
      %v5000 = vadd.f32 0.0, %v4999
      %v5001 = vpop.f32.mrf.mxu0
      %v5002 = vpop.f32.mrf.mxu0
      %v5003 = vadd.f32 0.0, %v5002
      %v5004 = vpop.f32.mrf.mxu0
      %5005 = vmatprep.mubr.bf16.mxu0 0
      %5006 = vmatmul.mubr.bf16.gmra.mxu0 %v4816
      %v5007 = vpop.f32.mrf.mxu0
      %v5008 = vadd.f32 0.0, %v5007
      %v5009 = vpop.f32.mrf.mxu0
      %v5010 = vpop.f32.mrf.mxu0
      %v5011 = vadd.f32 0.0, %v5010
      %v5012 = vpop.f32.mrf.mxu0
      %5013 = vmatprep.mubr.bf16.mxu0 0
      %5014 = vmatmul.mubr.bf16.gmra.mxu0 %v4817
      %v5015 = vpop.f32.mrf.mxu0
      %v5016 = vadd.f32 0.0, %v5015
      %v5017 = vpop.f32.mrf.mxu0
      %v5018 = vpop.f32.mrf.mxu0
      %v5019 = vadd.f32 0.0, %v5018
      %v5020 = vpop.f32.mrf.mxu0
      %5021 = vmatprep.mubr.bf16.mxu0 0
      %5022 = vmatmul.mubr.bf16.gmra.mxu0 %v4818
      %v5023 = vpop.f32.mrf.mxu0
      %v5024 = vadd.f32 0.0, %v5023
      %v5025 = vpop.f32.mrf.mxu0
      %v5026 = vpop.f32.mrf.mxu0
      %v5027 = vadd.f32 0.0, %v5026
      %v5028 = vpop.f32.mrf.mxu0
      %5029 = vmatprep.mubr.bf16.mxu0 0
      %5030 = vmatmul.mubr.bf16.gmra.mxu0 %v4819
      %v5031 = vpop.f32.mrf.mxu0
      %v5032 = vadd.f32 0.0, %v5031
      %v5033 = vpop.f32.mrf.mxu0
      %v5034 = vpop.f32.mrf.mxu0
      %v5035 = vadd.f32 0.0, %v5034
      %v5036 = vpop.f32.mrf.mxu0
      %5037 = vmatprep.mubr.bf16.mxu0 0
      %5038 = vmatmul.mubr.bf16.gmra.mxu0 %v4820
      %v5039 = vpop.f32.mrf.mxu0
      %v5040 = vadd.f32 0.0, %v5039
      %v5041 = vpop.f32.mrf.mxu0
      %v5042 = vpop.f32.mrf.mxu0
      %v5043 = vadd.f32 0.0, %v5042
      %v5044 = vpop.f32.mrf.mxu0
      %5045 = vdwg.mxu0
      %v5046 = vadd.f32 %v4548, %v4920
      %v5047 = vadd.f32 %v4549, %v4923
      %v5048 = vadd.f32 %v4550, %v4928
      %v5049 = vadd.f32 %v4551, %v4931
      %v5050 = vadd.f32 %v4552, %v4936
      %v5051 = vadd.f32 %v4553, %v4939
      %v5052 = vadd.f32 %v4554, %v4944
      %v5053 = vadd.f32 %v4555, %v4947
      %v5054 = vadd.f32 %v4556, %v4952
      %v5055 = vadd.f32 %v4557, %v4955
      %v5056 = vadd.f32 %v4558, %v4960
      %v5057 = vadd.f32 %v4559, %v4963
      %v5058 = vadd.f32 %v4560, %v4968
      %v5059 = vadd.f32 %v4561, %v4971
      %v5060 = vadd.f32 %v4562, %v4976
      %v5061 = vadd.f32 %v4563, %v4979
      %v5062 = vadd.f32 %v4564, %v4984
      %v5063 = vadd.f32 %v4565, %v4987
      %v5064 = vadd.f32 %v4566, %v4992
      %v5065 = vadd.f32 %v4567, %v4995
      %v5066 = vadd.f32 %v4568, %v5000
      %v5067 = vadd.f32 %v4569, %v5003
      %v5068 = vadd.f32 %v4570, %v5008
      %v5069 = vadd.f32 %v4571, %v5011
      %v5070 = vadd.f32 %v4572, %v5016
      %v5071 = vadd.f32 %v4573, %v5019
      %v5072 = vadd.f32 %v4574, %v5024
      %v5073 = vadd.f32 %v4575, %v5027
      %v5074 = vadd.f32 %v4576, %v5032
      %v5075 = vadd.f32 %v4577, %v5035
      %v5076 = vadd.f32 %v4578, %v5040
      %v5077 = vadd.f32 %v4579, %v5043
      %v5078 = vpack.c.bf16 %v5047, %v5046
      %v5079 = vpack.c.bf16 %v5049, %v5048
      %v5080 = vpack.c.bf16 %v5051, %v5050
      %v5081 = vpack.c.bf16 %v5053, %v5052
      %v5082 = vpack.c.bf16 %v5055, %v5054
      %v5083 = vpack.c.bf16 %v5057, %v5056
      %v5084 = vpack.c.bf16 %v5059, %v5058
      %v5085 = vpack.c.bf16 %v5061, %v5060
      %v5086 = vpack.c.bf16 %v5063, %v5062
      %v5087 = vpack.c.bf16 %v5065, %v5064
      %v5088 = vpack.c.bf16 %v5067, %v5066
      %v5089 = vpack.c.bf16 %v5069, %v5068
      %v5090 = vpack.c.bf16 %v5071, %v5070
      %v5091 = vpack.c.bf16 %v5073, %v5072
      %v5092 = vpack.c.bf16 %v5075, %v5074
      %v5093 = vpack.c.bf16 %v5077, %v5076
      %v5110 = vunpack.c.l.b16 %v5078
      %v5111 = vunpack.c.h.b16 %v5078
      %v5112 = vunpack.c.l.b16 %v5079
      %v5113 = vunpack.c.h.b16 %v5079
      %v5114 = vunpack.c.l.b16 %v5080
      %v5115 = vunpack.c.h.b16 %v5080
      %v5116 = vunpack.c.l.b16 %v5081
      %v5117 = vunpack.c.h.b16 %v5081
      %v5118 = vunpack.c.l.b16 %v5082
      %v5119 = vunpack.c.h.b16 %v5082
      %v5120 = vunpack.c.l.b16 %v5083
      %v5121 = vunpack.c.h.b16 %v5083
      %v5122 = vunpack.c.l.b16 %v5084
      %v5123 = vunpack.c.h.b16 %v5084
      %v5124 = vunpack.c.l.b16 %v5085
      %v5125 = vunpack.c.h.b16 %v5085
      %v5126 = vunpack.c.l.b16 %v5086
      %v5127 = vunpack.c.h.b16 %v5086
      %v5128 = vunpack.c.l.b16 %v5087
      %v5129 = vunpack.c.h.b16 %v5087
      %v5130 = vunpack.c.l.b16 %v5088
      %v5131 = vunpack.c.h.b16 %v5088
      %v5132 = vunpack.c.l.b16 %v5089
      %v5133 = vunpack.c.h.b16 %v5089
      %v5134 = vunpack.c.l.b16 %v5090
      %v5135 = vunpack.c.h.b16 %v5090
      %v5136 = vunpack.c.l.b16 %v5091
      %v5137 = vunpack.c.h.b16 %v5091
      %v5138 = vunpack.c.l.b16 %v5092
      %v5139 = vunpack.c.h.b16 %v5092
      %v5140 = vunpack.c.l.b16 %v5093
      %v5141 = vunpack.c.h.b16 %v5093
      %v5142 = vpack.c.b16 %v5110, %v5110
      %v5143 = vpack.c.b16 %v5111, %v5111
      %v5144 = vpack.c.b16 %v5112, %v5112
      %v5145 = vpack.c.b16 %v5113, %v5113
      %v5146 = vpack.c.b16 %v5114, %v5114
      %v5147 = vpack.c.b16 %v5115, %v5115
      %v5148 = vpack.c.b16 %v5116, %v5116
      %v5149 = vpack.c.b16 %v5117, %v5117
      %v5150 = vpack.c.b16 %v5118, %v5118
      %v5151 = vpack.c.b16 %v5119, %v5119
      %v5152 = vpack.c.b16 %v5120, %v5120
      %v5153 = vpack.c.b16 %v5121, %v5121
      %v5154 = vpack.c.b16 %v5122, %v5122
      %v5155 = vpack.c.b16 %v5123, %v5123
      %v5156 = vpack.c.b16 %v5124, %v5124
      %v5157 = vpack.c.b16 %v5125, %v5125
      %v5158 = vpack.c.b16 %v5126, %v5126
      %v5159 = vpack.c.b16 %v5127, %v5127
      %v5160 = vpack.c.b16 %v5128, %v5128
      %v5161 = vpack.c.b16 %v5129, %v5129
      %v5162 = vpack.c.b16 %v5130, %v5130
      %v5163 = vpack.c.b16 %v5131, %v5131
      %v5164 = vpack.c.b16 %v5132, %v5132
      %v5165 = vpack.c.b16 %v5133, %v5133
      %v5166 = vpack.c.b16 %v5134, %v5134
      %v5167 = vpack.c.b16 %v5135, %v5135
      %v5168 = vpack.c.b16 %v5136, %v5136
      %v5169 = vpack.c.b16 %v5137, %v5137
      %v5170 = vpack.c.b16 %v5138, %v5138
      %v5171 = vpack.c.b16 %v5139, %v5139
      %v5172 = vpack.c.b16 %v5140, %v5140
      %v5173 = vpack.c.b16 %v5141, %v5141
      %5206 = vst [vmem:[%s255] sm:$0xf] %v5142
      %5207 = vst [vmem:[%s255 + $0x4] sm:$0xf] %v5143
      %5208 = vst [vmem:[%s255 + $0x8] sm:$0xf] %v5144
      %5209 = vst [vmem:[%s255 + $0xc] sm:$0xf] %v5145
      %5210 = vst [vmem:[%s255 + $0x10] sm:$0xf] %v5146
      %5211 = vst [vmem:[%s255 + $0x14] sm:$0xf] %v5147
      %5212 = vst [vmem:[%s255 + $0x18] sm:$0xf] %v5148
      %5213 = vst [vmem:[%s255 + $0x1c] sm:$0xf] %v5149
      %5214 = vst [vmem:[%s255 + $0x20] sm:$0xf] %v5150
      %5215 = vst [vmem:[%s255 + $0x24] sm:$0xf] %v5151
      %5216 = vst [vmem:[%s255 + $0x28] sm:$0xf] %v5152
      %5217 = vst [vmem:[%s255 + $0x2c] sm:$0xf] %v5153
      %5218 = vst [vmem:[%s255 + $0x30] sm:$0xf] %v5154
      %5219 = vst [vmem:[%s255 + $0x34] sm:$0xf] %v5155
      %5220 = vst [vmem:[%s255 + $0x38] sm:$0xf] %v5156
      %5221 = vst [vmem:[%s255 + $0x3c] sm:$0xf] %v5157
      %5222 = vst [vmem:[%s255 + $0x40] sm:$0xf] %v5158
      %5223 = vst [vmem:[%s255 + $0x44] sm:$0xf] %v5159
      %5224 = vst [vmem:[%s255 + $0x48] sm:$0xf] %v5160
      %5225 = vst [vmem:[%s255 + $0x4c] sm:$0xf] %v5161
      %5226 = vst [vmem:[%s255 + $0x50] sm:$0xf] %v5162
      %5227 = vst [vmem:[%s255 + $0x54] sm:$0xf] %v5163
      %5228 = vst [vmem:[%s255 + $0x58] sm:$0xf] %v5164
      %5229 = vst [vmem:[%s255 + $0x5c] sm:$0xf] %v5165
      %5230 = vst [vmem:[%s255 + $0x60] sm:$0xf] %v5166
      %5231 = vst [vmem:[%s255 + $0x64] sm:$0xf] %v5167
      %5232 = vst [vmem:[%s255 + $0x68] sm:$0xf] %v5168
      %5233 = vst [vmem:[%s255 + $0x6c] sm:$0xf] %v5169
      %5234 = vst [vmem:[%s255 + $0x70] sm:$0xf] %v5170
      %5235 = vst [vmem:[%s255 + $0x74] sm:$0xf] %v5171
      %5236 = vst [vmem:[%s255 + $0x78] sm:$0xf] %v5172
      %5237 = vst [vmem:[%s255 + $0x7c] sm:$0xf] %v5173
      %v5238 = vadd.f32 %v5046, %v5047
      %v5239 = vadd.f32 %v5238, %v5048
      %v5240 = vadd.f32 %v5239, %v5049
      %v5241 = vadd.f32 %v5240, %v5050
      %v5242 = vadd.f32 %v5241, %v5051
      %v5243 = vadd.f32 %v5242, %v5052
      %v5244 = vadd.f32 %v5243, %v5053
      %v5245 = vadd.f32 %v5244, %v5054
      %v5246 = vadd.f32 %v5245, %v5055
      %v5247 = vadd.f32 %v5246, %v5056
      %v5248 = vadd.f32 %v5247, %v5057
      %v5249 = vadd.f32 %v5248, %v5058
      %v5250 = vadd.f32 %v5249, %v5059
      %v5251 = vadd.f32 %v5250, %v5060
      %v5252 = vadd.f32 %v5251, %v5061
      %v5253 = vadd.f32 %v5252, %v5062
      %v5254 = vadd.f32 %v5253, %v5063
      %v5255 = vadd.f32 %v5254, %v5064
      %v5256 = vadd.f32 %v5255, %v5065
      %v5257 = vadd.f32 %v5256, %v5066
      %v5258 = vadd.f32 %v5257, %v5067
      %v5259 = vadd.f32 %v5258, %v5068
      %v5260 = vadd.f32 %v5259, %v5069
      %v5261 = vadd.f32 %v5260, %v5070
      %v5262 = vadd.f32 %v5261, %v5071
      %v5263 = vadd.f32 %v5262, %v5072
      %v5264 = vadd.f32 %v5263, %v5073
      %v5265 = vadd.f32 %v5264, %v5074
      %v5266 = vadd.f32 %v5265, %v5075
      %v5267 = vadd.f32 %v5266, %v5076
      %v5268 = vadd.f32 %v5267, %v5077
      %v5269 = vrot.slane %v5268, 4
      %v5270 = vadd.f32 %v5268, %v5269
      %v5271 = vrot.slane %v5270, 2
      %v5272 = vadd.f32 %v5270, %v5271
      %v5273 = vrot.slane %v5272, 1
      %v5274 = vadd.f32 %v5272, %v5273
      %5275 = vst [vmem:[%s261] sm:$0x1] %v5274
      %v5276 = vmul.f32 %v5046, %v5046
      %v5277 = vmul.f32 %v5047, %v5047
      %v5278 = vmul.f32 %v5048, %v5048
      %v5279 = vmul.f32 %v5049, %v5049
      %v5280 = vmul.f32 %v5050, %v5050
      %v5281 = vmul.f32 %v5051, %v5051
      %v5282 = vmul.f32 %v5052, %v5052
      %v5283 = vmul.f32 %v5053, %v5053
      %v5284 = vmul.f32 %v5054, %v5054
      %v5285 = vmul.f32 %v5055, %v5055
      %v5286 = vmul.f32 %v5056, %v5056
      %v5287 = vmul.f32 %v5057, %v5057
      %v5288 = vmul.f32 %v5058, %v5058
      %v5289 = vmul.f32 %v5059, %v5059
      %v5290 = vmul.f32 %v5060, %v5060
      %v5291 = vmul.f32 %v5061, %v5061
      %v5292 = vmul.f32 %v5062, %v5062
      %v5293 = vmul.f32 %v5063, %v5063
      %v5294 = vmul.f32 %v5064, %v5064
      %v5295 = vmul.f32 %v5065, %v5065
      %v5296 = vmul.f32 %v5066, %v5066
      %v5297 = vmul.f32 %v5067, %v5067
      %v5298 = vmul.f32 %v5068, %v5068
      %v5299 = vmul.f32 %v5069, %v5069
      %v5300 = vmul.f32 %v5070, %v5070
      %v5301 = vmul.f32 %v5071, %v5071
      %v5302 = vmul.f32 %v5072, %v5072
      %v5303 = vmul.f32 %v5073, %v5073
      %v5304 = vmul.f32 %v5074, %v5074
      %v5305 = vmul.f32 %v5075, %v5075
      %v5306 = vmul.f32 %v5076, %v5076
      %v5307 = vmul.f32 %v5077, %v5077
      %v5308 = vadd.f32 %v5276, %v5277
      %v5309 = vadd.f32 %v5308, %v5278
      %v5310 = vadd.f32 %v5309, %v5279
      %v5311 = vadd.f32 %v5310, %v5280
      %v5312 = vadd.f32 %v5311, %v5281
      %v5313 = vadd.f32 %v5312, %v5282
      %v5314 = vadd.f32 %v5313, %v5283
      %v5315 = vadd.f32 %v5314, %v5284
      %v5316 = vadd.f32 %v5315, %v5285
      %v5317 = vadd.f32 %v5316, %v5286
      %v5318 = vadd.f32 %v5317, %v5287
      %v5319 = vadd.f32 %v5318, %v5288
      %v5320 = vadd.f32 %v5319, %v5289
      %v5321 = vadd.f32 %v5320, %v5290
      %v5322 = vadd.f32 %v5321, %v5291
      %v5323 = vadd.f32 %v5322, %v5292
      %v5324 = vadd.f32 %v5323, %v5293
      %v5325 = vadd.f32 %v5324, %v5294
      %v5326 = vadd.f32 %v5325, %v5295
      %v5327 = vadd.f32 %v5326, %v5296
      %v5328 = vadd.f32 %v5327, %v5297
      %v5329 = vadd.f32 %v5328, %v5298
      %v5330 = vadd.f32 %v5329, %v5299
      %v5331 = vadd.f32 %v5330, %v5300
      %v5332 = vadd.f32 %v5331, %v5301
      %v5333 = vadd.f32 %v5332, %v5302
      %v5334 = vadd.f32 %v5333, %v5303
      %v5335 = vadd.f32 %v5334, %v5304
      %v5336 = vadd.f32 %v5335, %v5305
      %v5337 = vadd.f32 %v5336, %v5306
      %v5338 = vadd.f32 %v5337, %v5307
      %v5339 = vrot.slane %v5338, 4
      %v5340 = vadd.f32 %v5338, %v5339
      %v5341 = vrot.slane %v5340, 2
      %v5342 = vadd.f32 %v5340, %v5341
      %v5343 = vrot.slane %v5342, 1
      %v5344 = vadd.f32 %v5342, %v5343
      %5345 = vst [vmem:[%s267] sm:$0x1] %v5344
      %p5346 = scmp.lt.s32.totalorder %s20, 1
      %s5347 = scalar_select %p5346, %s20, 1
      %p5348 = scmp.lt.s32.totalorder %s21, 0
      %s5349 = scalar_select %p5348, %s21, 0
      %s5350 = smul.addr %s5347, 32
      %s5351 = sadd.s32 %s5349, %s5350
      %s5352 = smul.addr %s5351, 4
      %s5353 = scalar_lea.vmem %s2, %s5352
      %p5354 = scmp.lt.s32.totalorder %s20, 1
      %s5355 = scalar_select %p5354, %s20, 1
      %p5356 = scmp.lt.s32.totalorder %s21, 0
      %s5357 = scalar_select %p5356, %s21, 0
      %s5358 = sadd.s32 %s5357, %s5355
      %s5359 = scalar_lea.vmem %s3, %s5358
      %p5360 = scmp.lt.s32.totalorder %s20, 1
      %s5361 = scalar_select %p5360, %s20, 1
      %p5362 = scmp.lt.s32.totalorder %s21, 0
      %s5363 = scalar_select %p5362, %s21, 0
      %s5364 = sadd.s32 %s5363, %s5361
      %s5365 = scalar_lea.vmem %s4, %s5364
      // Predicated region
      $region29: #{conv2d_batchnorm_relu.2} parent=27 // pred_check
        %p5366 = pneg %p100
      $region30: #{conv2d_batchnorm_relu.2} parent=27 // pred_check_branch
        %5368 = sbr.rel (%p5366) target = $region32
      $region31: #{conv2d_batchnorm_relu.2} parent=27 // pred_region
        _
      $region32: #{conv2d_batchnorm_relu.2} parent=27 // pred_fallthru
        _
      // Predicated region
      $region33: #{conv2d_batchnorm_relu.2} parent=27 // pred_check
        %p5369 = pneg %p128
      $region34: #{conv2d_batchnorm_relu.2} parent=27 // pred_check_branch
        %5371 = sbr.rel (%p5369) target = $region36
      $region35: #{conv2d_batchnorm_relu.2} parent=27 // pred_region
        _
      $region36: #{conv2d_batchnorm_relu.2} parent=27 // pred_fallthru
        _
      // Predicated region
      $region37: #{conv2d_batchnorm_relu.2} parent=27 // pred_check
        %p5372 = pneg %p156
      $region38: #{conv2d_batchnorm_relu.2} parent=27 // pred_check_branch
        %5374 = sbr.rel (%p5372) target = $region40
      $region39: #{conv2d_batchnorm_relu.2} parent=27 // pred_region
        _
      $region40: #{conv2d_batchnorm_relu.2} parent=27 // pred_fallthru
        _
    $region28: #{conv2d_batchnorm_relu.2} parent=5 // pred_fallthru
      _
    %p5375 = scmp.le.s32.totalorder 2, %s11
    // Predicated region
    $region41: #{conv2d_batchnorm_relu.2} parent=5 // pred_check
      %p5376 = pneg %p5375
    $region42: #{conv2d_batchnorm_relu.2} parent=5 // pred_check_branch
      %5378 = sbr.rel (%p5376) target = $region44
    $region43: #{conv2d_batchnorm_relu.2} parent=5 // pred_region
      %s5379 = ssub.s32 %s11, 2
      // Predicated region
      $region45: #{conv2d_batchnorm_relu.2} parent=43 // pred_check
        %p5380 = pneg %p106
      $region46: #{conv2d_batchnorm_relu.2} parent=43 // pred_check_branch
        %5382 = sbr.rel (%p5380) target = $region48
      $region47: #{conv2d_batchnorm_relu.2} parent=43 // pred_region
        %p5383 = scmp.lt.s32.totalorder %s22, 1
        %s5384 = scalar_select %p5383, %s22, 1
        %p5385 = scmp.lt.s32.totalorder %s23, 0
        %s5386 = scalar_select %p5385, %s23, 0
        %s5387 = smul.addr %s5384, 32
        %s5388 = sadd.s32 %s5386, %s5387
        %s5389 = smul.addr %s5388, 4
        %s5390 = scalar_lea.vmem %s2, %s5389
      $region48: #{conv2d_batchnorm_relu.2} parent=43 // pred_fallthru
        _
      // Predicated region
      $region49: #{conv2d_batchnorm_relu.2} parent=43 // pred_check
        %p5391 = pneg %p134
      $region50: #{conv2d_batchnorm_relu.2} parent=43 // pred_check_branch
        %5393 = sbr.rel (%p5391) target = $region52
      $region51: #{conv2d_batchnorm_relu.2} parent=43 // pred_region
        %p5394 = scmp.lt.s32.totalorder %s22, 1
        %s5395 = scalar_select %p5394, %s22, 1
        %p5396 = scmp.lt.s32.totalorder %s23, 0
        %s5397 = scalar_select %p5396, %s23, 0
        %s5398 = sadd.s32 %s5397, %s5395
        %s5399 = scalar_lea.vmem %s3, %s5398
      $region52: #{conv2d_batchnorm_relu.2} parent=43 // pred_fallthru
        _
      // Predicated region
      $region53: #{conv2d_batchnorm_relu.2} parent=43 // pred_check
        %p5400 = pneg %p162
      $region54: #{conv2d_batchnorm_relu.2} parent=43 // pred_check_branch
        %5402 = sbr.rel (%p5400) target = $region56
      $region55: #{conv2d_batchnorm_relu.2} parent=43 // pred_region
        %p5403 = scmp.lt.s32.totalorder %s22, 1
        %s5404 = scalar_select %p5403, %s22, 1
        %p5405 = scmp.lt.s32.totalorder %s23, 0
        %s5406 = scalar_select %p5405, %s23, 0
        %s5407 = sadd.s32 %s5406, %s5404
        %s5408 = scalar_lea.vmem %s4, %s5407
      $region56: #{conv2d_batchnorm_relu.2} parent=43 // pred_fallthru
        _
    $region44: #{conv2d_batchnorm_relu.2} parent=5 // pred_fallthru
      _
  $region6: #{conv2d_batchnorm_relu.2} parent=0 // loop_footer
    %s15 = sadd.s32 1, %s11
  $region7: #{conv2d_batchnorm_relu.2} parent=0 // loop_footer_branch
    %10 = sbr.rel target = $region3
  $region8: #{conv2d_batchnorm_relu.2} parent=0 // loop_exit
    _

</llo_original>
